<compile_context>
chip_gen: v6e
topology: v6e:2x2x1
jax: 0.10.0
libtpu: 0.0.40
codegen_flags: <defaults>
</compile_context>

<pallas_src>
import functools

import jax
import jax.numpy as jnp
from jax.experimental import pallas as pl
from jax.experimental.pallas import tpu as pltpu


# ----------------------------------------------------------------------------
# Weight prep: rearrange a 3x3 conv weight (Cout, Cin, 3, 3) for the parity layout.
# Returns (4, 4, 4*Cin, Cout) indexed
#   [out_parity p=(dy*2+dx), window w=(wr*2+wc), in_parity*Cin + c, co]
# such that on a zero-padded parity image xpad (H+2, W+2, 4*Cin):
#   out_parity[p][i, j, :] = sum_{wr,wc} xpad[i+dy+wr, j+dx+wc, :] @ W[p, wr*2+wc]
# equals the 3x3 / pad=1 convolution evaluated on the 2x-resolution image.
# ----------------------------------------------------------------------------
def _parity_conv_weight(w_oihw, dtype):
    Cout, Cin, _, _ = w_oihw.shape
    w_hwio = jnp.transpose(w_oihw, (2, 3, 1, 0)).astype(dtype)   # (3, 3, Cin, Cout)
    zero = jnp.zeros((Cin, Cout), dtype)
    outer = []
    for dy in range(2):
        for dx in range(2):
            wins = []
            for wr in range(2):
                for wc in range(2):
                    parts = []
                    for py in range(2):
                        for px in range(2):
                            ky = dy + 2 * wr + py - 1
                            kx = dx + 2 * wc + px - 1
                            ok = (0 <= ky <= 2) and (0 <= kx <= 2)
                            parts.append(w_hwio[ky, kx] if ok else zero)
                    wins.append(jnp.concatenate(parts, axis=0))   # (4*Cin, Cout)
            outer.append(jnp.stack(wins))                         # (4, 4*Cin, Cout)
    return jnp.stack(outer)                                       # (4, 4, 4*Cin, Cout)


# ----------------------------------------------------------------------------
# Kernel A: fused ConvTranspose2d(k=2,s=2) + Conv2d(3x3, pad=1), one batch per step.
# ----------------------------------------------------------------------------
def _make_up_conv_kernel(H, W, Cin, Cout, cdt):
    K4 = 4 * Cin

    def kernel(x1_ref, wup_ref, bup_ref, wc_ref, bc_ref, o_ref, upad_ref):
        # upconv as a single matmul; result is already parity-packed: (H*W, 4*Cin)
        x = x1_ref[0].reshape(H * W, Cin)
        u = jnp.dot(x, wup_ref[...], preferred_element_type=jnp.float32) + bup_ref[...]

        # zero the 1-pixel halo (conv padding handled in-kernel), write interior
        upad_ref[0:1, :, :] = jnp.zeros((1, W + 2, K4), cdt)
        upad_ref[H + 1:H + 2, :, :] = jnp.zeros((1, W + 2, K4), cdt)
        upad_ref[:, 0:1, :] = jnp.zeros((H + 2, 1, K4), cdt)
        upad_ref[:, W + 1:W + 2, :] = jnp.zeros((H + 2, 1, K4), cdt)
        upad_ref[1:H + 1, 1:W + 1, :] = u.astype(cdt).reshape(H, W, K4)

        # 3x3 conv in parity space: 4 output parities x 4 shifted windows, K = 4*Cin
        bias = bc_ref[...]                                   # (1, Cout) f32 (hoisted)
        outs = []
        for p in range(4):
            dy, dx = p // 2, p % 2
            acc = None
            for widx in range(4):
                wr, wc = widx // 2, widx % 2
                win = upad_ref[dy + wr:dy + wr + H, dx + wc:dx + wc + W, :]
                d = jnp.dot(win.reshape(H * W, K4), wc_ref[p, widx],
                            preferred_element_type=jnp.float32)
                acc = d if acc is None else acc + d
            outs.append((acc + bias).astype(o_ref.dtype))
        o_ref[0] = jnp.concatenate(outs, axis=-1).reshape(H, W, 4 * Cout)

    return kernel


# ----------------------------------------------------------------------------
# Kernel B: fused concat + Conv2d(3x3, pad=1) + sigmoid(relu(.)), one batch per step.
# x3 and x2 are separate inputs; concat happens only inside the VMEM scratch.
# ----------------------------------------------------------------------------
def _make_cat_conv_act_kernel(H, W, Cx3, C2, Cout, cdt):
    K4 = 4 * (Cx3 + C2)
    C3 = 4 * Cx3

    def kernel(x3_ref, x2_ref, wc_ref, bc_ref, o_ref, xpad_ref):
        xpad_ref[0:1, :, :] = jnp.zeros((1, W + 2, K4), cdt)
        xpad_ref[H + 1:H + 2, :, :] = jnp.zeros((1, W + 2, K4), cdt)
        xpad_ref[:, 0:1, :] = jnp.zeros((H + 2, 1, K4), cdt)
        xpad_ref[:, W + 1:W + 2, :] = jnp.zeros((H + 2, 1, K4), cdt)
        xpad_ref[1:H + 1, 1:W + 1, 0:C3] = x3_ref[0]          # "concat" = two VMEM writes
        xpad_ref[1:H + 1, 1:W + 1, C3:K4] = x2_ref[0]

        bias = bc_ref[...]
        outs = []
        for p in range(4):
            dy, dx = p // 2, p % 2
            acc = None
            for widx in range(4):
                wr, wc = widx // 2, widx % 2
                win = xpad_ref[dy + wr:dy + wr + H, dx + wc:dx + wc + W, :]
                d = jnp.dot(win.reshape(H * W, K4), wc_ref[p, widx],
                            preferred_element_type=jnp.float32)
                acc = d if acc is None else acc + d
            a = jax.nn.sigmoid(jnp.maximum(acc + bias, 0.0))  # dcatt in f32
            outs.append(a.astype(o_ref.dtype))
        o_ref[0] = jnp.concatenate(outs, axis=-1)             # (H*W, 4*Cout)

    return kernel


# ----------------------------------------------------------------------------
# Forward wrapper (NCHW in / NCHW out, matching the PyTorch module).
# ----------------------------------------------------------------------------
@functools.partial(jax.jit, static_argnames=("compute_dtype",))
def dec_attention3_forward(x1_nchw, x2_nchw, params, compute_dtype=jnp.bfloat16):
    w_up, b_up = params["up_w"], params["up_b"]
    w_dc, b_dc = params["dc_w"], params["dc_b"]

    N, Cin, H, W = x1_nchw.shape
    C2 = x2_nchw.shape[1]
    Cout = w_dc.shape[0]
    assert Cout + C2 == Cin, "shared down_channel conv needs channels(x2) == in_chan - out_chan"
    cdt = compute_dtype

    # ---- layout conversion at the graph edges only ----
    x1 = jnp.transpose(x1_nchw, (0, 2, 3, 1)).astype(cdt)                         # (N,H,W,Cin)
    x2p = jnp.transpose(x2_nchw.reshape(N, C2, H, 2, W, 2),
                        (0, 2, 4, 3, 5, 1)).reshape(N, H, W, 4 * C2).astype(cdt)  # parity layout

    # ---- weight prep (tiny) ----
    # ConvTranspose2d weight (Cin, Cin, 2, 2): columns ordered (dy, dx, co) == parity-packed.
    w_up_f = jnp.transpose(w_up, (0, 2, 3, 1)).reshape(Cin, 4 * Cin).astype(cdt)
    b_up_t = jnp.tile(b_up, 4).reshape(1, 4 * Cin).astype(jnp.float32)
    wpar = _parity_conv_weight(w_dc, cdt)                    # rows ordered (parity, conv-in-chan)
    wp1 = wpar                                               # kernel A input = up (Cin channels)
    wr_ = wpar.reshape(4, 4, 4, Cin, Cout)
    wp2 = jnp.concatenate(                                   # reorder rows: [x3 block | x2 block]
        [wr_[:, :, :, :Cout, :].reshape(4, 4, 4 * Cout, Cout),
         wr_[:, :, :, Cout:, :].reshape(4, 4, 4 * C2, Cout)],
        axis=2)
    b_c = b_dc.reshape(1, Cout).astype(jnp.float32)

    cparams = pltpu.CompilerParams(dimension_semantics=("parallel",))

    # ---- kernel A: fused upconv + down_channel (up never touches HBM) ----
    x3p = pl.pallas_call(
        _make_up_conv_kernel(H, W, Cin, Cout, cdt),
        out_shape=jax.ShapeDtypeStruct((N, H, W, 4 * Cout), cdt),
        grid=(N,),
        in_specs=[
            pl.BlockSpec((1, H, W, Cin), lambda n: (n, 0, 0, 0)),
            pl.BlockSpec((Cin, 4 * Cin), lambda n: (0, 0)),
            pl.BlockSpec((1, 4 * Cin), lambda n: (0, 0)),
            pl.BlockSpec((4, 4, 4 * Cin, Cout), lambda n: (0, 0, 0, 0)),
            pl.BlockSpec((1, Cout), lambda n: (0, 0)),
        ],
        out_specs=pl.BlockSpec((1, H, W, 4 * Cout), lambda n: (n, 0, 0, 0)),
        scratch_shapes=[pltpu.VMEM((H + 2, W + 2, 4 * Cin), cdt)],
        compiler_params=cparams,
    )(x1, w_up_f, b_up_t, wp1, b_c)

    # ---- kernel B: fused concat + down_channel + sigmoid(relu(.)) ----
    out2d = pl.pallas_call(
        _make_cat_conv_act_kernel(H, W, Cout, C2, Cout, cdt),
        out_shape=jax.ShapeDtypeStruct((N, H * W, 4 * Cout), jnp.float32),
        grid=(N,),
        in_specs=[
            pl.BlockSpec((1, H, W, 4 * Cout), lambda n: (n, 0, 0, 0)),
            pl.BlockSpec((1, H, W, 4 * C2), lambda n: (n, 0, 0, 0)),
            pl.BlockSpec((4, 4, 4 * Cin, Cout), lambda n: (0, 0, 0, 0)),
            pl.BlockSpec((1, Cout), lambda n: (0, 0)),
        ],
        out_specs=pl.BlockSpec((1, H * W, 4 * Cout), lambda n: (n, 0, 0)),
        scratch_shapes=[pltpu.VMEM((H + 2, W + 2, 4 * Cin), cdt)],
        compiler_params=cparams,
    )(x3p, x2p, wp2, b_c)

    # ---- back to NCHW: the single, unavoidable output transpose (module API) ----
    out = out2d.reshape(N, H, W, 2, 2, Cout)
    out = jnp.transpose(out, (0, 5, 1, 3, 2, 4)).reshape(N, Cout, 2 * H, 2 * W)
    return out


# ----------------------------------------------------------------------------
# Pure-JAX reference (correctness check only).
# ----------------------------------------------------------------------------
def reference_forward(x1, x2, params):
    w_up, b_up = params["up_w"], params["up_b"]
    w_dc, b_dc = params["dc_w"], params["dc_b"]
    N, Cin, H, W = x1.shape

    y = jnp.einsum("ncij,cokl->noikjl", x1, w_up)            # ConvTranspose2d(k=2,s=2)
    up = y.reshape(N, Cin, 2 * H, 2 * W) + b_up[None, :, None, None]

    def conv(x):
        o = jax.lax.conv_general_dilated(
            x, w_dc, window_strides=(1, 1), padding=((1, 1), (1, 1)),
            dimension_numbers=("NCHW", "OIHW", "NCHW"))
        return o + b_dc[None, :, None, None]

    x3 = conv(up)
    x4 = jnp.concatenate([x3, x2], axis=1)
    x5 = conv(x4)
    return jax.nn.sigmoid(jnp.maximum(x5, 0.0))


if __name__ == "__main__":
    # Shapes consistent with the module: channels(x2) == in_chan - out_chan.
    N, Cin, Cout, H, W = 2, 8, 4, 8, 8
    C2 = Cin - Cout

    key = jax.random.PRNGKey(0)
    k1, k2, k3, k4, k5, k6 = jax.random.split(key, 6)
    x1 = jax.random.normal(k1, (N, Cin, H, W), jnp.float32)
    x2 = jax.random.normal(k2, (N, C2, 2 * H, 2 * W), jnp.float32)

    params = dict(
        up_w=jax.random.normal(k3, (Cin, Cin, 2, 2), jnp.float32) * 0.2,   # (in, out, kH, kW)
        up_b=jax.random.normal(k4, (Cin,), jnp.float32) * 0.1,
        dc_w=jax.random.normal(k5, (Cout, Cin, 3, 3), jnp.float32) * 0.2,  # (out, in, kH, kW)
        dc_b=jax.random.normal(k6, (Cout,), jnp.float32) * 0.1,
    )

    ref = jax.block_until_ready(reference_forward(x1, x2, params))

    # f32 path: tight check of the fused structure.
    out_f32 = jax.block_until_ready(
        dec_attention3_forward(x1, x2, params, compute_dtype=jnp.float32))
    assert out_f32.shape == (N, Cout, 2 * H, 2 * W), out_f32.shape
    assert jnp.allclose(out_f32, ref, atol=1e-3, rtol=1e-3), \
        float(jnp.max(jnp.abs(out_f32 - ref)))

    # bf16 path (default, the perf configuration): looser tolerance.
    out_bf16 = jax.block_until_ready(
        dec_attention3_forward(x1, x2, params, compute_dtype=jnp.bfloat16))
    assert out_bf16.shape == (N, Cout, 2 * H, 2 * W), out_bf16.shape
    assert jnp.allclose(out_bf16, ref, atol=5e-2, rtol=5e-2), \
        float(jnp.max(jnp.abs(out_bf16 - ref)))

    print("KERNEL_OK")
</pallas_src>

<mosaic_0001>
module attributes {stable_mosaic.version = 11 : i64} {
  func.func @kernel(%arg0: i32, %arg1: memref<1x8x8x8xf32, #tpu.memory_space<vmem>>, %arg2: memref<8x32xf32, #tpu.memory_space<vmem>>, %arg3: memref<1x32xf32, #tpu.memory_space<vmem>>, %arg4: memref<4x4x32x4xf32, #tpu.memory_space<vmem>>, %arg5: memref<1x4xf32, #tpu.memory_space<vmem>>, %arg6: memref<1x8x8x16xf32, #tpu.memory_space<vmem>>, %arg7: memref<10x10x32xf32, #tpu.memory_space<vmem>>) attributes {dimension_semantics = [#tpu.dimension_semantics<parallel>], iteration_bounds = array<i64: 2>, scalar_prefetch = 0 : i64, scratch_operands = 1 : i64, tpu.core_type = #tpu.core_type<tc>, window_params = [{transform_indices = @transform_0, window_bounds = array<i64: 1, 8, 8, 8>}, {pipeline_mode = #tpu.pipeline_mode<synchronous>, transform_indices = @transform_1, window_bounds = array<i64: 8, 32>}, {pipeline_mode = #tpu.pipeline_mode<synchronous>, transform_indices = @transform_2, window_bounds = array<i64: 1, 32>}, {pipeline_mode = #tpu.pipeline_mode<synchronous>, transform_indices = @transform_3, window_bounds = array<i64: 4, 4, 32, 4>}, {pipeline_mode = #tpu.pipeline_mode<synchronous>, transform_indices = @transform_4, window_bounds = array<i64: 1, 4>}, {transform_indices = @transform_5, window_bounds = array<i64: 1, 8, 8, 16>}]} {
    %c0 = arith.constant 0 : index
    %c0_0 = arith.constant 0 : index
    %c0_1 = arith.constant 0 : index
    %c0_2 = arith.constant 0 : index
    %0 = vector.load %arg1[%c0, %c0_0, %c0_1, %c0_2] : memref<1x8x8x8xf32, #tpu.memory_space<vmem>>, vector<1x8x8x8xf32>
    %1 = vector.shape_cast %0 : vector<1x8x8x8xf32> to vector<8x8x8xf32>
    %2 = vector.shape_cast %1 : vector<8x8x8xf32> to vector<64x8xf32>
    %c0_3 = arith.constant 0 : index
    %c0_4 = arith.constant 0 : index
    %3 = vector.load %arg2[%c0_3, %c0_4] : memref<8x32xf32, #tpu.memory_space<vmem>>, vector<8x32xf32>
    %cst = arith.constant dense<0.000000e+00> : vector<64x32xf32>
    %4 = tpu.matmul %2, %3, %cst {dimension_numbers = #tpu.dot_dimension_numbers<[1], [0], [0], [1], [0, 0, 1, 1], [], []>} : vector<64x8xf32>, vector<8x32xf32>, vector<64x32xf32> -> vector<64x32xf32>
    %c0_5 = arith.constant 0 : index
    %c0_6 = arith.constant 0 : index
    %5 = vector.load %arg3[%c0_5, %c0_6] : memref<1x32xf32, #tpu.memory_space<vmem>>, vector<1x32xf32>
    %6 = vector.broadcast %5 : vector<1x32xf32> to vector<64x32xf32>
    %7 = arith.addf %4, %6 : vector<64x32xf32>
    %cst_7 = arith.constant 0.000000e+00 : f32
    %8 = vector.broadcast %cst_7 : f32 to vector<1x10x32xf32>
    %c0_8 = arith.constant 0 : index
    %c0_9 = arith.constant 0 : index
    %c0_10 = arith.constant 0 : index
    %9 = vector.load %arg7[%c0_8, %c0_9, %c0_10] : memref<10x10x32xf32, #tpu.memory_space<vmem>>, vector<1x10x32xf32>
    tpu.vector_store %arg7[%c0_8, %c0_9, %c0_10], %8 {strides = array<i32>} : memref<10x10x32xf32, #tpu.memory_space<vmem>>, vector<1x10x32xf32>,
    %cst_11 = arith.constant 0.000000e+00 : f32
    %10 = vector.broadcast %cst_11 : f32 to vector<1x10x32xf32>
    %c9 = arith.constant 9 : index
    %c0_12 = arith.constant 0 : index
    %c0_13 = arith.constant 0 : index
    %11 = vector.load %arg7[%c9, %c0_12, %c0_13] : memref<10x10x32xf32, #tpu.memory_space<vmem>>, vector<1x10x32xf32>
    tpu.vector_store %arg7[%c9, %c0_12, %c0_13], %10 {strides = array<i32>} : memref<10x10x32xf32, #tpu.memory_space<vmem>>, vector<1x10x32xf32>,
    %cst_14 = arith.constant 0.000000e+00 : f32
    %12 = vector.broadcast %cst_14 : f32 to vector<10x1x32xf32>
    %c0_15 = arith.constant 0 : index
    %c0_16 = arith.constant 0 : index
    %c0_17 = arith.constant 0 : index
    %13 = vector.load %arg7[%c0_15, %c0_16, %c0_17] : memref<10x10x32xf32, #tpu.memory_space<vmem>>, vector<10x1x32xf32>
    tpu.vector_store %arg7[%c0_15, %c0_16, %c0_17], %12 {strides = array<i32>} : memref<10x10x32xf32, #tpu.memory_space<vmem>>, vector<10x1x32xf32>,
    %cst_18 = arith.constant 0.000000e+00 : f32
    %14 = vector.broadcast %cst_18 : f32 to vector<10x1x32xf32>
    %c0_19 = arith.constant 0 : index
    %c9_20 = arith.constant 9 : index
    %c0_21 = arith.constant 0 : index
    %15 = vector.load %arg7[%c0_19, %c9_20, %c0_21] : memref<10x10x32xf32, #tpu.memory_space<vmem>>, vector<10x1x32xf32>
    tpu.vector_store %arg7[%c0_19, %c9_20, %c0_21], %14 {strides = array<i32>} : memref<10x10x32xf32, #tpu.memory_space<vmem>>, vector<10x1x32xf32>,
    %16 = vector.shape_cast %7 : vector<64x32xf32> to vector<8x8x32xf32>
    %c1 = arith.constant 1 : index
    %c1_22 = arith.constant 1 : index
    %c0_23 = arith.constant 0 : index
    %17 = vector.load %arg7[%c1, %c1_22, %c0_23] : memref<10x10x32xf32, #tpu.memory_space<vmem>>, vector<8x8x32xf32>
    tpu.vector_store %arg7[%c1, %c1_22, %c0_23], %16 {strides = array<i32>} : memref<10x10x32xf32, #tpu.memory_space<vmem>>, vector<8x8x32xf32>,
    %c0_24 = arith.constant 0 : index
    %c0_25 = arith.constant 0 : index
    %18 = vector.load %arg5[%c0_24, %c0_25] : memref<1x4xf32, #tpu.memory_space<vmem>>, vector<1x4xf32>
    %c0_26 = arith.constant 0 : index
    %c0_27 = arith.constant 0 : index
    %c0_28 = arith.constant 0 : index
    %19 = vector.load %arg7[%c0_26, %c0_27, %c0_28] : memref<10x10x32xf32, #tpu.memory_space<vmem>>, vector<8x8x32xf32>
    %20 = vector.shape_cast %19 : vector<8x8x32xf32> to vector<64x32xf32>
    %c0_29 = arith.constant 0 : index
    %c0_30 = arith.constant 0 : index
    %c0_31 = arith.constant 0 : index
    %c0_32 = arith.constant 0 : index
    %21 = vector.load %arg4[%c0_29, %c0_30, %c0_31, %c0_32] : memref<4x4x32x4xf32, #tpu.memory_space<vmem>>, vector<1x1x32x4xf32>
    %22 = vector.shape_cast %21 : vector<1x1x32x4xf32> to vector<32x4xf32>
    %cst_33 = arith.constant dense<0.000000e+00> : vector<64x4xf32>
    %23 = tpu.matmul %20, %22, %cst_33 {dimension_numbers = #tpu.dot_dimension_numbers<[1], [0], [0], [1], [0, 0, 1, 1], [], []>} : vector<64x32xf32>, vector<32x4xf32>, vector<64x4xf32> -> vector<64x4xf32>
    %c0_34 = arith.constant 0 : index
    %c1_35 = arith.constant 1 : index
    %c0_36 = arith.constant 0 : index
    %24 = vector.load %arg7[%c0_34, %c1_35, %c0_36] : memref<10x10x32xf32, #tpu.memory_space<vmem>>, vector<8x8x32xf32>
    %25 = vector.shape_cast %24 : vector<8x8x32xf32> to vector<64x32xf32>
    %c0_37 = arith.constant 0 : index
    %c1_38 = arith.constant 1 : index
    %c0_39 = arith.constant 0 : index
    %c0_40 = arith.constant 0 : index
    %26 = vector.load %arg4[%c0_37, %c1_38, %c0_39, %c0_40] : memref<4x4x32x4xf32, #tpu.memory_space<vmem>>, vector<1x1x32x4xf32>
    %27 = vector.shape_cast %26 : vector<1x1x32x4xf32> to vector<32x4xf32>
    %cst_41 = arith.constant dense<0.000000e+00> : vector<64x4xf32>
    %28 = tpu.matmul %25, %27, %cst_41 {dimension_numbers = #tpu.dot_dimension_numbers<[1], [0], [0], [1], [0, 0, 1, 1], [], []>} : vector<64x32xf32>, vector<32x4xf32>, vector<64x4xf32> -> vector<64x4xf32>
    %29 = arith.addf %23, %28 : vector<64x4xf32>
    %c1_42 = arith.constant 1 : index
    %c0_43 = arith.constant 0 : index
    %c0_44 = arith.constant 0 : index
    %30 = vector.load %arg7[%c1_42, %c0_43, %c0_44] : memref<10x10x32xf32, #tpu.memory_space<vmem>>, vector<8x8x32xf32>
    %31 = vector.shape_cast %30 : vector<8x8x32xf32> to vector<64x32xf32>
    %c0_45 = arith.constant 0 : index
    %c2 = arith.constant 2 : index
    %c0_46 = arith.constant 0 : index
    %c0_47 = arith.constant 0 : index
    %32 = vector.load %arg4[%c0_45, %c2, %c0_46, %c0_47] : memref<4x4x32x4xf32, #tpu.memory_space<vmem>>, vector<1x1x32x4xf32>
    %33 = vector.shape_cast %32 : vector<1x1x32x4xf32> to vector<32x4xf32>
    %cst_48 = arith.constant dense<0.000000e+00> : vector<64x4xf32>
    %34 = tpu.matmul %31, %33, %cst_48 {dimension_numbers = #tpu.dot_dimension_numbers<[1], [0], [0], [1], [0, 0, 1, 1], [], []>} : vector<64x32xf32>, vector<32x4xf32>, vector<64x4xf32> -> vector<64x4xf32>
    %35 = arith.addf %29, %34 : vector<64x4xf32>
    %c1_49 = arith.constant 1 : index
    %c1_50 = arith.constant 1 : index
    %c0_51 = arith.constant 0 : index
    %36 = vector.load %arg7[%c1_49, %c1_50, %c0_51] : memref<10x10x32xf32, #tpu.memory_space<vmem>>, vector<8x8x32xf32>
    %37 = vector.shape_cast %36 : vector<8x8x32xf32> to vector<64x32xf32>
    %c0_52 = arith.constant 0 : index
    %c3 = arith.constant 3 : index
    %c0_53 = arith.constant 0 : index
    %c0_54 = arith.constant 0 : index
    %38 = vector.load %arg4[%c0_52, %c3, %c0_53, %c0_54] : memref<4x4x32x4xf32, #tpu.memory_space<vmem>>, vector<1x1x32x4xf32>
    %39 = vector.shape_cast %38 : vector<1x1x32x4xf32> to vector<32x4xf32>
    %cst_55 = arith.constant dense<0.000000e+00> : vector<64x4xf32>
    %40 = tpu.matmul %37, %39, %cst_55 {dimension_numbers = #tpu.dot_dimension_numbers<[1], [0], [0], [1], [0, 0, 1, 1], [], []>} : vector<64x32xf32>, vector<32x4xf32>, vector<64x4xf32> -> vector<64x4xf32>
    %41 = arith.addf %35, %40 : vector<64x4xf32>
    %42 = vector.broadcast %18 : vector<1x4xf32> to vector<64x4xf32>
    %43 = arith.addf %41, %42 : vector<64x4xf32>
    %c0_56 = arith.constant 0 : index
    %c1_57 = arith.constant 1 : index
    %c0_58 = arith.constant 0 : index
    %44 = vector.load %arg7[%c0_56, %c1_57, %c0_58] : memref<10x10x32xf32, #tpu.memory_space<vmem>>, vector<8x8x32xf32>
    %45 = vector.shape_cast %44 : vector<8x8x32xf32> to vector<64x32xf32>
    %c1_59 = arith.constant 1 : index
    %c0_60 = arith.constant 0 : index
    %c0_61 = arith.constant 0 : index
    %c0_62 = arith.constant 0 : index
    %46 = vector.load %arg4[%c1_59, %c0_60, %c0_61, %c0_62] : memref<4x4x32x4xf32, #tpu.memory_space<vmem>>, vector<1x1x32x4xf32>
    %47 = vector.shape_cast %46 : vector<1x1x32x4xf32> to vector<32x4xf32>
    %cst_63 = arith.constant dense<0.000000e+00> : vector<64x4xf32>
    %48 = tpu.matmul %45, %47, %cst_63 {dimension_numbers = #tpu.dot_dimension_numbers<[1], [0], [0], [1], [0, 0, 1, 1], [], []>} : vector<64x32xf32>, vector<32x4xf32>, vector<64x4xf32> -> vector<64x4xf32>
    %c0_64 = arith.constant 0 : index
    %c2_65 = arith.constant 2 : index
    %c0_66 = arith.constant 0 : index
    %49 = vector.load %arg7[%c0_64, %c2_65, %c0_66] : memref<10x10x32xf32, #tpu.memory_space<vmem>>, vector<8x8x32xf32>
    %50 = vector.shape_cast %49 : vector<8x8x32xf32> to vector<64x32xf32>
    %c1_67 = arith.constant 1 : index
    %c1_68 = arith.constant 1 : index
    %c0_69 = arith.constant 0 : index
    %c0_70 = arith.constant 0 : index
    %51 = vector.load %arg4[%c1_67, %c1_68, %c0_69, %c0_70] : memref<4x4x32x4xf32, #tpu.memory_space<vmem>>, vector<1x1x32x4xf32>
    %52 = vector.shape_cast %51 : vector<1x1x32x4xf32> to vector<32x4xf32>
    %cst_71 = arith.constant dense<0.000000e+00> : vector<64x4xf32>
    %53 = tpu.matmul %50, %52, %cst_71 {dimension_numbers = #tpu.dot_dimension_numbers<[1], [0], [0], [1], [0, 0, 1, 1], [], []>} : vector<64x32xf32>, vector<32x4xf32>, vector<64x4xf32> -> vector<64x4xf32>
    %54 = arith.addf %48, %53 : vector<64x4xf32>
    %c1_72 = arith.constant 1 : index
    %c1_73 = arith.constant 1 : index
    %c0_74 = arith.constant 0 : index
    %55 = vector.load %arg7[%c1_72, %c1_73, %c0_74] : memref<10x10x32xf32, #tpu.memory_space<vmem>>, vector<8x8x32xf32>
    %56 = vector.shape_cast %55 : vector<8x8x32xf32> to vector<64x32xf32>
    %c1_75 = arith.constant 1 : index
    %c2_76 = arith.constant 2 : index
    %c0_77 = arith.constant 0 : index
    %c0_78 = arith.constant 0 : index
    %57 = vector.load %arg4[%c1_75, %c2_76, %c0_77, %c0_78] : memref<4x4x32x4xf32, #tpu.memory_space<vmem>>, vector<1x1x32x4xf32>
    %58 = vector.shape_cast %57 : vector<1x1x32x4xf32> to vector<32x4xf32>
    %cst_79 = arith.constant dense<0.000000e+00> : vector<64x4xf32>
    %59 = tpu.matmul %56, %58, %cst_79 {dimension_numbers = #tpu.dot_dimension_numbers<[1], [0], [0], [1], [0, 0, 1, 1], [], []>} : vector<64x32xf32>, vector<32x4xf32>, vector<64x4xf32> -> vector<64x4xf32>
    %60 = arith.addf %54, %59 : vector<64x4xf32>
    %c1_80 = arith.constant 1 : index
    %c2_81 = arith.constant 2 : index
    %c0_82 = arith.constant 0 : index
    %61 = vector.load %arg7[%c1_80, %c2_81, %c0_82] : memref<10x10x32xf32, #tpu.memory_space<vmem>>, vector<8x8x32xf32>
    %62 = vector.shape_cast %61 : vector<8x8x32xf32> to vector<64x32xf32>
    %c1_83 = arith.constant 1 : index
    %c3_84 = arith.constant 3 : index
    %c0_85 = arith.constant 0 : index
    %c0_86 = arith.constant 0 : index
    %63 = vector.load %arg4[%c1_83, %c3_84, %c0_85, %c0_86] : memref<4x4x32x4xf32, #tpu.memory_space<vmem>>, vector<1x1x32x4xf32>
    %64 = vector.shape_cast %63 : vector<1x1x32x4xf32> to vector<32x4xf32>
    %cst_87 = arith.constant dense<0.000000e+00> : vector<64x4xf32>
    %65 = tpu.matmul %62, %64, %cst_87 {dimension_numbers = #tpu.dot_dimension_numbers<[1], [0], [0], [1], [0, 0, 1, 1], [], []>} : vector<64x32xf32>, vector<32x4xf32>, vector<64x4xf32> -> vector<64x4xf32>
    %66 = arith.addf %60, %65 : vector<64x4xf32>
    %67 = vector.broadcast %18 : vector<1x4xf32> to vector<64x4xf32>
    %68 = arith.addf %66, %67 : vector<64x4xf32>
    %c1_88 = arith.constant 1 : index
    %c0_89 = arith.constant 0 : index
    %c0_90 = arith.constant 0 : index
    %69 = vector.load %arg7[%c1_88, %c0_89, %c0_90] : memref<10x10x32xf32, #tpu.memory_space<vmem>>, vector<8x8x32xf32>
    %70 = vector.shape_cast %69 : vector<8x8x32xf32> to vector<64x32xf32>
    %c2_91 = arith.constant 2 : index
    %c0_92 = arith.constant 0 : index
    %c0_93 = arith.constant 0 : index
    %c0_94 = arith.constant 0 : index
    %71 = vector.load %arg4[%c2_91, %c0_92, %c0_93, %c0_94] : memref<4x4x32x4xf32, #tpu.memory_space<vmem>>, vector<1x1x32x4xf32>
    %72 = vector.shape_cast %71 : vector<1x1x32x4xf32> to vector<32x4xf32>
    %cst_95 = arith.constant dense<0.000000e+00> : vector<64x4xf32>
    %73 = tpu.matmul %70, %72, %cst_95 {dimension_numbers = #tpu.dot_dimension_numbers<[1], [0], [0], [1], [0, 0, 1, 1], [], []>} : vector<64x32xf32>, vector<32x4xf32>, vector<64x4xf32> -> vector<64x4xf32>
    %c1_96 = arith.constant 1 : index
    %c1_97 = arith.constant 1 : index
    %c0_98 = arith.constant 0 : index
    %74 = vector.load %arg7[%c1_96, %c1_97, %c0_98] : memref<10x10x32xf32, #tpu.memory_space<vmem>>, vector<8x8x32xf32>
    %75 = vector.shape_cast %74 : vector<8x8x32xf32> to vector<64x32xf32>
    %c2_99 = arith.constant 2 : index
    %c1_100 = arith.constant 1 : index
    %c0_101 = arith.constant 0 : index
    %c0_102 = arith.constant 0 : index
    %76 = vector.load %arg4[%c2_99, %c1_100, %c0_101, %c0_102] : memref<4x4x32x4xf32, #tpu.memory_space<vmem>>, vector<1x1x32x4xf32>
    %77 = vector.shape_cast %76 : vector<1x1x32x4xf32> to vector<32x4xf32>
    %cst_103 = arith.constant dense<0.000000e+00> : vector<64x4xf32>
    %78 = tpu.matmul %75, %77, %cst_103 {dimension_numbers = #tpu.dot_dimension_numbers<[1], [0], [0], [1], [0, 0, 1, 1], [], []>} : vector<64x32xf32>, vector<32x4xf32>, vector<64x4xf32> -> vector<64x4xf32>
    %79 = arith.addf %73, %78 : vector<64x4xf32>
    %c2_104 = arith.constant 2 : index
    %c0_105 = arith.constant 0 : index
    %c0_106 = arith.constant 0 : index
    %80 = vector.load %arg7[%c2_104, %c0_105, %c0_106] : memref<10x10x32xf32, #tpu.memory_space<vmem>>, vector<8x8x32xf32>
    %81 = vector.shape_cast %80 : vector<8x8x32xf32> to vector<64x32xf32>
    %c2_107 = arith.constant 2 : index
    %c2_108 = arith.constant 2 : index
    %c0_109 = arith.constant 0 : index
    %c0_110 = arith.constant 0 : index
    %82 = vector.load %arg4[%c2_107, %c2_108, %c0_109, %c0_110] : memref<4x4x32x4xf32, #tpu.memory_space<vmem>>, vector<1x1x32x4xf32>
    %83 = vector.shape_cast %82 : vector<1x1x32x4xf32> to vector<32x4xf32>
    %cst_111 = arith.constant dense<0.000000e+00> : vector<64x4xf32>
    %84 = tpu.matmul %81, %83, %cst_111 {dimension_numbers = #tpu.dot_dimension_numbers<[1], [0], [0], [1], [0, 0, 1, 1], [], []>} : vector<64x32xf32>, vector<32x4xf32>, vector<64x4xf32> -> vector<64x4xf32>
    %85 = arith.addf %79, %84 : vector<64x4xf32>
    %c2_112 = arith.constant 2 : index
    %c1_113 = arith.constant 1 : index
    %c0_114 = arith.constant 0 : index
    %86 = vector.load %arg7[%c2_112, %c1_113, %c0_114] : memref<10x10x32xf32, #tpu.memory_space<vmem>>, vector<8x8x32xf32>
    %87 = vector.shape_cast %86 : vector<8x8x32xf32> to vector<64x32xf32>
    %c2_115 = arith.constant 2 : index
    %c3_116 = arith.constant 3 : index
    %c0_117 = arith.constant 0 : index
    %c0_118 = arith.constant 0 : index
    %88 = vector.load %arg4[%c2_115, %c3_116, %c0_117, %c0_118] : memref<4x4x32x4xf32, #tpu.memory_space<vmem>>, vector<1x1x32x4xf32>
    %89 = vector.shape_cast %88 : vector<1x1x32x4xf32> to vector<32x4xf32>
    %cst_119 = arith.constant dense<0.000000e+00> : vector<64x4xf32>
    %90 = tpu.matmul %87, %89, %cst_119 {dimension_numbers = #tpu.dot_dimension_numbers<[1], [0], [0], [1], [0, 0, 1, 1], [], []>} : vector<64x32xf32>, vector<32x4xf32>, vector<64x4xf32> -> vector<64x4xf32>
    %91 = arith.addf %85, %90 : vector<64x4xf32>
    %92 = vector.broadcast %18 : vector<1x4xf32> to vector<64x4xf32>
    %93 = arith.addf %91, %92 : vector<64x4xf32>
    %c1_120 = arith.constant 1 : index
    %c1_121 = arith.constant 1 : index
    %c0_122 = arith.constant 0 : index
    %94 = vector.load %arg7[%c1_120, %c1_121, %c0_122] : memref<10x10x32xf32, #tpu.memory_space<vmem>>, vector<8x8x32xf32>
    %95 = vector.shape_cast %94 : vector<8x8x32xf32> to vector<64x32xf32>
    %c3_123 = arith.constant 3 : index
    %c0_124 = arith.constant 0 : index
    %c0_125 = arith.constant 0 : index
    %c0_126 = arith.constant 0 : index
    %96 = vector.load %arg4[%c3_123, %c0_124, %c0_125, %c0_126] : memref<4x4x32x4xf32, #tpu.memory_space<vmem>>, vector<1x1x32x4xf32>
    %97 = vector.shape_cast %96 : vector<1x1x32x4xf32> to vector<32x4xf32>
    %cst_127 = arith.constant dense<0.000000e+00> : vector<64x4xf32>
    %98 = tpu.matmul %95, %97, %cst_127 {dimension_numbers = #tpu.dot_dimension_numbers<[1], [0], [0], [1], [0, 0, 1, 1], [], []>} : vector<64x32xf32>, vector<32x4xf32>, vector<64x4xf32> -> vector<64x4xf32>
    %c1_128 = arith.constant 1 : index
    %c2_129 = arith.constant 2 : index
    %c0_130 = arith.constant 0 : index
    %99 = vector.load %arg7[%c1_128, %c2_129, %c0_130] : memref<10x10x32xf32, #tpu.memory_space<vmem>>, vector<8x8x32xf32>
    %100 = vector.shape_cast %99 : vector<8x8x32xf32> to vector<64x32xf32>
    %c3_131 = arith.constant 3 : index
    %c1_132 = arith.constant 1 : index
    %c0_133 = arith.constant 0 : index
    %c0_134 = arith.constant 0 : index
    %101 = vector.load %arg4[%c3_131, %c1_132, %c0_133, %c0_134] : memref<4x4x32x4xf32, #tpu.memory_space<vmem>>, vector<1x1x32x4xf32>
    %102 = vector.shape_cast %101 : vector<1x1x32x4xf32> to vector<32x4xf32>
    %cst_135 = arith.constant dense<0.000000e+00> : vector<64x4xf32>
    %103 = tpu.matmul %100, %102, %cst_135 {dimension_numbers = #tpu.dot_dimension_numbers<[1], [0], [0], [1], [0, 0, 1, 1], [], []>} : vector<64x32xf32>, vector<32x4xf32>, vector<64x4xf32> -> vector<64x4xf32>
    %104 = arith.addf %98, %103 : vector<64x4xf32>
    %c2_136 = arith.constant 2 : index
    %c1_137 = arith.constant 1 : index
    %c0_138 = arith.constant 0 : index
    %105 = vector.load %arg7[%c2_136, %c1_137, %c0_138] : memref<10x10x32xf32, #tpu.memory_space<vmem>>, vector<8x8x32xf32>
    %106 = vector.shape_cast %105 : vector<8x8x32xf32> to vector<64x32xf32>
    %c3_139 = arith.constant 3 : index
    %c2_140 = arith.constant 2 : index
    %c0_141 = arith.constant 0 : index
    %c0_142 = arith.constant 0 : index
    %107 = vector.load %arg4[%c3_139, %c2_140, %c0_141, %c0_142] : memref<4x4x32x4xf32, #tpu.memory_space<vmem>>, vector<1x1x32x4xf32>
    %108 = vector.shape_cast %107 : vector<1x1x32x4xf32> to vector<32x4xf32>
    %cst_143 = arith.constant dense<0.000000e+00> : vector<64x4xf32>
    %109 = tpu.matmul %106, %108, %cst_143 {dimension_numbers = #tpu.dot_dimension_numbers<[1], [0], [0], [1], [0, 0, 1, 1], [], []>} : vector<64x32xf32>, vector<32x4xf32>, vector<64x4xf32> -> vector<64x4xf32>
    %110 = arith.addf %104, %109 : vector<64x4xf32>
    %c2_144 = arith.constant 2 : index
    %c2_145 = arith.constant 2 : index
    %c0_146 = arith.constant 0 : index
    %111 = vector.load %arg7[%c2_144, %c2_145, %c0_146] : memref<10x10x32xf32, #tpu.memory_space<vmem>>, vector<8x8x32xf32>
    %112 = vector.shape_cast %111 : vector<8x8x32xf32> to vector<64x32xf32>
    %c3_147 = arith.constant 3 : index
    %c3_148 = arith.constant 3 : index
    %c0_149 = arith.constant 0 : index
    %c0_150 = arith.constant 0 : index
    %113 = vector.load %arg4[%c3_147, %c3_148, %c0_149, %c0_150] : memref<4x4x32x4xf32, #tpu.memory_space<vmem>>, vector<1x1x32x4xf32>
    %114 = vector.shape_cast %113 : vector<1x1x32x4xf32> to vector<32x4xf32>
    %cst_151 = arith.constant dense<0.000000e+00> : vector<64x4xf32>
    %115 = tpu.matmul %112, %114, %cst_151 {dimension_numbers = #tpu.dot_dimension_numbers<[1], [0], [0], [1], [0, 0, 1, 1], [], []>} : vector<64x32xf32>, vector<32x4xf32>, vector<64x4xf32> -> vector<64x4xf32>
    %116 = arith.addf %110, %115 : vector<64x4xf32>
    %117 = vector.broadcast %18 : vector<1x4xf32> to vector<64x4xf32>
    %118 = arith.addf %116, %117 : vector<64x4xf32>
    %119 = tpu.concatenate %43, %68, %93, %118 in 1 : vector<64x4xf32>, vector<64x4xf32>, vector<64x4xf32>, vector<64x4xf32> -> vector<64x16xf32>
    %120 = vector.shape_cast %119 : vector<64x16xf32> to vector<8x8x16xf32>
    %c0_152 = arith.constant 0 : index
    %c0_153 = arith.constant 0 : index
    %c0_154 = arith.constant 0 : index
    %c0_155 = arith.constant 0 : index
    %121 = vector.load %arg6[%c0_152, %c0_153, %c0_154, %c0_155] : memref<1x8x8x16xf32, #tpu.memory_space<vmem>>, vector<1x8x8x16xf32>
    %122 = vector.shape_cast %121 : vector<1x8x8x16xf32> to vector<8x8x16xf32>
    %123 = vector.shape_cast %120 : vector<8x8x16xf32> to vector<1x8x8x16xf32>
    tpu.vector_store %arg6[%c0_152, %c0_153, %c0_154, %c0_155], %123 {strides = array<i32>} : memref<1x8x8x16xf32, #tpu.memory_space<vmem>>, vector<1x8x8x16xf32>,
    return
  }
  func.func @transform_0(%arg0: i32) -> (i32, i32, i32, i32) {
    %c0_i32 = arith.constant 0 : i32
    %c0_i32_0 = arith.constant 0 : i32
    %c0_i32_1 = arith.constant 0 : i32
    %c0_i32_2 = arith.constant 0 : i32
    return %arg0, %c0_i32, %c0_i32_0, %c0_i32_1 : i32, i32, i32, i32
  }
  func.func @transform_1(%arg0: i32) -> (i32, i32) {
    %c0_i32 = arith.constant 0 : i32
    %c0_i32_0 = arith.constant 0 : i32
    %c0_i32_1 = arith.constant 0 : i32
    return %c0_i32, %c0_i32_0 : i32, i32
  }
  func.func @transform_2(%arg0: i32) -> (i32, i32) {
    %c0_i32 = arith.constant 0 : i32
    %c0_i32_0 = arith.constant 0 : i32
    %c0_i32_1 = arith.constant 0 : i32
    return %c0_i32, %c0_i32_0 : i32, i32
  }
  func.func @transform_3(%arg0: i32) -> (i32, i32, i32, i32) {
    %c0_i32 = arith.constant 0 : i32
    %c0_i32_0 = arith.constant 0 : i32
    %c0_i32_1 = arith.constant 0 : i32
    %c0_i32_2 = arith.constant 0 : i32
    %c0_i32_3 = arith.constant 0 : i32
    return %c0_i32, %c0_i32_0, %c0_i32_1, %c0_i32_2 : i32, i32, i32, i32
  }
  func.func @transform_4(%arg0: i32) -> (i32, i32) {
    %c0_i32 = arith.constant 0 : i32
    %c0_i32_0 = arith.constant 0 : i32
    %c0_i32_1 = arith.constant 0 : i32
    return %c0_i32, %c0_i32_0 : i32, i32
  }
  func.func @transform_5(%arg0: i32) -> (i32, i32, i32, i32) {
    %c0_i32 = arith.constant 0 : i32
    %c0_i32_0 = arith.constant 0 : i32
    %c0_i32_1 = arith.constant 0 : i32
    %c0_i32_2 = arith.constant 0 : i32
    return %arg0, %c0_i32, %c0_i32_0, %c0_i32_1 : i32, i32, i32, i32
  }
}

module attributes {stable_mosaic.version = 11 : i64} {
  func.func @kernel(%arg0: i32, %arg1: memref<1x8x8x16xf32, #tpu.memory_space<vmem>>, %arg2: memref<1x8x8x16xf32, #tpu.memory_space<vmem>>, %arg3: memref<4x4x32x4xf32, #tpu.memory_space<vmem>>, %arg4: memref<1x4xf32, #tpu.memory_space<vmem>>, %arg5: memref<1x64x16xf32, #tpu.memory_space<vmem>>, %arg6: memref<10x10x32xf32, #tpu.memory_space<vmem>>) attributes {dimension_semantics = [#tpu.dimension_semantics<parallel>], iteration_bounds = array<i64: 2>, scalar_prefetch = 0 : i64, scratch_operands = 1 : i64, tpu.core_type = #tpu.core_type<tc>, window_params = [{transform_indices = @transform_0, window_bounds = array<i64: 1, 8, 8, 16>}, {transform_indices = @transform_1, window_bounds = array<i64: 1, 8, 8, 16>}, {pipeline_mode = #tpu.pipeline_mode<synchronous>, transform_indices = @transform_2, window_bounds = array<i64: 4, 4, 32, 4>}, {pipeline_mode = #tpu.pipeline_mode<synchronous>, transform_indices = @transform_3, window_bounds = array<i64: 1, 4>}, {transform_indices = @transform_4, window_bounds = array<i64: 1, 64, 16>}]} {
    %cst = arith.constant 0.000000e+00 : f32
    %0 = vector.broadcast %cst : f32 to vector<1x10x32xf32>
    %c0 = arith.constant 0 : index
    %c0_0 = arith.constant 0 : index
    %c0_1 = arith.constant 0 : index
    %1 = vector.load %arg6[%c0, %c0_0, %c0_1] : memref<10x10x32xf32, #tpu.memory_space<vmem>>, vector<1x10x32xf32>
    tpu.vector_store %arg6[%c0, %c0_0, %c0_1], %0 {strides = array<i32>} : memref<10x10x32xf32, #tpu.memory_space<vmem>>, vector<1x10x32xf32>,
    %cst_2 = arith.constant 0.000000e+00 : f32
    %2 = vector.broadcast %cst_2 : f32 to vector<1x10x32xf32>
    %c9 = arith.constant 9 : index
    %c0_3 = arith.constant 0 : index
    %c0_4 = arith.constant 0 : index
    %3 = vector.load %arg6[%c9, %c0_3, %c0_4] : memref<10x10x32xf32, #tpu.memory_space<vmem>>, vector<1x10x32xf32>
    tpu.vector_store %arg6[%c9, %c0_3, %c0_4], %2 {strides = array<i32>} : memref<10x10x32xf32, #tpu.memory_space<vmem>>, vector<1x10x32xf32>,
    %cst_5 = arith.constant 0.000000e+00 : f32
    %4 = vector.broadcast %cst_5 : f32 to vector<10x1x32xf32>
    %c0_6 = arith.constant 0 : index
    %c0_7 = arith.constant 0 : index
    %c0_8 = arith.constant 0 : index
    %5 = vector.load %arg6[%c0_6, %c0_7, %c0_8] : memref<10x10x32xf32, #tpu.memory_space<vmem>>, vector<10x1x32xf32>
    tpu.vector_store %arg6[%c0_6, %c0_7, %c0_8], %4 {strides = array<i32>} : memref<10x10x32xf32, #tpu.memory_space<vmem>>, vector<10x1x32xf32>,
    %cst_9 = arith.constant 0.000000e+00 : f32
    %6 = vector.broadcast %cst_9 : f32 to vector<10x1x32xf32>
    %c0_10 = arith.constant 0 : index
    %c9_11 = arith.constant 9 : index
    %c0_12 = arith.constant 0 : index
    %7 = vector.load %arg6[%c0_10, %c9_11, %c0_12] : memref<10x10x32xf32, #tpu.memory_space<vmem>>, vector<10x1x32xf32>
    tpu.vector_store %arg6[%c0_10, %c9_11, %c0_12], %6 {strides = array<i32>} : memref<10x10x32xf32, #tpu.memory_space<vmem>>, vector<10x1x32xf32>,
    %c0_13 = arith.constant 0 : index
    %c0_14 = arith.constant 0 : index
    %c0_15 = arith.constant 0 : index
    %c0_16 = arith.constant 0 : index
    %8 = vector.load %arg1[%c0_13, %c0_14, %c0_15, %c0_16] : memref<1x8x8x16xf32, #tpu.memory_space<vmem>>, vector<1x8x8x16xf32>
    %9 = vector.shape_cast %8 : vector<1x8x8x16xf32> to vector<8x8x16xf32>
    %c1 = arith.constant 1 : index
    %c1_17 = arith.constant 1 : index
    %c0_18 = arith.constant 0 : index
    %10 = vector.load %arg6[%c1, %c1_17, %c0_18] : memref<10x10x32xf32, #tpu.memory_space<vmem>>, vector<8x8x16xf32>
    tpu.vector_store %arg6[%c1, %c1_17, %c0_18], %9 {strides = array<i32>} : memref<10x10x32xf32, #tpu.memory_space<vmem>>, vector<8x8x16xf32>,
    %c0_19 = arith.constant 0 : index
    %c0_20 = arith.constant 0 : index
    %c0_21 = arith.constant 0 : index
    %c0_22 = arith.constant 0 : index
    %11 = vector.load %arg2[%c0_19, %c0_20, %c0_21, %c0_22] : memref<1x8x8x16xf32, #tpu.memory_space<vmem>>, vector<1x8x8x16xf32>
    %12 = vector.shape_cast %11 : vector<1x8x8x16xf32> to vector<8x8x16xf32>
    %c1_23 = arith.constant 1 : index
    %c1_24 = arith.constant 1 : index
    %c16 = arith.constant 16 : index
    %13 = vector.load %arg6[%c1_23, %c1_24, %c16] : memref<10x10x32xf32, #tpu.memory_space<vmem>>, vector<8x8x16xf32>
    tpu.vector_store %arg6[%c1_23, %c1_24, %c16], %12 {strides = array<i32>} : memref<10x10x32xf32, #tpu.memory_space<vmem>>, vector<8x8x16xf32>,
    %c0_25 = arith.constant 0 : index
    %c0_26 = arith.constant 0 : index
    %14 = vector.load %arg4[%c0_25, %c0_26] : memref<1x4xf32, #tpu.memory_space<vmem>>, vector<1x4xf32>
    %c0_27 = arith.constant 0 : index
    %c0_28 = arith.constant 0 : index
    %c0_29 = arith.constant 0 : index
    %15 = vector.load %arg6[%c0_27, %c0_28, %c0_29] : memref<10x10x32xf32, #tpu.memory_space<vmem>>, vector<8x8x32xf32>
    %16 = vector.shape_cast %15 : vector<8x8x32xf32> to vector<64x32xf32>
    %c0_30 = arith.constant 0 : index
    %c0_31 = arith.constant 0 : index
    %c0_32 = arith.constant 0 : index
    %c0_33 = arith.constant 0 : index
    %17 = vector.load %arg3[%c0_30, %c0_31, %c0_32, %c0_33] : memref<4x4x32x4xf32, #tpu.memory_space<vmem>>, vector<1x1x32x4xf32>
    %18 = vector.shape_cast %17 : vector<1x1x32x4xf32> to vector<32x4xf32>
    %cst_34 = arith.constant dense<0.000000e+00> : vector<64x4xf32>
    %19 = tpu.matmul %16, %18, %cst_34 {dimension_numbers = #tpu.dot_dimension_numbers<[1], [0], [0], [1], [0, 0, 1, 1], [], []>} : vector<64x32xf32>, vector<32x4xf32>, vector<64x4xf32> -> vector<64x4xf32>
    %c0_35 = arith.constant 0 : index
    %c1_36 = arith.constant 1 : index
    %c0_37 = arith.constant 0 : index
    %20 = vector.load %arg6[%c0_35, %c1_36, %c0_37] : memref<10x10x32xf32, #tpu.memory_space<vmem>>, vector<8x8x32xf32>
    %21 = vector.shape_cast %20 : vector<8x8x32xf32> to vector<64x32xf32>
    %c0_38 = arith.constant 0 : index
    %c1_39 = arith.constant 1 : index
    %c0_40 = arith.constant 0 : index
    %c0_41 = arith.constant 0 : index
    %22 = vector.load %arg3[%c0_38, %c1_39, %c0_40, %c0_41] : memref<4x4x32x4xf32, #tpu.memory_space<vmem>>, vector<1x1x32x4xf32>
    %23 = vector.shape_cast %22 : vector<1x1x32x4xf32> to vector<32x4xf32>
    %cst_42 = arith.constant dense<0.000000e+00> : vector<64x4xf32>
    %24 = tpu.matmul %21, %23, %cst_42 {dimension_numbers = #tpu.dot_dimension_numbers<[1], [0], [0], [1], [0, 0, 1, 1], [], []>} : vector<64x32xf32>, vector<32x4xf32>, vector<64x4xf32> -> vector<64x4xf32>
    %25 = arith.addf %19, %24 : vector<64x4xf32>
    %c1_43 = arith.constant 1 : index
    %c0_44 = arith.constant 0 : index
    %c0_45 = arith.constant 0 : index
    %26 = vector.load %arg6[%c1_43, %c0_44, %c0_45] : memref<10x10x32xf32, #tpu.memory_space<vmem>>, vector<8x8x32xf32>
    %27 = vector.shape_cast %26 : vector<8x8x32xf32> to vector<64x32xf32>
    %c0_46 = arith.constant 0 : index
    %c2 = arith.constant 2 : index
    %c0_47 = arith.constant 0 : index
    %c0_48 = arith.constant 0 : index
    %28 = vector.load %arg3[%c0_46, %c2, %c0_47, %c0_48] : memref<4x4x32x4xf32, #tpu.memory_space<vmem>>, vector<1x1x32x4xf32>
    %29 = vector.shape_cast %28 : vector<1x1x32x4xf32> to vector<32x4xf32>
    %cst_49 = arith.constant dense<0.000000e+00> : vector<64x4xf32>
    %30 = tpu.matmul %27, %29, %cst_49 {dimension_numbers = #tpu.dot_dimension_numbers<[1], [0], [0], [1], [0, 0, 1, 1], [], []>} : vector<64x32xf32>, vector<32x4xf32>, vector<64x4xf32> -> vector<64x4xf32>
    %31 = arith.addf %25, %30 : vector<64x4xf32>
    %c1_50 = arith.constant 1 : index
    %c1_51 = arith.constant 1 : index
    %c0_52 = arith.constant 0 : index
    %32 = vector.load %arg6[%c1_50, %c1_51, %c0_52] : memref<10x10x32xf32, #tpu.memory_space<vmem>>, vector<8x8x32xf32>
    %33 = vector.shape_cast %32 : vector<8x8x32xf32> to vector<64x32xf32>
    %c0_53 = arith.constant 0 : index
    %c3 = arith.constant 3 : index
    %c0_54 = arith.constant 0 : index
    %c0_55 = arith.constant 0 : index
    %34 = vector.load %arg3[%c0_53, %c3, %c0_54, %c0_55] : memref<4x4x32x4xf32, #tpu.memory_space<vmem>>, vector<1x1x32x4xf32>
    %35 = vector.shape_cast %34 : vector<1x1x32x4xf32> to vector<32x4xf32>
    %cst_56 = arith.constant dense<0.000000e+00> : vector<64x4xf32>
    %36 = tpu.matmul %33, %35, %cst_56 {dimension_numbers = #tpu.dot_dimension_numbers<[1], [0], [0], [1], [0, 0, 1, 1], [], []>} : vector<64x32xf32>, vector<32x4xf32>, vector<64x4xf32> -> vector<64x4xf32>
    %37 = arith.addf %31, %36 : vector<64x4xf32>
    %38 = vector.broadcast %14 : vector<1x4xf32> to vector<64x4xf32>
    %39 = arith.addf %37, %38 : vector<64x4xf32>
    %cst_57 = arith.constant 0.000000e+00 : f32
    %40 = vector.broadcast %cst_57 : f32 to vector<64x4xf32>
    %41 = arith.maximumf %39, %40 : vector<64x4xf32>
    %42 = arith.negf %41 : vector<64x4xf32>
    %43 = math.exp %42 : vector<64x4xf32>
    %cst_58 = arith.constant 1.000000e+00 : f32
    %44 = vector.broadcast %cst_58 : f32 to vector<64x4xf32>
    %45 = arith.addf %44, %43 : vector<64x4xf32>
    %46 = arith.divf %44, %45 : vector<64x4xf32>
    %c0_59 = arith.constant 0 : index
    %c1_60 = arith.constant 1 : index
    %c0_61 = arith.constant 0 : index
    %47 = vector.load %arg6[%c0_59, %c1_60, %c0_61] : memref<10x10x32xf32, #tpu.memory_space<vmem>>, vector<8x8x32xf32>
    %48 = vector.shape_cast %47 : vector<8x8x32xf32> to vector<64x32xf32>
    %c1_62 = arith.constant 1 : index
    %c0_63 = arith.constant 0 : index
    %c0_64 = arith.constant 0 : index
    %c0_65 = arith.constant 0 : index
    %49 = vector.load %arg3[%c1_62, %c0_63, %c0_64, %c0_65] : memref<4x4x32x4xf32, #tpu.memory_space<vmem>>, vector<1x1x32x4xf32>
    %50 = vector.shape_cast %49 : vector<1x1x32x4xf32> to vector<32x4xf32>
    %cst_66 = arith.constant dense<0.000000e+00> : vector<64x4xf32>
    %51 = tpu.matmul %48, %50, %cst_66 {dimension_numbers = #tpu.dot_dimension_numbers<[1], [0], [0], [1], [0, 0, 1, 1], [], []>} : vector<64x32xf32>, vector<32x4xf32>, vector<64x4xf32> -> vector<64x4xf32>
    %c0_67 = arith.constant 0 : index
    %c2_68 = arith.constant 2 : index
    %c0_69 = arith.constant 0 : index
    %52 = vector.load %arg6[%c0_67, %c2_68, %c0_69] : memref<10x10x32xf32, #tpu.memory_space<vmem>>, vector<8x8x32xf32>
    %53 = vector.shape_cast %52 : vector<8x8x32xf32> to vector<64x32xf32>
    %c1_70 = arith.constant 1 : index
    %c1_71 = arith.constant 1 : index
    %c0_72 = arith.constant 0 : index
    %c0_73 = arith.constant 0 : index
    %54 = vector.load %arg3[%c1_70, %c1_71, %c0_72, %c0_73] : memref<4x4x32x4xf32, #tpu.memory_space<vmem>>, vector<1x1x32x4xf32>
    %55 = vector.shape_cast %54 : vector<1x1x32x4xf32> to vector<32x4xf32>
    %cst_74 = arith.constant dense<0.000000e+00> : vector<64x4xf32>
    %56 = tpu.matmul %53, %55, %cst_74 {dimension_numbers = #tpu.dot_dimension_numbers<[1], [0], [0], [1], [0, 0, 1, 1], [], []>} : vector<64x32xf32>, vector<32x4xf32>, vector<64x4xf32> -> vector<64x4xf32>
    %57 = arith.addf %51, %56 : vector<64x4xf32>
    %c1_75 = arith.constant 1 : index
    %c1_76 = arith.constant 1 : index
    %c0_77 = arith.constant 0 : index
    %58 = vector.load %arg6[%c1_75, %c1_76, %c0_77] : memref<10x10x32xf32, #tpu.memory_space<vmem>>, vector<8x8x32xf32>
    %59 = vector.shape_cast %58 : vector<8x8x32xf32> to vector<64x32xf32>
    %c1_78 = arith.constant 1 : index
    %c2_79 = arith.constant 2 : index
    %c0_80 = arith.constant 0 : index
    %c0_81 = arith.constant 0 : index
    %60 = vector.load %arg3[%c1_78, %c2_79, %c0_80, %c0_81] : memref<4x4x32x4xf32, #tpu.memory_space<vmem>>, vector<1x1x32x4xf32>
    %61 = vector.shape_cast %60 : vector<1x1x32x4xf32> to vector<32x4xf32>
    %cst_82 = arith.constant dense<0.000000e+00> : vector<64x4xf32>
    %62 = tpu.matmul %59, %61, %cst_82 {dimension_numbers = #tpu.dot_dimension_numbers<[1], [0], [0], [1], [0, 0, 1, 1], [], []>} : vector<64x32xf32>, vector<32x4xf32>, vector<64x4xf32> -> vector<64x4xf32>
    %63 = arith.addf %57, %62 : vector<64x4xf32>
    %c1_83 = arith.constant 1 : index
    %c2_84 = arith.constant 2 : index
    %c0_85 = arith.constant 0 : index
    %64 = vector.load %arg6[%c1_83, %c2_84, %c0_85] : memref<10x10x32xf32, #tpu.memory_space<vmem>>, vector<8x8x32xf32>
    %65 = vector.shape_cast %64 : vector<8x8x32xf32> to vector<64x32xf32>
    %c1_86 = arith.constant 1 : index
    %c3_87 = arith.constant 3 : index
    %c0_88 = arith.constant 0 : index
    %c0_89 = arith.constant 0 : index
    %66 = vector.load %arg3[%c1_86, %c3_87, %c0_88, %c0_89] : memref<4x4x32x4xf32, #tpu.memory_space<vmem>>, vector<1x1x32x4xf32>
    %67 = vector.shape_cast %66 : vector<1x1x32x4xf32> to vector<32x4xf32>
    %cst_90 = arith.constant dense<0.000000e+00> : vector<64x4xf32>
    %68 = tpu.matmul %65, %67, %cst_90 {dimension_numbers = #tpu.dot_dimension_numbers<[1], [0], [0], [1], [0, 0, 1, 1], [], []>} : vector<64x32xf32>, vector<32x4xf32>, vector<64x4xf32> -> vector<64x4xf32>
    %69 = arith.addf %63, %68 : vector<64x4xf32>
    %70 = vector.broadcast %14 : vector<1x4xf32> to vector<64x4xf32>
    %71 = arith.addf %69, %70 : vector<64x4xf32>
    %cst_91 = arith.constant 0.000000e+00 : f32
    %72 = vector.broadcast %cst_91 : f32 to vector<64x4xf32>
    %73 = arith.maximumf %71, %72 : vector<64x4xf32>
    %74 = arith.negf %73 : vector<64x4xf32>
    %75 = math.exp %74 : vector<64x4xf32>
    %cst_92 = arith.constant 1.000000e+00 : f32
    %76 = vector.broadcast %cst_92 : f32 to vector<64x4xf32>
    %77 = arith.addf %76, %75 : vector<64x4xf32>
    %78 = arith.divf %76, %77 : vector<64x4xf32>
    %c1_93 = arith.constant 1 : index
    %c0_94 = arith.constant 0 : index
    %c0_95 = arith.constant 0 : index
    %79 = vector.load %arg6[%c1_93, %c0_94, %c0_95] : memref<10x10x32xf32, #tpu.memory_space<vmem>>, vector<8x8x32xf32>
    %80 = vector.shape_cast %79 : vector<8x8x32xf32> to vector<64x32xf32>
    %c2_96 = arith.constant 2 : index
    %c0_97 = arith.constant 0 : index
    %c0_98 = arith.constant 0 : index
    %c0_99 = arith.constant 0 : index
    %81 = vector.load %arg3[%c2_96, %c0_97, %c0_98, %c0_99] : memref<4x4x32x4xf32, #tpu.memory_space<vmem>>, vector<1x1x32x4xf32>
    %82 = vector.shape_cast %81 : vector<1x1x32x4xf32> to vector<32x4xf32>
    %cst_100 = arith.constant dense<0.000000e+00> : vector<64x4xf32>
    %83 = tpu.matmul %80, %82, %cst_100 {dimension_numbers = #tpu.dot_dimension_numbers<[1], [0], [0], [1], [0, 0, 1, 1], [], []>} : vector<64x32xf32>, vector<32x4xf32>, vector<64x4xf32> -> vector<64x4xf32>
    %c1_101 = arith.constant 1 : index
    %c1_102 = arith.constant 1 : index
    %c0_103 = arith.constant 0 : index
    %84 = vector.load %arg6[%c1_101, %c1_102, %c0_103] : memref<10x10x32xf32, #tpu.memory_space<vmem>>, vector<8x8x32xf32>
    %85 = vector.shape_cast %84 : vector<8x8x32xf32> to vector<64x32xf32>
    %c2_104 = arith.constant 2 : index
    %c1_105 = arith.constant 1 : index
    %c0_106 = arith.constant 0 : index
    %c0_107 = arith.constant 0 : index
    %86 = vector.load %arg3[%c2_104, %c1_105, %c0_106, %c0_107] : memref<4x4x32x4xf32, #tpu.memory_space<vmem>>, vector<1x1x32x4xf32>
    %87 = vector.shape_cast %86 : vector<1x1x32x4xf32> to vector<32x4xf32>
    %cst_108 = arith.constant dense<0.000000e+00> : vector<64x4xf32>
    %88 = tpu.matmul %85, %87, %cst_108 {dimension_numbers = #tpu.dot_dimension_numbers<[1], [0], [0], [1], [0, 0, 1, 1], [], []>} : vector<64x32xf32>, vector<32x4xf32>, vector<64x4xf32> -> vector<64x4xf32>
    %89 = arith.addf %83, %88 : vector<64x4xf32>
    %c2_109 = arith.constant 2 : index
    %c0_110 = arith.constant 0 : index
    %c0_111 = arith.constant 0 : index
    %90 = vector.load %arg6[%c2_109, %c0_110, %c0_111] : memref<10x10x32xf32, #tpu.memory_space<vmem>>, vector<8x8x32xf32>
    %91 = vector.shape_cast %90 : vector<8x8x32xf32> to vector<64x32xf32>
    %c2_112 = arith.constant 2 : index
    %c2_113 = arith.constant 2 : index
    %c0_114 = arith.constant 0 : index
    %c0_115 = arith.constant 0 : index
    %92 = vector.load %arg3[%c2_112, %c2_113, %c0_114, %c0_115] : memref<4x4x32x4xf32, #tpu.memory_space<vmem>>, vector<1x1x32x4xf32>
    %93 = vector.shape_cast %92 : vector<1x1x32x4xf32> to vector<32x4xf32>
    %cst_116 = arith.constant dense<0.000000e+00> : vector<64x4xf32>
    %94 = tpu.matmul %91, %93, %cst_116 {dimension_numbers = #tpu.dot_dimension_numbers<[1], [0], [0], [1], [0, 0, 1, 1], [], []>} : vector<64x32xf32>, vector<32x4xf32>, vector<64x4xf32> -> vector<64x4xf32>
    %95 = arith.addf %89, %94 : vector<64x4xf32>
    %c2_117 = arith.constant 2 : index
    %c1_118 = arith.constant 1 : index
    %c0_119 = arith.constant 0 : index
    %96 = vector.load %arg6[%c2_117, %c1_118, %c0_119] : memref<10x10x32xf32, #tpu.memory_space<vmem>>, vector<8x8x32xf32>
    %97 = vector.shape_cast %96 : vector<8x8x32xf32> to vector<64x32xf32>
    %c2_120 = arith.constant 2 : index
    %c3_121 = arith.constant 3 : index
    %c0_122 = arith.constant 0 : index
    %c0_123 = arith.constant 0 : index
    %98 = vector.load %arg3[%c2_120, %c3_121, %c0_122, %c0_123] : memref<4x4x32x4xf32, #tpu.memory_space<vmem>>, vector<1x1x32x4xf32>
    %99 = vector.shape_cast %98 : vector<1x1x32x4xf32> to vector<32x4xf32>
    %cst_124 = arith.constant dense<0.000000e+00> : vector<64x4xf32>
    %100 = tpu.matmul %97, %99, %cst_124 {dimension_numbers = #tpu.dot_dimension_numbers<[1], [0], [0], [1], [0, 0, 1, 1], [], []>} : vector<64x32xf32>, vector<32x4xf32>, vector<64x4xf32> -> vector<64x4xf32>
    %101 = arith.addf %95, %100 : vector<64x4xf32>
    %102 = vector.broadcast %14 : vector<1x4xf32> to vector<64x4xf32>
    %103 = arith.addf %101, %102 : vector<64x4xf32>
    %cst_125 = arith.constant 0.000000e+00 : f32
    %104 = vector.broadcast %cst_125 : f32 to vector<64x4xf32>
    %105 = arith.maximumf %103, %104 : vector<64x4xf32>
    %106 = arith.negf %105 : vector<64x4xf32>
    %107 = math.exp %106 : vector<64x4xf32>
    %cst_126 = arith.constant 1.000000e+00 : f32
    %108 = vector.broadcast %cst_126 : f32 to vector<64x4xf32>
    %109 = arith.addf %108, %107 : vector<64x4xf32>
    %110 = arith.divf %108, %109 : vector<64x4xf32>
    %c1_127 = arith.constant 1 : index
    %c1_128 = arith.constant 1 : index
    %c0_129 = arith.constant 0 : index
    %111 = vector.load %arg6[%c1_127, %c1_128, %c0_129] : memref<10x10x32xf32, #tpu.memory_space<vmem>>, vector<8x8x32xf32>
    %112 = vector.shape_cast %111 : vector<8x8x32xf32> to vector<64x32xf32>
    %c3_130 = arith.constant 3 : index
    %c0_131 = arith.constant 0 : index
    %c0_132 = arith.constant 0 : index
    %c0_133 = arith.constant 0 : index
    %113 = vector.load %arg3[%c3_130, %c0_131, %c0_132, %c0_133] : memref<4x4x32x4xf32, #tpu.memory_space<vmem>>, vector<1x1x32x4xf32>
    %114 = vector.shape_cast %113 : vector<1x1x32x4xf32> to vector<32x4xf32>
    %cst_134 = arith.constant dense<0.000000e+00> : vector<64x4xf32>
    %115 = tpu.matmul %112, %114, %cst_134 {dimension_numbers = #tpu.dot_dimension_numbers<[1], [0], [0], [1], [0, 0, 1, 1], [], []>} : vector<64x32xf32>, vector<32x4xf32>, vector<64x4xf32> -> vector<64x4xf32>
    %c1_135 = arith.constant 1 : index
    %c2_136 = arith.constant 2 : index
    %c0_137 = arith.constant 0 : index
    %116 = vector.load %arg6[%c1_135, %c2_136, %c0_137] : memref<10x10x32xf32, #tpu.memory_space<vmem>>, vector<8x8x32xf32>
    %117 = vector.shape_cast %116 : vector<8x8x32xf32> to vector<64x32xf32>
    %c3_138 = arith.constant 3 : index
    %c1_139 = arith.constant 1 : index
    %c0_140 = arith.constant 0 : index
    %c0_141 = arith.constant 0 : index
    %118 = vector.load %arg3[%c3_138, %c1_139, %c0_140, %c0_141] : memref<4x4x32x4xf32, #tpu.memory_space<vmem>>, vector<1x1x32x4xf32>
    %119 = vector.shape_cast %118 : vector<1x1x32x4xf32> to vector<32x4xf32>
    %cst_142 = arith.constant dense<0.000000e+00> : vector<64x4xf32>
    %120 = tpu.matmul %117, %119, %cst_142 {dimension_numbers = #tpu.dot_dimension_numbers<[1], [0], [0], [1], [0, 0, 1, 1], [], []>} : vector<64x32xf32>, vector<32x4xf32>, vector<64x4xf32> -> vector<64x4xf32>
    %121 = arith.addf %115, %120 : vector<64x4xf32>
    %c2_143 = arith.constant 2 : index
    %c1_144 = arith.constant 1 : index
    %c0_145 = arith.constant 0 : index
    %122 = vector.load %arg6[%c2_143, %c1_144, %c0_145] : memref<10x10x32xf32, #tpu.memory_space<vmem>>, vector<8x8x32xf32>
    %123 = vector.shape_cast %122 : vector<8x8x32xf32> to vector<64x32xf32>
    %c3_146 = arith.constant 3 : index
    %c2_147 = arith.constant 2 : index
    %c0_148 = arith.constant 0 : index
    %c0_149 = arith.constant 0 : index
    %124 = vector.load %arg3[%c3_146, %c2_147, %c0_148, %c0_149] : memref<4x4x32x4xf32, #tpu.memory_space<vmem>>, vector<1x1x32x4xf32>
    %125 = vector.shape_cast %124 : vector<1x1x32x4xf32> to vector<32x4xf32>
    %cst_150 = arith.constant dense<0.000000e+00> : vector<64x4xf32>
    %126 = tpu.matmul %123, %125, %cst_150 {dimension_numbers = #tpu.dot_dimension_numbers<[1], [0], [0], [1], [0, 0, 1, 1], [], []>} : vector<64x32xf32>, vector<32x4xf32>, vector<64x4xf32> -> vector<64x4xf32>
    %127 = arith.addf %121, %126 : vector<64x4xf32>
    %c2_151 = arith.constant 2 : index
    %c2_152 = arith.constant 2 : index
    %c0_153 = arith.constant 0 : index
    %128 = vector.load %arg6[%c2_151, %c2_152, %c0_153] : memref<10x10x32xf32, #tpu.memory_space<vmem>>, vector<8x8x32xf32>
    %129 = vector.shape_cast %128 : vector<8x8x32xf32> to vector<64x32xf32>
    %c3_154 = arith.constant 3 : index
    %c3_155 = arith.constant 3 : index
    %c0_156 = arith.constant 0 : index
    %c0_157 = arith.constant 0 : index
    %130 = vector.load %arg3[%c3_154, %c3_155, %c0_156, %c0_157] : memref<4x4x32x4xf32, #tpu.memory_space<vmem>>, vector<1x1x32x4xf32>
    %131 = vector.shape_cast %130 : vector<1x1x32x4xf32> to vector<32x4xf32>
    %cst_158 = arith.constant dense<0.000000e+00> : vector<64x4xf32>
    %132 = tpu.matmul %129, %131, %cst_158 {dimension_numbers = #tpu.dot_dimension_numbers<[1], [0], [0], [1], [0, 0, 1, 1], [], []>} : vector<64x32xf32>, vector<32x4xf32>, vector<64x4xf32> -> vector<64x4xf32>
    %133 = arith.addf %127, %132 : vector<64x4xf32>
    %134 = vector.broadcast %14 : vector<1x4xf32> to vector<64x4xf32>
    %135 = arith.addf %133, %134 : vector<64x4xf32>
    %cst_159 = arith.constant 0.000000e+00 : f32
    %136 = vector.broadcast %cst_159 : f32 to vector<64x4xf32>
    %137 = arith.maximumf %135, %136 : vector<64x4xf32>
    %138 = arith.negf %137 : vector<64x4xf32>
    %139 = math.exp %138 : vector<64x4xf32>
    %cst_160 = arith.constant 1.000000e+00 : f32
    %140 = vector.broadcast %cst_160 : f32 to vector<64x4xf32>
    %141 = arith.addf %140, %139 : vector<64x4xf32>
    %142 = arith.divf %140, %141 : vector<64x4xf32>
    %143 = tpu.concatenate %46, %78, %110, %142 in 1 : vector<64x4xf32>, vector<64x4xf32>, vector<64x4xf32>, vector<64x4xf32> -> vector<64x16xf32>
    %c0_161 = arith.constant 0 : index
    %c0_162 = arith.constant 0 : index
    %c0_163 = arith.constant 0 : index
    %144 = vector.load %arg5[%c0_161, %c0_162, %c0_163] : memref<1x64x16xf32, #tpu.memory_space<vmem>>, vector<1x64x16xf32>
    %145 = vector.shape_cast %144 : vector<1x64x16xf32> to vector<64x16xf32>
    %146 = vector.shape_cast %143 : vector<64x16xf32> to vector<1x64x16xf32>
    tpu.vector_store %arg5[%c0_161, %c0_162, %c0_163], %146 {strides = array<i32>} : memref<1x64x16xf32, #tpu.memory_space<vmem>>, vector<1x64x16xf32>,
    return
  }
  func.func @transform_0(%arg0: i32) -> (i32, i32, i32, i32) {
    %c0_i32 = arith.constant 0 : i32
    %c0_i32_0 = arith.constant 0 : i32
    %c0_i32_1 = arith.constant 0 : i32
    %c0_i32_2 = arith.constant 0 : i32
    return %arg0, %c0_i32, %c0_i32_0, %c0_i32_1 : i32, i32, i32, i32
  }
  func.func @transform_1(%arg0: i32) -> (i32, i32, i32, i32) {
    %c0_i32 = arith.constant 0 : i32
    %c0_i32_0 = arith.constant 0 : i32
    %c0_i32_1 = arith.constant 0 : i32
    %c0_i32_2 = arith.constant 0 : i32
    return %arg0, %c0_i32, %c0_i32_0, %c0_i32_1 : i32, i32, i32, i32
  }
  func.func @transform_2(%arg0: i32) -> (i32, i32, i32, i32) {
    %c0_i32 = arith.constant 0 : i32
    %c0_i32_0 = arith.constant 0 : i32
    %c0_i32_1 = arith.constant 0 : i32
    %c0_i32_2 = arith.constant 0 : i32
    %c0_i32_3 = arith.constant 0 : i32
    return %c0_i32, %c0_i32_0, %c0_i32_1, %c0_i32_2 : i32, i32, i32, i32
  }
  func.func @transform_3(%arg0: i32) -> (i32, i32) {
    %c0_i32 = arith.constant 0 : i32
    %c0_i32_0 = arith.constant 0 : i32
    %c0_i32_1 = arith.constant 0 : i32
    return %c0_i32, %c0_i32_0 : i32, i32
  }
  func.func @transform_4(%arg0: i32) -> (i32, i32, i32) {
    %c0_i32 = arith.constant 0 : i32
    %c0_i32_0 = arith.constant 0 : i32
    %c0_i32_1 = arith.constant 0 : i32
    return %arg0, %c0_i32, %c0_i32_0 : i32, i32, i32
  }
}

</mosaic_0001>

<llo_original>
// kernel: tile.9
$region0: #{tile.9}
  %s0 = inlined_call_operand.vmem [shape: f32[4,8], index: 0, kind: input, shape index: {}]
  %s1 = inlined_call_operand.vmem [shape: f32[1,32], index: 1, kind: output, shape index: {}]
  $region1: #{tile.9} parent=0
    #allocation0 [shape = 'u8[4096]{0}', space=vmem, size = 0x1000, scoped, tag = 'scoped mem for output reshape']
    #allocation1 [shape = 'u8[4096]{0}', space=vmem, size = 0x1000, scoped, tag = 'scoped mem for input reshape']
    %s3 = sshll.u32 1, 4
    %s4 = ssub.s32 %s3, 1
    %v5 = vld [vmem:[%s0] sm:%s4]
    %6 = vst [vmem:[#allocation1] sm:%s4] %v5
    %v7 = vld [vmem:[#allocation1] sm:$0x1]
    %vm8 = vcmask 64512
    %9 = vst.msk [vmem:[#allocation0] sm:$0x1] %vm8, %v7
    %s10 = scalar_lea.vmem [#allocation1], 3
    %v11 = vld [vmem:[%s10] sm:$0x1]
    %12 = vrot.lane.b32.xlu0 %v11, 24
    %v13 = vpop.permute.xlu0 %12
    %vm14 = vcmask 261312
    %15 = vst.msk [vmem:[#allocation0] sm:$0x1] %vm14, %v13
    %s16 = scalar_lea.vmem [#allocation1], 2
    %v17 = vld [vmem:[%s16] sm:$0x1]
    %18 = vrot.lane.b32.xlu0 %v17, 16
    %v19 = vpop.permute.xlu0 %18
    %vm20 = vcmask 195712
    %21 = vst.msk [vmem:[#allocation0] sm:$0x1] %vm20, %v19
    %s22 = scalar_lea.vmem [#allocation1], 1
    %v23 = vld [vmem:[%s22] sm:$0x1]
    %24 = vrot.lane.b32.xlu0 %v23, 8
    %v25 = vpop.permute.xlu0 %24
    %vm26 = vcmask 130112
    %27 = vst.msk [vmem:[#allocation0] sm:$0x1] %vm26, %v25
    %s29 = sshll.u32 1, 1
    %s30 = ssub.s32 %s29, 1
    %v32 = vld [vmem:[#allocation0] sm:%s30]
    %s33 = sshll.u32 1, 1
    %s34 = ssub.s32 %s33, 1
    %35 = vst [vmem:[%s1] sm:%s34] %v32

// kernel: tile.8
$region0: #{tile.8}
  #allocation0 [shape = 's32[1]{0}', space=sflag, size = 0x4, scoped, tag = 'scoped memory for tile.8']
  %s0 = inlined_call_operand.vmem [shape: f32[8], index: 0, kind: input, shape index: {}]
  %s1 = inlined_call_operand.vmem [shape: f32[4,8], index: 1, kind: output, shape index: {}]
  // Predicated region
  $region2: #{tile.8} parent=0 // pred_check
    _
  $region3: #{tile.8} parent=0 // pred_check_branch
    %3 = sbr.rel (0) target = $region5
  $region4: #{tile.8} parent=0 // pred_region
    _
  $region5: #{tile.8} parent=0 // pred_fallthru
    _
  %v4 = vld [vmem:[%s0] ss:$0 sm:$0xff]
  %5 = vst [vmem:[%s1] sm:$0xf] %v4

// kernel: dec_attention3_forward.2
$region0: #{dec_attention3_forward.2}
  #allocation0 [shape = 'u32[]', space=smem, size = 0x4, offset = 0x4, fixed_abs, tag = 'smem constant byte address 0x4 - core index']
  #allocation1 [shape = 'u32[144,128]{1,0:T(1,128)}', space=vmem, size = 0x12000, scoped, tag = 'internal scratch']
  #allocation2 [shape = 'f32[10,10,32]{2,1,0:T(8,128)}', space=vmem, size = 0x14000, scoped, tag = 'scratch operand']
  %s0 = inlined_call_operand.vmem [shape: f32[2,8,8,8], index: 0, kind: input, shape index: {}]
  %s1 = inlined_call_operand.vmem [shape: f32[8,32], index: 1, kind: input, shape index: {}]
  %s2 = inlined_call_operand.vmem [shape: f32[1,32], index: 2, kind: input, shape index: {}]
  %s3 = inlined_call_operand.vmem [shape: f32[4,4,32,4], index: 3, kind: input, shape index: {}]
  %s4 = inlined_call_operand.vmem [shape: f32[1,4], index: 4, kind: input, shape index: {}]
  %s5 = inlined_call_operand.vmem [shape: f32[2,8,8,16], index: 5, kind: output, shape index: {}]
  %s6 = sld [smem:[#allocation0]]
  $region53: #{dec_attention3_forward.2} parent=0
    _
  %s8 = ssub.s32 1, %s6
  %s9 = scalar_select 0, %s8, %s6
  loop: start=0, step=1, limit=4
  $region2: #{dec_attention3_forward.2} parent=0 // loop_pre_header
    _
  $region3: #{dec_attention3_forward.2} parent=0 // loop_header
    %s11 = sphi 0, %s15
    %p12 = scmp.ge.s32.totalorder %s11, 4
    %s21 = sphi 0, %s23
    %s24 = sphi 0, %s21
    %s25 = sphi 0, %s24
    %s41 = sphi 0, %s25
    %s45 = sphi 0, %s45
    %s47 = sphi 0, %s45
    %s48 = sphi 0, %s47
    %s62 = sphi 0, %s48
    %s66 = sphi 0, %s66
    %s68 = sphi 0, %s66
    %s69 = sphi 0, %s68
    %s83 = sphi 0, %s69
    %s87 = sphi 0, %s87
    %s89 = sphi 0, %s87
    %s90 = sphi 0, %s89
    %s104 = sphi 0, %s90
    %s108 = sphi 0, %s108
    %s110 = sphi 0, %s108
    %s111 = sphi 0, %s110
    %s125 = sphi 0, %s111
    %s131 = sphi 0, %s133
    %s134 = sphi 0, %s131
    %s135 = sphi 0, %s134
    %s151 = sphi 0, %s135
  $region4: #{dec_attention3_forward.2} parent=0 // loop_header_branch
    %14 = sbr.rel (%p12) target = $region8
  $region5: #{dec_attention3_forward.2} parent=0 // loop_body
    %s16 = ssub.s32 %s11, 1
    %s17 = ssub.s32 %s11, 2
    %s18 = sadd.s32 %s11, 1
    %s19 = ssub.s32 %s11, %s18
    %p20 = scmp.eq.s32.totalorder %s19, 0
    %s22 = sadd.s32 %s21, 1
    %s23 = scalar_select %p20, %s21, %s22
    %p26 = pneg %p20
    %p27 = scmp.eq.s32.totalorder %s11, 1
    %p28 = por %p26, %p27
    %p29 = scmp.ne.s32.totalorder %s21, %s24
    %p30 = scmp.eq.s32.totalorder %s11, 0
    %p31 = por %p29, %p30
    %p32 = scmp.ne.s32.totalorder %s21, %s24
    %p33 = scmp.eq.s32.totalorder %s16, 1
    %p34 = por %p32, %p33
    %p35 = scmp.ne.s32.totalorder %s24, %s25
    %p36 = scmp.eq.s32.totalorder %s16, 0
    %p37 = por %p35, %p36
    %p38 = scmp.ne.s32.totalorder %s24, %s25
    %p39 = scmp.eq.s32.totalorder %s17, 1
    %p40 = por %p38, %p39
    %p42 = scmp.ne.s32.totalorder %s25, %s41
    %p43 = scmp.eq.s32.totalorder %s17, 0
    %p44 = por %p42, %p43
    %s46 = sadd.s32 %s45, 1
    %p49 = scmp.eq.s32.totalorder %s11, 1
    %p50 = scmp.ne.s32.totalorder %s45, %s47
    %p51 = scmp.eq.s32.totalorder %s11, 0
    %p52 = por %p50, %p51
    %p53 = scmp.ne.s32.totalorder %s45, %s47
    %p54 = scmp.eq.s32.totalorder %s16, 1
    %p55 = por %p53, %p54
    %p56 = scmp.ne.s32.totalorder %s47, %s48
    %p57 = scmp.eq.s32.totalorder %s16, 0
    %p58 = por %p56, %p57
    %p59 = scmp.ne.s32.totalorder %s47, %s48
    %p60 = scmp.eq.s32.totalorder %s17, 1
    %p61 = por %p59, %p60
    %p63 = scmp.ne.s32.totalorder %s48, %s62
    %p64 = scmp.eq.s32.totalorder %s17, 0
    %p65 = por %p63, %p64
    %s67 = sadd.s32 %s66, 1
    %p70 = scmp.eq.s32.totalorder %s11, 1
    %p71 = scmp.ne.s32.totalorder %s66, %s68
    %p72 = scmp.eq.s32.totalorder %s11, 0
    %p73 = por %p71, %p72
    %p74 = scmp.ne.s32.totalorder %s66, %s68
    %p75 = scmp.eq.s32.totalorder %s16, 1
    %p76 = por %p74, %p75
    %p77 = scmp.ne.s32.totalorder %s68, %s69
    %p78 = scmp.eq.s32.totalorder %s16, 0
    %p79 = por %p77, %p78
    %p80 = scmp.ne.s32.totalorder %s68, %s69
    %p81 = scmp.eq.s32.totalorder %s17, 1
    %p82 = por %p80, %p81
    %p84 = scmp.ne.s32.totalorder %s69, %s83
    %p85 = scmp.eq.s32.totalorder %s17, 0
    %p86 = por %p84, %p85
    %s88 = sadd.s32 %s87, 1
    %p91 = scmp.eq.s32.totalorder %s11, 1
    %p92 = scmp.ne.s32.totalorder %s87, %s89
    %p93 = scmp.eq.s32.totalorder %s11, 0
    %p94 = por %p92, %p93
    %p95 = scmp.ne.s32.totalorder %s87, %s89
    %p96 = scmp.eq.s32.totalorder %s16, 1
    %p97 = por %p95, %p96
    %p98 = scmp.ne.s32.totalorder %s89, %s90
    %p99 = scmp.eq.s32.totalorder %s16, 0
    %p100 = por %p98, %p99
    %p101 = scmp.ne.s32.totalorder %s89, %s90
    %p102 = scmp.eq.s32.totalorder %s17, 1
    %p103 = por %p101, %p102
    %p105 = scmp.ne.s32.totalorder %s90, %s104
    %p106 = scmp.eq.s32.totalorder %s17, 0
    %p107 = por %p105, %p106
    %s109 = sadd.s32 %s108, 1
    %p112 = scmp.eq.s32.totalorder %s11, 1
    %p113 = scmp.ne.s32.totalorder %s108, %s110
    %p114 = scmp.eq.s32.totalorder %s11, 0
    %p115 = por %p113, %p114
    %p116 = scmp.ne.s32.totalorder %s108, %s110
    %p117 = scmp.eq.s32.totalorder %s16, 1
    %p118 = por %p116, %p117
    %p119 = scmp.ne.s32.totalorder %s110, %s111
    %p120 = scmp.eq.s32.totalorder %s16, 0
    %p121 = por %p119, %p120
    %p122 = scmp.ne.s32.totalorder %s110, %s111
    %p123 = scmp.eq.s32.totalorder %s17, 1
    %p124 = por %p122, %p123
    %p126 = scmp.ne.s32.totalorder %s111, %s125
    %p127 = scmp.eq.s32.totalorder %s17, 0
    %p128 = por %p126, %p127
    %s129 = ssub.s32 %s11, %s18
    %p130 = scmp.eq.s32.totalorder %s129, 0
    %s132 = sadd.s32 %s131, 1
    %s133 = scalar_select %p130, %s131, %s132
    %p136 = pneg %p130
    %p137 = scmp.eq.s32.totalorder %s11, 1
    %p138 = por %p136, %p137
    %p139 = scmp.ne.s32.totalorder %s131, %s134
    %p140 = scmp.eq.s32.totalorder %s11, 0
    %p141 = por %p139, %p140
    %p142 = scmp.ne.s32.totalorder %s131, %s134
    %p143 = scmp.eq.s32.totalorder %s16, 1
    %p144 = por %p142, %p143
    %p145 = scmp.ne.s32.totalorder %s134, %s135
    %p146 = scmp.eq.s32.totalorder %s16, 0
    %p147 = por %p145, %p146
    %p148 = scmp.ne.s32.totalorder %s134, %s135
    %p149 = scmp.eq.s32.totalorder %s17, 1
    %p150 = por %p148, %p149
    %p152 = scmp.ne.s32.totalorder %s135, %s151
    %p153 = scmp.eq.s32.totalorder %s17, 0
    %p154 = por %p152, %p153
    %p155 = scmp.le.s32.totalorder 1, %s11
    %p156 = scmp.lt.s32.totalorder %s11, 3
    %p157 = pnand %p155, %p156
    %p158 = pneg %p157
    // Predicated region
    $region9: #{dec_attention3_forward.2} parent=5 // pred_check
      _
    $region10: #{dec_attention3_forward.2} parent=5 // pred_check_branch
      %160 = sbr.rel (%p157) target = $region12
    $region11: #{dec_attention3_forward.2} parent=5 // pred_region
      %s161 = ssub.s32 %s11, 1
      // Predicated region
      $region13: #{dec_attention3_forward.2} parent=11 // pred_check
        %p162 = pneg %p58
      $region14: #{dec_attention3_forward.2} parent=11 // pred_check_branch
        %164 = sbr.rel (%p162) target = $region16
      $region15: #{dec_attention3_forward.2} parent=11 // pred_region
        _
      $region16: #{dec_attention3_forward.2} parent=11 // pred_fallthru
        _
      // Predicated region
      $region17: #{dec_attention3_forward.2} parent=11 // pred_check
        %p165 = pneg %p79
      $region18: #{dec_attention3_forward.2} parent=11 // pred_check_branch
        %167 = sbr.rel (%p165) target = $region20
      $region19: #{dec_attention3_forward.2} parent=11 // pred_region
        _
      $region20: #{dec_attention3_forward.2} parent=11 // pred_fallthru
        _
      // Predicated region
      $region21: #{dec_attention3_forward.2} parent=11 // pred_check
        %p168 = pneg %p100
      $region22: #{dec_attention3_forward.2} parent=11 // pred_check_branch
        %170 = sbr.rel (%p168) target = $region24
      $region23: #{dec_attention3_forward.2} parent=11 // pred_region
        _
      $region24: #{dec_attention3_forward.2} parent=11 // pred_fallthru
        _
      // Predicated region
      $region25: #{dec_attention3_forward.2} parent=11 // pred_check
        %p171 = pneg %p121
      $region26: #{dec_attention3_forward.2} parent=11 // pred_check_branch
        %173 = sbr.rel (%p171) target = $region28
      $region27: #{dec_attention3_forward.2} parent=11 // pred_region
        _
      $region28: #{dec_attention3_forward.2} parent=11 // pred_fallthru
        _
    $region12: #{dec_attention3_forward.2} parent=5 // pred_fallthru
      _
    %p174 = scmp.lt.s32.totalorder %s11, 2
    // Predicated region
    $region29: #{dec_attention3_forward.2} parent=5 // pred_check
      %p175 = pneg %p174
    $region30: #{dec_attention3_forward.2} parent=5 // pred_check_branch
      %177 = sbr.rel (%p175) target = $region32
    $region31: #{dec_attention3_forward.2} parent=5 // pred_region
      // Predicated region
      $region33: #{dec_attention3_forward.2} parent=31 // pred_check
        %p178 = pneg %p31
      $region34: #{dec_attention3_forward.2} parent=31 // pred_check_branch
        %180 = sbr.rel (%p178) target = $region36
      $region35: #{dec_attention3_forward.2} parent=31 // pred_region
        %p181 = scmp.lt.s32.totalorder %s11, 1
        %s182 = scalar_select %p181, %s11, 1
        %s183 = smul.addr %s182, 8
        %s184 = smul.addr %s183, 8
        %s185 = scalar_lea.vmem %s0, %s184
      $region36: #{dec_attention3_forward.2} parent=31 // pred_fallthru
        _
    $region32: #{dec_attention3_forward.2} parent=5 // pred_fallthru
      _
    %p186 = scmp.le.s32.totalorder 1, %s11
    %p187 = scmp.lt.s32.totalorder %s11, 3
    %p188 = pnand %p186, %p187
    %p189 = pneg %p188
    // Predicated region
    $region37: #{dec_attention3_forward.2} parent=5 // pred_check
      _
    $region38: #{dec_attention3_forward.2} parent=5 // pred_check_branch
      %191 = sbr.rel (%p188) target = $region40
    $region39: #{dec_attention3_forward.2} parent=5 // pred_region
      %s192 = ssub.s32 %s11, 1
      %p193 = scmp.lt.s32.totalorder %s16, 1
      %s194 = scalar_select %p193, %s16, 1
      %s195 = smul.addr %s194, 8
      %s196 = smul.addr %s195, 8
      %s197 = scalar_lea.vmem %s0, %s196
      %p198 = pneg %p37
      %p199 = pneg %p34
      %p200 = pneg %p58
      %p201 = pneg %p55
      %p202 = pneg %p79
      %p203 = pneg %p76
      %p204 = pneg %p100
      %p205 = pneg %p97
      %p206 = pneg %p121
      %p207 = pneg %p118
      %p208 = pneg %p147
      %p209 = pneg %p144
      %p210 = scmp.lt.s32.totalorder %s16, 1
      %s211 = scalar_select %p210, %s16, 1
      %s212 = smul.addr %s211, 8
      %s213 = smul.addr %s212, 8
      %s214 = scalar_lea.vmem %s5, %s213
      %p215 = scmp.lt.s32.totalorder %s16, 1
      %s216 = scalar_select %p215, %s16, 1
      %s217 = smul.addr %s216, 8
      %s218 = smul.addr %s217, 8
      %s219 = scalar_lea.vmem %s0, %s218
      %p220 = scmp.lt.s32.totalorder %s16, 1
      %s221 = scalar_select %p220, %s16, 1
      %s222 = smul.addr %s221, 8
      %s223 = smul.addr %s222, 8
      %s224 = scalar_lea.vmem %s5, %s223
      %v225 = vld [vmem:[%s219] sm:$0xff]
      %v226 = vld [vmem:[%s219 + $0x8] sm:$0xff]
      %v227 = vld [vmem:[%s219 + $0x10] sm:$0xff]
      %v228 = vld [vmem:[%s219 + $0x18] sm:$0xff]
      %v229 = vld [vmem:[%s219 + $0x20] sm:$0xff]
      %v230 = vld [vmem:[%s219 + $0x28] sm:$0xff]
      %v231 = vld [vmem:[%s219 + $0x30] sm:$0xff]
      %v232 = vld [vmem:[%s219 + $0x38] sm:$0xff]
      %v233 = vld [vmem:[%s1] sm:$0xff]
      %v234 = vld [vmem:[%s2] sm:$0x1]
      %v236 = vlaneseq
      %v237 = vshrl.u32 %v236, 7
      %v238 = vsub.s32 0, %v237
      %v239 = vrot.slane %v234, %v238
      %vm241 = vcmask 64512
      %v243 = vsel %vm241, %v225, 0
      %v246 = vsel %vm241, %v226, 0
      %v249 = vsel %vm241, %v227, 0
      %v252 = vsel %vm241, %v228, 0
      %v255 = vsel %vm241, %v229, 0
      %v258 = vsel %vm241, %v230, 0
      %v261 = vsel %vm241, %v231, 0
      %v264 = vsel %vm241, %v232, 0
      %266 = vmatprep.subr.mxu0 0.0
      %267 = vmatpush1.msra.mxu0 0.0
      %268 = vmatprep.subr.mxu0 0.0
      %269 = vmatpush1.msra.mxu0 0.0
      %270 = vmatprep.subr.mxu0 0.0
      %271 = vmatpush1.msra.mxu0 0.0
      %272 = vmatprep.subr.mxu0 0.0
      %273 = vmatpush1.msra.mxu0 0.0
      %274 = vmatprep.subr.mxu0 0.0
      %275 = vmatpush1.msra.mxu0 0.0
      %276 = vmatprep.subr.mxu0 0.0
      %277 = vmatpush1.msra.mxu0 0.0
      %278 = vmatprep.subr.mxu0 0.0
      %279 = vmatpush1.msra.mxu0 0.0
      %280 = vmatprep.subr.mxu0 0.0
      %281 = vmatpush1.msra.mxu0 0.0
      %282 = vmatprep.subr.mxu0 0.0
      %283 = vmatpush1.msra.mxu0 0.0
      %284 = vmatprep.subr.mxu0 0.0
      %285 = vmatpush1.msra.mxu0 0.0
      %286 = vmatprep.subr.mxu0 0.0
      %287 = vmatpush1.msra.mxu0 0.0
      %288 = vmatprep.subr.mxu0 0.0
      %289 = vmatpush1.msra.mxu0 0.0
      %290 = vmatprep.subr.mxu0 0.0
      %291 = vmatpush1.msra.mxu0 0.0
      %292 = vmatprep.subr.mxu0 0.0
      %293 = vmatpush1.msra.mxu0 0.0
      %294 = vmatprep.subr.mxu0 0.0
      %295 = vmatpush1.msra.mxu0 0.0
      %296 = vmatprep.subr.mxu0 0.0
      %297 = vmatpush1.msra.mxu0 %v233
      %298 = vmatprep.subr.mxu0 0.0
      %299 = vmatpush2.msra.mxu0 0.0
      %300 = vmatprep.subr.mxu0 0.0
      %301 = vmatpush2.msra.mxu0 0.0
      %302 = vmatprep.subr.mxu0 0.0
      %303 = vmatpush2.msra.mxu0 0.0
      %304 = vmatprep.subr.mxu0 0.0
      %305 = vmatpush2.msra.mxu0 0.0
      %306 = vmatprep.subr.mxu0 0.0
      %307 = vmatpush2.msra.mxu0 0.0
      %308 = vmatprep.subr.mxu0 0.0
      %309 = vmatpush2.msra.mxu0 0.0
      %310 = vmatprep.subr.mxu0 0.0
      %311 = vmatpush2.msra.mxu0 0.0
      %312 = vmatprep.subr.mxu0 0.0
      %313 = vmatpush2.msra.mxu0 0.0
      %314 = vmatprep.subr.mxu0 0.0
      %315 = vmatpush2.msra.mxu0 0.0
      %316 = vmatprep.subr.mxu0 0.0
      %317 = vmatpush2.msra.mxu0 0.0
      %318 = vmatprep.subr.mxu0 0.0
      %319 = vmatpush2.msra.mxu0 0.0
      %320 = vmatprep.subr.mxu0 0.0
      %321 = vmatpush2.msra.mxu0 0.0
      %322 = vmatprep.subr.mxu0 0.0
      %323 = vmatpush2.msra.mxu0 0.0
      %324 = vmatprep.subr.mxu0 0.0
      %325 = vmatpush2.msra.mxu0 0.0
      %326 = vmatprep.subr.mxu0 0.0
      %327 = vmatpush2.msra.mxu0 0.0
      %328 = vmatprep.subr.mxu0 0.0
      %329 = vmatpush2.msra.mxu0 0.0
      %330 = vmatprep.mubr.f32.mxu0 0.0
      %331 = vmatmul.mubr.f32.gmra.mxu0 %v243
      %v332 = vpop.f32.mrf.mxu0
      %v333 = vadd.f32 %v239, %v332
      %v334 = vpop.f32.mrf.mxu0
      %335 = vmatprep.mubr.f32.mxu0 0.0
      %336 = vmatmul.mubr.f32.gmra.mxu0 %v246
      %v337 = vpop.f32.mrf.mxu0
      %v338 = vadd.f32 %v239, %v337
      %v339 = vpop.f32.mrf.mxu0
      %340 = vmatprep.mubr.f32.mxu0 0.0
      %341 = vmatmul.mubr.f32.gmra.mxu0 %v249
      %v342 = vpop.f32.mrf.mxu0
      %v343 = vadd.f32 %v239, %v342
      %v344 = vpop.f32.mrf.mxu0
      %345 = vmatprep.mubr.f32.mxu0 0.0
      %346 = vmatmul.mubr.f32.gmra.mxu0 %v252
      %v347 = vpop.f32.mrf.mxu0
      %v348 = vadd.f32 %v239, %v347
      %v349 = vpop.f32.mrf.mxu0
      %350 = vmatprep.mubr.f32.mxu0 0.0
      %351 = vmatmul.mubr.f32.gmra.mxu0 %v255
      %v352 = vpop.f32.mrf.mxu0
      %v353 = vadd.f32 %v239, %v352
      %v354 = vpop.f32.mrf.mxu0
      %355 = vmatprep.mubr.f32.mxu0 0.0
      %356 = vmatmul.mubr.f32.gmra.mxu0 %v258
      %v357 = vpop.f32.mrf.mxu0
      %v358 = vadd.f32 %v239, %v357
      %v359 = vpop.f32.mrf.mxu0
      %360 = vmatprep.mubr.f32.mxu0 0.0
      %361 = vmatmul.mubr.f32.gmra.mxu0 %v261
      %v362 = vpop.f32.mrf.mxu0
      %v363 = vadd.f32 %v239, %v362
      %v364 = vpop.f32.mrf.mxu0
      %365 = vmatprep.mubr.f32.mxu0 0.0
      %366 = vmatmul.mubr.f32.gmra.mxu0 %v264
      %v367 = vpop.f32.mrf.mxu0
      %v368 = vadd.f32 %v239, %v367
      %v369 = vpop.f32.mrf.mxu0
      %370 = vdwg.mxu0
      %vm371 = vcmask 261120
      %372 = vst.msk [vmem:[#allocation2] sm:$0xff] %vm371, 0.0
      %vm373 = vcmask 254976
      %374 = vst.msk [vmem:[#allocation2 + $0x8] sm:$0x3] %vm373, 0.0
      %s375 = scalar_lea.vmem [#allocation2], 144
      %376 = vst.msk [vmem:[%s375] sm:$0xff] %vm371, 0.0
      %377 = vst.msk [vmem:[%s375 + $0x8] sm:$0x3] %vm373, 0.0
      %vm378 = vcmask 253952
      %379 = vst.msk [vmem:[#allocation2] sm:$0x1] %vm378, 0.0
      %380 = vst.msk [vmem:[#allocation2 + $0x10] sm:$0x1] %vm378, 0.0
      %381 = vst.msk [vmem:[#allocation2 + $0x20] sm:$0x1] %vm378, 0.0
      %382 = vst.msk [vmem:[#allocation2 + $0x30] sm:$0x1] %vm378, 0.0
      %383 = vst.msk [vmem:[#allocation2 + $0x40] sm:$0x1] %vm378, 0.0
      %384 = vst.msk [vmem:[#allocation2 + $0x50] sm:$0x1] %vm378, 0.0
      %385 = vst.msk [vmem:[#allocation2 + $0x60] sm:$0x1] %vm378, 0.0
      %386 = vst.msk [vmem:[#allocation2 + $0x70] sm:$0x1] %vm378, 0.0
      %387 = vst.msk [vmem:[#allocation2 + $0x80] sm:$0x1] %vm378, 0.0
      %388 = vst.msk [vmem:[#allocation2 + $0x90] sm:$0x1] %vm378, 0.0
      %389 = vst.msk [vmem:[#allocation2 + $0x9] sm:$0x1] %vm378, 0.0
      %390 = vst.msk [vmem:[#allocation2 + $0x19] sm:$0x1] %vm378, 0.0
      %391 = vst.msk [vmem:[#allocation2 + $0x29] sm:$0x1] %vm378, 0.0
      %392 = vst.msk [vmem:[#allocation2 + $0x39] sm:$0x1] %vm378, 0.0
      %393 = vst.msk [vmem:[#allocation2 + $0x49] sm:$0x1] %vm378, 0.0
      %394 = vst.msk [vmem:[#allocation2 + $0x59] sm:$0x1] %vm378, 0.0
      %395 = vst.msk [vmem:[#allocation2 + $0x69] sm:$0x1] %vm378, 0.0
      %396 = vst.msk [vmem:[#allocation2 + $0x79] sm:$0x1] %vm378, 0.0
      %397 = vst.msk [vmem:[#allocation2 + $0x89] sm:$0x1] %vm378, 0.0
      %398 = vst.msk [vmem:[#allocation2 + $0x99] sm:$0x1] %vm378, 0.0
      %s399 = scalar_lea.vmem [#allocation2], 16
      %400 = vst.msk [vmem:[%s399 + $0x1] sm:$0xff] %vm371, %v333
      %401 = vst.msk [vmem:[%s399 + $0x11] sm:$0xff] %vm371, %v338
      %402 = vst.msk [vmem:[%s399 + $0x21] sm:$0xff] %vm371, %v343
      %403 = vst.msk [vmem:[%s399 + $0x31] sm:$0xff] %vm371, %v348
      %404 = vst.msk [vmem:[%s399 + $0x41] sm:$0xff] %vm371, %v353
      %405 = vst.msk [vmem:[%s399 + $0x51] sm:$0xff] %vm371, %v358
      %406 = vst.msk [vmem:[%s399 + $0x61] sm:$0xff] %vm371, %v363
      %407 = vst.msk [vmem:[%s399 + $0x71] sm:$0xff] %vm371, %v368
      %v408 = vld [vmem:[%s4] sm:$0x1]
      %v409 = vld [vmem:[#allocation2] sm:$0xff]
      %v410 = vld [vmem:[#allocation2 + $0x10] sm:$0xff]
      %v411 = vld [vmem:[#allocation2 + $0x20] sm:$0xff]
      %v412 = vld [vmem:[#allocation2 + $0x30] sm:$0xff]
      %v413 = vld [vmem:[#allocation2 + $0x40] sm:$0xff]
      %v414 = vld [vmem:[#allocation2 + $0x50] sm:$0xff]
      %v415 = vld [vmem:[#allocation2 + $0x60] sm:$0xff]
      %v416 = vld [vmem:[#allocation2 + $0x70] sm:$0xff]
      %v417 = vld [vmem:[%s3] sm:$0xff]
      %v418 = vld [vmem:[%s3 + $0x8] sm:$0xff]
      %v419 = vld [vmem:[%s3 + $0x10] sm:$0xff]
      %v420 = vld [vmem:[%s3 + $0x18] sm:$0xff]
      %v421 = vld [vmem:[#allocation2 + $0x1] sm:$0xff]
      %v422 = vld [vmem:[#allocation2 + $0x11] sm:$0xff]
      %v423 = vld [vmem:[#allocation2 + $0x21] sm:$0xff]
      %v424 = vld [vmem:[#allocation2 + $0x31] sm:$0xff]
      %v425 = vld [vmem:[#allocation2 + $0x41] sm:$0xff]
      %v426 = vld [vmem:[#allocation2 + $0x51] sm:$0xff]
      %v427 = vld [vmem:[#allocation2 + $0x61] sm:$0xff]
      %v428 = vld [vmem:[#allocation2 + $0x71] sm:$0xff]
      %s429 = scalar_lea.vmem %s3, 32
      %v430 = vld [vmem:[%s429] sm:$0xff]
      %v431 = vld [vmem:[%s429 + $0x8] sm:$0xff]
      %v432 = vld [vmem:[%s429 + $0x10] sm:$0xff]
      %v433 = vld [vmem:[%s429 + $0x18] sm:$0xff]
      %v435 = vsel %vm371, %v421, 0
      %v438 = vsel %vm371, %v422, 0
      %v441 = vsel %vm371, %v423, 0
      %v444 = vsel %vm371, %v424, 0
      %v447 = vsel %vm371, %v425, 0
      %v450 = vsel %vm371, %v426, 0
      %v453 = vsel %vm371, %v427, 0
      %v456 = vsel %vm371, %v428, 0
      %458 = vmatprep.subr.mxu0 0.0
      %459 = vmatpush1.msra.mxu0 0.0
      %460 = vmatprep.subr.mxu0 0.0
      %461 = vmatpush1.msra.mxu0 0.0
      %462 = vmatprep.subr.mxu0 0.0
      %463 = vmatpush1.msra.mxu0 0.0
      %464 = vmatprep.subr.mxu0 0.0
      %465 = vmatpush1.msra.mxu0 0.0
      %466 = vmatprep.subr.mxu0 0.0
      %467 = vmatpush1.msra.mxu0 0.0
      %468 = vmatprep.subr.mxu0 0.0
      %469 = vmatpush1.msra.mxu0 0.0
      %470 = vmatprep.subr.mxu0 0.0
      %471 = vmatpush1.msra.mxu0 0.0
      %472 = vmatprep.subr.mxu0 0.0
      %473 = vmatpush1.msra.mxu0 0.0
      %474 = vmatprep.subr.mxu0 0.0
      %475 = vmatpush1.msra.mxu0 0.0
      %476 = vmatprep.subr.mxu0 0.0
      %477 = vmatpush1.msra.mxu0 0.0
      %478 = vmatprep.subr.mxu0 0.0
      %479 = vmatpush1.msra.mxu0 0.0
      %480 = vmatprep.subr.mxu0 0.0
      %481 = vmatpush1.msra.mxu0 0.0
      %482 = vmatprep.subr.mxu0 0.0
      %483 = vmatpush1.msra.mxu0 %v433
      %484 = vmatprep.subr.mxu0 0.0
      %485 = vmatpush1.msra.mxu0 %v432
      %486 = vmatprep.subr.mxu0 0.0
      %487 = vmatpush1.msra.mxu0 %v431
      %488 = vmatprep.subr.mxu0 0.0
      %489 = vmatpush1.msra.mxu0 %v430
      %490 = vmatprep.subr.mxu0 0.0
      %491 = vmatpush2.msra.mxu0 0.0
      %492 = vmatprep.subr.mxu0 0.0
      %493 = vmatpush2.msra.mxu0 0.0
      %494 = vmatprep.subr.mxu0 0.0
      %495 = vmatpush2.msra.mxu0 0.0
      %496 = vmatprep.subr.mxu0 0.0
      %497 = vmatpush2.msra.mxu0 0.0
      %498 = vmatprep.subr.mxu0 0.0
      %499 = vmatpush2.msra.mxu0 0.0
      %500 = vmatprep.subr.mxu0 0.0
      %501 = vmatpush2.msra.mxu0 0.0
      %502 = vmatprep.subr.mxu0 0.0
      %503 = vmatpush2.msra.mxu0 0.0
      %504 = vmatprep.subr.mxu0 0.0
      %505 = vmatpush2.msra.mxu0 0.0
      %506 = vmatprep.subr.mxu0 0.0
      %507 = vmatpush2.msra.mxu0 0.0
      %508 = vmatprep.subr.mxu0 0.0
      %509 = vmatpush2.msra.mxu0 0.0
      %510 = vmatprep.subr.mxu0 0.0
      %511 = vmatpush2.msra.mxu0 0.0
      %512 = vmatprep.subr.mxu0 0.0
      %513 = vmatpush2.msra.mxu0 0.0
      %514 = vmatprep.subr.mxu0 0.0
      %515 = vmatpush2.msra.mxu0 0.0
      %516 = vmatprep.subr.mxu0 0.0
      %517 = vmatpush2.msra.mxu0 0.0
      %518 = vmatprep.subr.mxu0 0.0
      %519 = vmatpush2.msra.mxu0 0.0
      %520 = vmatprep.subr.mxu0 0.0
      %521 = vmatpush2.msra.mxu0 0.0
      %522 = vmatprep.mubr.f32.mxu0 0.0
      %523 = vmatmul.mubr.f32.gmra.mxu0 %v435
      %v524 = vpop.f32.mrf.mxu0
      %v525 = vadd.f32 0.0, %v524
      %v526 = vpop.f32.mrf.mxu0
      %527 = vmatprep.mubr.f32.mxu0 0.0
      %528 = vmatmul.mubr.f32.gmra.mxu0 %v438
      %v529 = vpop.f32.mrf.mxu0
      %v530 = vadd.f32 0.0, %v529
      %v531 = vpop.f32.mrf.mxu0
      %532 = vmatprep.mubr.f32.mxu0 0.0
      %533 = vmatmul.mubr.f32.gmra.mxu0 %v441
      %v534 = vpop.f32.mrf.mxu0
      %v535 = vadd.f32 0.0, %v534
      %v536 = vpop.f32.mrf.mxu0
      %537 = vmatprep.mubr.f32.mxu0 0.0
      %538 = vmatmul.mubr.f32.gmra.mxu0 %v444
      %v539 = vpop.f32.mrf.mxu0
      %v540 = vadd.f32 0.0, %v539
      %v541 = vpop.f32.mrf.mxu0
      %542 = vmatprep.mubr.f32.mxu0 0.0
      %543 = vmatmul.mubr.f32.gmra.mxu0 %v447
      %v544 = vpop.f32.mrf.mxu0
      %v545 = vadd.f32 0.0, %v544
      %v546 = vpop.f32.mrf.mxu0
      %547 = vmatprep.mubr.f32.mxu0 0.0
      %548 = vmatmul.mubr.f32.gmra.mxu0 %v450
      %v549 = vpop.f32.mrf.mxu0
      %v550 = vadd.f32 0.0, %v549
      %v551 = vpop.f32.mrf.mxu0
      %552 = vmatprep.mubr.f32.mxu0 0.0
      %553 = vmatmul.mubr.f32.gmra.mxu0 %v453
      %v554 = vpop.f32.mrf.mxu0
      %v555 = vadd.f32 0.0, %v554
      %v556 = vpop.f32.mrf.mxu0
      %557 = vmatprep.mubr.f32.mxu0 0.0
      %558 = vmatmul.mubr.f32.gmra.mxu0 %v456
      %v559 = vpop.f32.mrf.mxu0
      %v560 = vadd.f32 0.0, %v559
      %v561 = vpop.f32.mrf.mxu0
      %562 = vdwg.mxu0
      %v564 = vsel %vm371, %v409, 0
      %v567 = vsel %vm371, %v410, 0
      %v570 = vsel %vm371, %v411, 0
      %v573 = vsel %vm371, %v412, 0
      %v576 = vsel %vm371, %v413, 0
      %v579 = vsel %vm371, %v414, 0
      %v582 = vsel %vm371, %v415, 0
      %v585 = vsel %vm371, %v416, 0
      %587 = vmatprep.subr.mxu0 0.0
      %588 = vmatpush1.msra.mxu0 0.0
      %589 = vmatprep.subr.mxu0 0.0
      %590 = vmatpush1.msra.mxu0 0.0
      %591 = vmatprep.subr.mxu0 0.0
      %592 = vmatpush1.msra.mxu0 0.0
      %593 = vmatprep.subr.mxu0 0.0
      %594 = vmatpush1.msra.mxu0 0.0
      %595 = vmatprep.subr.mxu0 0.0
      %596 = vmatpush1.msra.mxu0 0.0
      %597 = vmatprep.subr.mxu0 0.0
      %598 = vmatpush1.msra.mxu0 0.0
      %599 = vmatprep.subr.mxu0 0.0
      %600 = vmatpush1.msra.mxu0 0.0
      %601 = vmatprep.subr.mxu0 0.0
      %602 = vmatpush1.msra.mxu0 0.0
      %603 = vmatprep.subr.mxu0 0.0
      %604 = vmatpush1.msra.mxu0 0.0
      %605 = vmatprep.subr.mxu0 0.0
      %606 = vmatpush1.msra.mxu0 0.0
      %607 = vmatprep.subr.mxu0 0.0
      %608 = vmatpush1.msra.mxu0 0.0
      %609 = vmatprep.subr.mxu0 0.0
      %610 = vmatpush1.msra.mxu0 0.0
      %611 = vmatprep.subr.mxu0 0.0
      %612 = vmatpush1.msra.mxu0 %v420
      %613 = vmatprep.subr.mxu0 0.0
      %614 = vmatpush1.msra.mxu0 %v419
      %615 = vmatprep.subr.mxu0 0.0
      %616 = vmatpush1.msra.mxu0 %v418
      %617 = vmatprep.subr.mxu0 0.0
      %618 = vmatpush1.msra.mxu0 %v417
      %619 = vmatprep.subr.mxu0 0.0
      %620 = vmatpush2.msra.mxu0 0.0
      %621 = vmatprep.subr.mxu0 0.0
      %622 = vmatpush2.msra.mxu0 0.0
      %623 = vmatprep.subr.mxu0 0.0
      %624 = vmatpush2.msra.mxu0 0.0
      %625 = vmatprep.subr.mxu0 0.0
      %626 = vmatpush2.msra.mxu0 0.0
      %627 = vmatprep.subr.mxu0 0.0
      %628 = vmatpush2.msra.mxu0 0.0
      %629 = vmatprep.subr.mxu0 0.0
      %630 = vmatpush2.msra.mxu0 0.0
      %631 = vmatprep.subr.mxu0 0.0
      %632 = vmatpush2.msra.mxu0 0.0
      %633 = vmatprep.subr.mxu0 0.0
      %634 = vmatpush2.msra.mxu0 0.0
      %635 = vmatprep.subr.mxu0 0.0
      %636 = vmatpush2.msra.mxu0 0.0
      %637 = vmatprep.subr.mxu0 0.0
      %638 = vmatpush2.msra.mxu0 0.0
      %639 = vmatprep.subr.mxu0 0.0
      %640 = vmatpush2.msra.mxu0 0.0
      %641 = vmatprep.subr.mxu0 0.0
      %642 = vmatpush2.msra.mxu0 0.0
      %643 = vmatprep.subr.mxu0 0.0
      %644 = vmatpush2.msra.mxu0 0.0
      %645 = vmatprep.subr.mxu0 0.0
      %646 = vmatpush2.msra.mxu0 0.0
      %647 = vmatprep.subr.mxu0 0.0
      %648 = vmatpush2.msra.mxu0 0.0
      %649 = vmatprep.subr.mxu0 0.0
      %650 = vmatpush2.msra.mxu0 0.0
      %651 = vmatprep.mubr.f32.mxu0 0.0
      %652 = vmatmul.mubr.f32.gmra.mxu0 %v564
      %v653 = vpop.f32.mrf.mxu0
      %v654 = vadd.f32 %v525, %v653
      %v655 = vpop.f32.mrf.mxu0
      %656 = vmatprep.mubr.f32.mxu0 0.0
      %657 = vmatmul.mubr.f32.gmra.mxu0 %v567
      %v658 = vpop.f32.mrf.mxu0
      %v659 = vadd.f32 %v530, %v658
      %v660 = vpop.f32.mrf.mxu0
      %661 = vmatprep.mubr.f32.mxu0 0.0
      %662 = vmatmul.mubr.f32.gmra.mxu0 %v570
      %v663 = vpop.f32.mrf.mxu0
      %v664 = vadd.f32 %v535, %v663
      %v665 = vpop.f32.mrf.mxu0
      %666 = vmatprep.mubr.f32.mxu0 0.0
      %667 = vmatmul.mubr.f32.gmra.mxu0 %v573
      %v668 = vpop.f32.mrf.mxu0
      %v669 = vadd.f32 %v540, %v668
      %v670 = vpop.f32.mrf.mxu0
      %671 = vmatprep.mubr.f32.mxu0 0.0
      %672 = vmatmul.mubr.f32.gmra.mxu0 %v576
      %v673 = vpop.f32.mrf.mxu0
      %v674 = vadd.f32 %v545, %v673
      %v675 = vpop.f32.mrf.mxu0
      %676 = vmatprep.mubr.f32.mxu0 0.0
      %677 = vmatmul.mubr.f32.gmra.mxu0 %v579
      %v678 = vpop.f32.mrf.mxu0
      %v679 = vadd.f32 %v550, %v678
      %v680 = vpop.f32.mrf.mxu0
      %681 = vmatprep.mubr.f32.mxu0 0.0
      %682 = vmatmul.mubr.f32.gmra.mxu0 %v582
      %v683 = vpop.f32.mrf.mxu0
      %v684 = vadd.f32 %v555, %v683
      %v685 = vpop.f32.mrf.mxu0
      %686 = vmatprep.mubr.f32.mxu0 0.0
      %687 = vmatmul.mubr.f32.gmra.mxu0 %v585
      %v688 = vpop.f32.mrf.mxu0
      %v689 = vadd.f32 %v560, %v688
      %v690 = vpop.f32.mrf.mxu0
      %691 = vdwg.mxu0
      %v692 = vld [vmem:[%s399] sm:$0xff]
      %v693 = vld [vmem:[%s399 + $0x10] sm:$0xff]
      %v694 = vld [vmem:[%s399 + $0x20] sm:$0xff]
      %v695 = vld [vmem:[%s399 + $0x30] sm:$0xff]
      %v696 = vld [vmem:[%s399 + $0x40] sm:$0xff]
      %v697 = vld [vmem:[%s399 + $0x50] sm:$0xff]
      %v698 = vld [vmem:[%s399 + $0x60] sm:$0xff]
      %v699 = vld [vmem:[%s399 + $0x70] sm:$0xff]
      %s700 = scalar_lea.vmem %s3, 64
      %v701 = vld [vmem:[%s700] sm:$0xff]
      %v702 = vld [vmem:[%s700 + $0x8] sm:$0xff]
      %v703 = vld [vmem:[%s700 + $0x10] sm:$0xff]
      %v704 = vld [vmem:[%s700 + $0x18] sm:$0xff]
      %v706 = vsel %vm371, %v692, 0
      %v709 = vsel %vm371, %v693, 0
      %v712 = vsel %vm371, %v694, 0
      %v715 = vsel %vm371, %v695, 0
      %v718 = vsel %vm371, %v696, 0
      %v721 = vsel %vm371, %v697, 0
      %v724 = vsel %vm371, %v698, 0
      %v727 = vsel %vm371, %v699, 0
      %729 = vmatprep.subr.mxu0 0.0
      %730 = vmatpush1.msra.mxu0 0.0
      %731 = vmatprep.subr.mxu0 0.0
      %732 = vmatpush1.msra.mxu0 0.0
      %733 = vmatprep.subr.mxu0 0.0
      %734 = vmatpush1.msra.mxu0 0.0
      %735 = vmatprep.subr.mxu0 0.0
      %736 = vmatpush1.msra.mxu0 0.0
      %737 = vmatprep.subr.mxu0 0.0
      %738 = vmatpush1.msra.mxu0 0.0
      %739 = vmatprep.subr.mxu0 0.0
      %740 = vmatpush1.msra.mxu0 0.0
      %741 = vmatprep.subr.mxu0 0.0
      %742 = vmatpush1.msra.mxu0 0.0
      %743 = vmatprep.subr.mxu0 0.0
      %744 = vmatpush1.msra.mxu0 0.0
      %745 = vmatprep.subr.mxu0 0.0
      %746 = vmatpush1.msra.mxu0 0.0
      %747 = vmatprep.subr.mxu0 0.0
      %748 = vmatpush1.msra.mxu0 0.0
      %749 = vmatprep.subr.mxu0 0.0
      %750 = vmatpush1.msra.mxu0 0.0
      %751 = vmatprep.subr.mxu0 0.0
      %752 = vmatpush1.msra.mxu0 0.0
      %753 = vmatprep.subr.mxu0 0.0
      %754 = vmatpush1.msra.mxu0 %v704
      %755 = vmatprep.subr.mxu0 0.0
      %756 = vmatpush1.msra.mxu0 %v703
      %757 = vmatprep.subr.mxu0 0.0
      %758 = vmatpush1.msra.mxu0 %v702
      %759 = vmatprep.subr.mxu0 0.0
      %760 = vmatpush1.msra.mxu0 %v701
      %761 = vmatprep.subr.mxu0 0.0
      %762 = vmatpush2.msra.mxu0 0.0
      %763 = vmatprep.subr.mxu0 0.0
      %764 = vmatpush2.msra.mxu0 0.0
      %765 = vmatprep.subr.mxu0 0.0
      %766 = vmatpush2.msra.mxu0 0.0
      %767 = vmatprep.subr.mxu0 0.0
      %768 = vmatpush2.msra.mxu0 0.0
      %769 = vmatprep.subr.mxu0 0.0
      %770 = vmatpush2.msra.mxu0 0.0
      %771 = vmatprep.subr.mxu0 0.0
      %772 = vmatpush2.msra.mxu0 0.0
      %773 = vmatprep.subr.mxu0 0.0
      %774 = vmatpush2.msra.mxu0 0.0
      %775 = vmatprep.subr.mxu0 0.0
      %776 = vmatpush2.msra.mxu0 0.0
      %777 = vmatprep.subr.mxu0 0.0
      %778 = vmatpush2.msra.mxu0 0.0
      %779 = vmatprep.subr.mxu0 0.0
      %780 = vmatpush2.msra.mxu0 0.0
      %781 = vmatprep.subr.mxu0 0.0
      %782 = vmatpush2.msra.mxu0 0.0
      %783 = vmatprep.subr.mxu0 0.0
      %784 = vmatpush2.msra.mxu0 0.0
      %785 = vmatprep.subr.mxu0 0.0
      %786 = vmatpush2.msra.mxu0 0.0
      %787 = vmatprep.subr.mxu0 0.0
      %788 = vmatpush2.msra.mxu0 0.0
      %789 = vmatprep.subr.mxu0 0.0
      %790 = vmatpush2.msra.mxu0 0.0
      %791 = vmatprep.subr.mxu0 0.0
      %792 = vmatpush2.msra.mxu0 0.0
      %793 = vmatprep.mubr.f32.mxu0 0.0
      %794 = vmatmul.mubr.f32.gmra.mxu0 %v706
      %v795 = vpop.f32.mrf.mxu0
      %v796 = vadd.f32 0.0, %v795
      %v797 = vpop.f32.mrf.mxu0
      %798 = vmatprep.mubr.f32.mxu0 0.0
      %799 = vmatmul.mubr.f32.gmra.mxu0 %v709
      %v800 = vpop.f32.mrf.mxu0
      %v801 = vadd.f32 0.0, %v800
      %v802 = vpop.f32.mrf.mxu0
      %803 = vmatprep.mubr.f32.mxu0 0.0
      %804 = vmatmul.mubr.f32.gmra.mxu0 %v712
      %v805 = vpop.f32.mrf.mxu0
      %v806 = vadd.f32 0.0, %v805
      %v807 = vpop.f32.mrf.mxu0
      %808 = vmatprep.mubr.f32.mxu0 0.0
      %809 = vmatmul.mubr.f32.gmra.mxu0 %v715
      %v810 = vpop.f32.mrf.mxu0
      %v811 = vadd.f32 0.0, %v810
      %v812 = vpop.f32.mrf.mxu0
      %813 = vmatprep.mubr.f32.mxu0 0.0
      %814 = vmatmul.mubr.f32.gmra.mxu0 %v718
      %v815 = vpop.f32.mrf.mxu0
      %v816 = vadd.f32 0.0, %v815
      %v817 = vpop.f32.mrf.mxu0
      %818 = vmatprep.mubr.f32.mxu0 0.0
      %819 = vmatmul.mubr.f32.gmra.mxu0 %v721
      %v820 = vpop.f32.mrf.mxu0
      %v821 = vadd.f32 0.0, %v820
      %v822 = vpop.f32.mrf.mxu0
      %823 = vmatprep.mubr.f32.mxu0 0.0
      %824 = vmatmul.mubr.f32.gmra.mxu0 %v724
      %v825 = vpop.f32.mrf.mxu0
      %v826 = vadd.f32 0.0, %v825
      %v827 = vpop.f32.mrf.mxu0
      %828 = vmatprep.mubr.f32.mxu0 0.0
      %829 = vmatmul.mubr.f32.gmra.mxu0 %v727
      %v830 = vpop.f32.mrf.mxu0
      %v831 = vadd.f32 0.0, %v830
      %v832 = vpop.f32.mrf.mxu0
      %833 = vdwg.mxu0
      %v834 = vadd.f32 %v654, %v796
      %v835 = vadd.f32 %v659, %v801
      %v836 = vadd.f32 %v664, %v806
      %v837 = vadd.f32 %v669, %v811
      %v838 = vadd.f32 %v674, %v816
      %v839 = vadd.f32 %v679, %v821
      %v840 = vadd.f32 %v684, %v826
      %v841 = vadd.f32 %v689, %v831
      %v842 = vld [vmem:[%s399 + $0x1] sm:$0xff]
      %v843 = vld [vmem:[%s399 + $0x11] sm:$0xff]
      %v844 = vld [vmem:[%s399 + $0x21] sm:$0xff]
      %v845 = vld [vmem:[%s399 + $0x31] sm:$0xff]
      %v846 = vld [vmem:[%s399 + $0x41] sm:$0xff]
      %v847 = vld [vmem:[%s399 + $0x51] sm:$0xff]
      %v848 = vld [vmem:[%s399 + $0x61] sm:$0xff]
      %v849 = vld [vmem:[%s399 + $0x71] sm:$0xff]
      %s850 = scalar_lea.vmem %s3, 96
      %v851 = vld [vmem:[%s850] sm:$0xff]
      %v852 = vld [vmem:[%s850 + $0x8] sm:$0xff]
      %v853 = vld [vmem:[%s850 + $0x10] sm:$0xff]
      %v854 = vld [vmem:[%s850 + $0x18] sm:$0xff]
      %v856 = vsel %vm371, %v842, 0
      %v859 = vsel %vm371, %v843, 0
      %v862 = vsel %vm371, %v844, 0
      %v865 = vsel %vm371, %v845, 0
      %v868 = vsel %vm371, %v846, 0
      %v871 = vsel %vm371, %v847, 0
      %v874 = vsel %vm371, %v848, 0
      %v877 = vsel %vm371, %v849, 0
      %879 = vmatprep.subr.mxu0 0.0
      %880 = vmatpush1.msra.mxu0 0.0
      %881 = vmatprep.subr.mxu0 0.0
      %882 = vmatpush1.msra.mxu0 0.0
      %883 = vmatprep.subr.mxu0 0.0
      %884 = vmatpush1.msra.mxu0 0.0
      %885 = vmatprep.subr.mxu0 0.0
      %886 = vmatpush1.msra.mxu0 0.0
      %887 = vmatprep.subr.mxu0 0.0
      %888 = vmatpush1.msra.mxu0 0.0
      %889 = vmatprep.subr.mxu0 0.0
      %890 = vmatpush1.msra.mxu0 0.0
      %891 = vmatprep.subr.mxu0 0.0
      %892 = vmatpush1.msra.mxu0 0.0
      %893 = vmatprep.subr.mxu0 0.0
      %894 = vmatpush1.msra.mxu0 0.0
      %895 = vmatprep.subr.mxu0 0.0
      %896 = vmatpush1.msra.mxu0 0.0
      %897 = vmatprep.subr.mxu0 0.0
      %898 = vmatpush1.msra.mxu0 0.0
      %899 = vmatprep.subr.mxu0 0.0
      %900 = vmatpush1.msra.mxu0 0.0
      %901 = vmatprep.subr.mxu0 0.0
      %902 = vmatpush1.msra.mxu0 0.0
      %903 = vmatprep.subr.mxu0 0.0
      %904 = vmatpush1.msra.mxu0 %v854
      %905 = vmatprep.subr.mxu0 0.0
      %906 = vmatpush1.msra.mxu0 %v853
      %907 = vmatprep.subr.mxu0 0.0
      %908 = vmatpush1.msra.mxu0 %v852
      %909 = vmatprep.subr.mxu0 0.0
      %910 = vmatpush1.msra.mxu0 %v851
      %911 = vmatprep.subr.mxu0 0.0
      %912 = vmatpush2.msra.mxu0 0.0
      %913 = vmatprep.subr.mxu0 0.0
      %914 = vmatpush2.msra.mxu0 0.0
      %915 = vmatprep.subr.mxu0 0.0
      %916 = vmatpush2.msra.mxu0 0.0
      %917 = vmatprep.subr.mxu0 0.0
      %918 = vmatpush2.msra.mxu0 0.0
      %919 = vmatprep.subr.mxu0 0.0
      %920 = vmatpush2.msra.mxu0 0.0
      %921 = vmatprep.subr.mxu0 0.0
      %922 = vmatpush2.msra.mxu0 0.0
      %923 = vmatprep.subr.mxu0 0.0
      %924 = vmatpush2.msra.mxu0 0.0
      %925 = vmatprep.subr.mxu0 0.0
      %926 = vmatpush2.msra.mxu0 0.0
      %927 = vmatprep.subr.mxu0 0.0
      %928 = vmatpush2.msra.mxu0 0.0
      %929 = vmatprep.subr.mxu0 0.0
      %930 = vmatpush2.msra.mxu0 0.0
      %931 = vmatprep.subr.mxu0 0.0
      %932 = vmatpush2.msra.mxu0 0.0
      %933 = vmatprep.subr.mxu0 0.0
      %934 = vmatpush2.msra.mxu0 0.0
      %935 = vmatprep.subr.mxu0 0.0
      %936 = vmatpush2.msra.mxu0 0.0
      %937 = vmatprep.subr.mxu0 0.0
      %938 = vmatpush2.msra.mxu0 0.0
      %939 = vmatprep.subr.mxu0 0.0
      %940 = vmatpush2.msra.mxu0 0.0
      %941 = vmatprep.subr.mxu0 0.0
      %942 = vmatpush2.msra.mxu0 0.0
      %943 = vmatprep.mubr.f32.mxu0 0.0
      %944 = vmatmul.mubr.f32.gmra.mxu0 %v856
      %v945 = vpop.f32.mrf.mxu0
      %v946 = vadd.f32 0.0, %v945
      %v947 = vpop.f32.mrf.mxu0
      %948 = vmatprep.mubr.f32.mxu0 0.0
      %949 = vmatmul.mubr.f32.gmra.mxu0 %v859
      %v950 = vpop.f32.mrf.mxu0
      %v951 = vadd.f32 0.0, %v950
      %v952 = vpop.f32.mrf.mxu0
      %953 = vmatprep.mubr.f32.mxu0 0.0
      %954 = vmatmul.mubr.f32.gmra.mxu0 %v862
      %v955 = vpop.f32.mrf.mxu0
      %v956 = vadd.f32 0.0, %v955
      %v957 = vpop.f32.mrf.mxu0
      %958 = vmatprep.mubr.f32.mxu0 0.0
      %959 = vmatmul.mubr.f32.gmra.mxu0 %v865
      %v960 = vpop.f32.mrf.mxu0
      %v961 = vadd.f32 0.0, %v960
      %v962 = vpop.f32.mrf.mxu0
      %963 = vmatprep.mubr.f32.mxu0 0.0
      %964 = vmatmul.mubr.f32.gmra.mxu0 %v868
      %v965 = vpop.f32.mrf.mxu0
      %v966 = vadd.f32 0.0, %v965
      %v967 = vpop.f32.mrf.mxu0
      %968 = vmatprep.mubr.f32.mxu0 0.0
      %969 = vmatmul.mubr.f32.gmra.mxu0 %v871
      %v970 = vpop.f32.mrf.mxu0
      %v971 = vadd.f32 0.0, %v970
      %v972 = vpop.f32.mrf.mxu0
      %973 = vmatprep.mubr.f32.mxu0 0.0
      %974 = vmatmul.mubr.f32.gmra.mxu0 %v874
      %v975 = vpop.f32.mrf.mxu0
      %v976 = vadd.f32 0.0, %v975
      %v977 = vpop.f32.mrf.mxu0
      %978 = vmatprep.mubr.f32.mxu0 0.0
      %979 = vmatmul.mubr.f32.gmra.mxu0 %v877
      %v980 = vpop.f32.mrf.mxu0
      %v981 = vadd.f32 0.0, %v980
      %v982 = vpop.f32.mrf.mxu0
      %983 = vdwg.mxu0
      %v984 = vadd.f32 %v834, %v946
      %v985 = vadd.f32 %v835, %v951
      %v986 = vadd.f32 %v836, %v956
      %v987 = vadd.f32 %v837, %v961
      %v988 = vadd.f32 %v838, %v966
      %v989 = vadd.f32 %v839, %v971
      %v990 = vadd.f32 %v840, %v976
      %v991 = vadd.f32 %v841, %v981
      %v993 = vlaneseq
      %v994 = vshrl.u32 %v993, 7
      %v995 = vsub.s32 0, %v994
      %v996 = vrot.slane %v408, %v995
      %v998 = vadd.f32 %v984, %v996
      %v999 = vadd.f32 %v985, %v996
      %v1000 = vadd.f32 %v986, %v996
      %v1001 = vadd.f32 %v987, %v996
      %v1002 = vadd.f32 %v988, %v996
      %v1003 = vadd.f32 %v989, %v996
      %v1004 = vadd.f32 %v990, %v996
      %v1005 = vadd.f32 %v991, %v996
      %s1006 = scalar_lea.vmem %s3, 128
      %v1007 = vld [vmem:[%s1006] sm:$0xff]
      %v1008 = vld [vmem:[%s1006 + $0x8] sm:$0xff]
      %v1009 = vld [vmem:[%s1006 + $0x10] sm:$0xff]
      %v1010 = vld [vmem:[%s1006 + $0x18] sm:$0xff]
      %v1011 = vld [vmem:[#allocation2 + $0x2] sm:$0xff]
      %v1012 = vld [vmem:[#allocation2 + $0x12] sm:$0xff]
      %v1013 = vld [vmem:[#allocation2 + $0x22] sm:$0xff]
      %v1014 = vld [vmem:[#allocation2 + $0x32] sm:$0xff]
      %v1015 = vld [vmem:[#allocation2 + $0x42] sm:$0xff]
      %v1016 = vld [vmem:[#allocation2 + $0x52] sm:$0xff]
      %v1017 = vld [vmem:[#allocation2 + $0x62] sm:$0xff]
      %v1018 = vld [vmem:[#allocation2 + $0x72] sm:$0xff]
      %s1019 = scalar_lea.vmem %s3, 160
      %v1020 = vld [vmem:[%s1019] sm:$0xff]
      %v1021 = vld [vmem:[%s1019 + $0x8] sm:$0xff]
      %v1022 = vld [vmem:[%s1019 + $0x10] sm:$0xff]
      %v1023 = vld [vmem:[%s1019 + $0x18] sm:$0xff]
      %v1025 = vsel %vm371, %v1011, 0
      %v1028 = vsel %vm371, %v1012, 0
      %v1031 = vsel %vm371, %v1013, 0
      %v1034 = vsel %vm371, %v1014, 0
      %v1037 = vsel %vm371, %v1015, 0
      %v1040 = vsel %vm371, %v1016, 0
      %v1043 = vsel %vm371, %v1017, 0
      %v1046 = vsel %vm371, %v1018, 0
      %1048 = vmatprep.subr.mxu0 0.0
      %1049 = vmatpush1.msra.mxu0 0.0
      %1050 = vmatprep.subr.mxu0 0.0
      %1051 = vmatpush1.msra.mxu0 0.0
      %1052 = vmatprep.subr.mxu0 0.0
      %1053 = vmatpush1.msra.mxu0 0.0
      %1054 = vmatprep.subr.mxu0 0.0
      %1055 = vmatpush1.msra.mxu0 0.0
      %1056 = vmatprep.subr.mxu0 0.0
      %1057 = vmatpush1.msra.mxu0 0.0
      %1058 = vmatprep.subr.mxu0 0.0
      %1059 = vmatpush1.msra.mxu0 0.0
      %1060 = vmatprep.subr.mxu0 0.0
      %1061 = vmatpush1.msra.mxu0 0.0
      %1062 = vmatprep.subr.mxu0 0.0
      %1063 = vmatpush1.msra.mxu0 0.0
      %1064 = vmatprep.subr.mxu0 0.0
      %1065 = vmatpush1.msra.mxu0 0.0
      %1066 = vmatprep.subr.mxu0 0.0
      %1067 = vmatpush1.msra.mxu0 0.0
      %1068 = vmatprep.subr.mxu0 0.0
      %1069 = vmatpush1.msra.mxu0 0.0
      %1070 = vmatprep.subr.mxu0 0.0
      %1071 = vmatpush1.msra.mxu0 0.0
      %1072 = vmatprep.subr.mxu0 0.0
      %1073 = vmatpush1.msra.mxu0 %v1023
      %1074 = vmatprep.subr.mxu0 0.0
      %1075 = vmatpush1.msra.mxu0 %v1022
      %1076 = vmatprep.subr.mxu0 0.0
      %1077 = vmatpush1.msra.mxu0 %v1021
      %1078 = vmatprep.subr.mxu0 0.0
      %1079 = vmatpush1.msra.mxu0 %v1020
      %1080 = vmatprep.subr.mxu0 0.0
      %1081 = vmatpush2.msra.mxu0 0.0
      %1082 = vmatprep.subr.mxu0 0.0
      %1083 = vmatpush2.msra.mxu0 0.0
      %1084 = vmatprep.subr.mxu0 0.0
      %1085 = vmatpush2.msra.mxu0 0.0
      %1086 = vmatprep.subr.mxu0 0.0
      %1087 = vmatpush2.msra.mxu0 0.0
      %1088 = vmatprep.subr.mxu0 0.0
      %1089 = vmatpush2.msra.mxu0 0.0
      %1090 = vmatprep.subr.mxu0 0.0
      %1091 = vmatpush2.msra.mxu0 0.0
      %1092 = vmatprep.subr.mxu0 0.0
      %1093 = vmatpush2.msra.mxu0 0.0
      %1094 = vmatprep.subr.mxu0 0.0
      %1095 = vmatpush2.msra.mxu0 0.0
      %1096 = vmatprep.subr.mxu0 0.0
      %1097 = vmatpush2.msra.mxu0 0.0
      %1098 = vmatprep.subr.mxu0 0.0
      %1099 = vmatpush2.msra.mxu0 0.0
      %1100 = vmatprep.subr.mxu0 0.0
      %1101 = vmatpush2.msra.mxu0 0.0
      %1102 = vmatprep.subr.mxu0 0.0
      %1103 = vmatpush2.msra.mxu0 0.0
      %1104 = vmatprep.subr.mxu0 0.0
      %1105 = vmatpush2.msra.mxu0 0.0
      %1106 = vmatprep.subr.mxu0 0.0
      %1107 = vmatpush2.msra.mxu0 0.0
      %1108 = vmatprep.subr.mxu0 0.0
      %1109 = vmatpush2.msra.mxu0 0.0
      %1110 = vmatprep.subr.mxu0 0.0
      %1111 = vmatpush2.msra.mxu0 0.0
      %1112 = vmatprep.mubr.f32.mxu0 0.0
      %1113 = vmatmul.mubr.f32.gmra.mxu0 %v1025
      %v1114 = vpop.f32.mrf.mxu0
      %v1115 = vadd.f32 0.0, %v1114
      %v1116 = vpop.f32.mrf.mxu0
      %1117 = vmatprep.mubr.f32.mxu0 0.0
      %1118 = vmatmul.mubr.f32.gmra.mxu0 %v1028
      %v1119 = vpop.f32.mrf.mxu0
      %v1120 = vadd.f32 0.0, %v1119
      %v1121 = vpop.f32.mrf.mxu0
      %1122 = vmatprep.mubr.f32.mxu0 0.0
      %1123 = vmatmul.mubr.f32.gmra.mxu0 %v1031
      %v1124 = vpop.f32.mrf.mxu0
      %v1125 = vadd.f32 0.0, %v1124
      %v1126 = vpop.f32.mrf.mxu0
      %1127 = vmatprep.mubr.f32.mxu0 0.0
      %1128 = vmatmul.mubr.f32.gmra.mxu0 %v1034
      %v1129 = vpop.f32.mrf.mxu0
      %v1130 = vadd.f32 0.0, %v1129
      %v1131 = vpop.f32.mrf.mxu0
      %1132 = vmatprep.mubr.f32.mxu0 0.0
      %1133 = vmatmul.mubr.f32.gmra.mxu0 %v1037
      %v1134 = vpop.f32.mrf.mxu0
      %v1135 = vadd.f32 0.0, %v1134
      %v1136 = vpop.f32.mrf.mxu0
      %1137 = vmatprep.mubr.f32.mxu0 0.0
      %1138 = vmatmul.mubr.f32.gmra.mxu0 %v1040
      %v1139 = vpop.f32.mrf.mxu0
      %v1140 = vadd.f32 0.0, %v1139
      %v1141 = vpop.f32.mrf.mxu0
      %1142 = vmatprep.mubr.f32.mxu0 0.0
      %1143 = vmatmul.mubr.f32.gmra.mxu0 %v1043
      %v1144 = vpop.f32.mrf.mxu0
      %v1145 = vadd.f32 0.0, %v1144
      %v1146 = vpop.f32.mrf.mxu0
      %1147 = vmatprep.mubr.f32.mxu0 0.0
      %1148 = vmatmul.mubr.f32.gmra.mxu0 %v1046
      %v1149 = vpop.f32.mrf.mxu0
      %v1150 = vadd.f32 0.0, %v1149
      %v1151 = vpop.f32.mrf.mxu0
      %1152 = vdwg.mxu0
      %1153 = vmatprep.subr.mxu0 0.0
      %1154 = vmatpush1.msra.mxu0 0.0
      %1155 = vmatprep.subr.mxu0 0.0
      %1156 = vmatpush1.msra.mxu0 0.0
      %1157 = vmatprep.subr.mxu0 0.0
      %1158 = vmatpush1.msra.mxu0 0.0
      %1159 = vmatprep.subr.mxu0 0.0
      %1160 = vmatpush1.msra.mxu0 0.0
      %1161 = vmatprep.subr.mxu0 0.0
      %1162 = vmatpush1.msra.mxu0 0.0
      %1163 = vmatprep.subr.mxu0 0.0
      %1164 = vmatpush1.msra.mxu0 0.0
      %1165 = vmatprep.subr.mxu0 0.0
      %1166 = vmatpush1.msra.mxu0 0.0
      %1167 = vmatprep.subr.mxu0 0.0
      %1168 = vmatpush1.msra.mxu0 0.0
      %1169 = vmatprep.subr.mxu0 0.0
      %1170 = vmatpush1.msra.mxu0 0.0
      %1171 = vmatprep.subr.mxu0 0.0
      %1172 = vmatpush1.msra.mxu0 0.0
      %1173 = vmatprep.subr.mxu0 0.0
      %1174 = vmatpush1.msra.mxu0 0.0
      %1175 = vmatprep.subr.mxu0 0.0
      %1176 = vmatpush1.msra.mxu0 0.0
      %1177 = vmatprep.subr.mxu0 0.0
      %1178 = vmatpush1.msra.mxu0 %v1010
      %1179 = vmatprep.subr.mxu0 0.0
      %1180 = vmatpush1.msra.mxu0 %v1009
      %1181 = vmatprep.subr.mxu0 0.0
      %1182 = vmatpush1.msra.mxu0 %v1008
      %1183 = vmatprep.subr.mxu0 0.0
      %1184 = vmatpush1.msra.mxu0 %v1007
      %1185 = vmatprep.subr.mxu0 0.0
      %1186 = vmatpush2.msra.mxu0 0.0
      %1187 = vmatprep.subr.mxu0 0.0
      %1188 = vmatpush2.msra.mxu0 0.0
      %1189 = vmatprep.subr.mxu0 0.0
      %1190 = vmatpush2.msra.mxu0 0.0
      %1191 = vmatprep.subr.mxu0 0.0
      %1192 = vmatpush2.msra.mxu0 0.0
      %1193 = vmatprep.subr.mxu0 0.0
      %1194 = vmatpush2.msra.mxu0 0.0
      %1195 = vmatprep.subr.mxu0 0.0
      %1196 = vmatpush2.msra.mxu0 0.0
      %1197 = vmatprep.subr.mxu0 0.0
      %1198 = vmatpush2.msra.mxu0 0.0
      %1199 = vmatprep.subr.mxu0 0.0
      %1200 = vmatpush2.msra.mxu0 0.0
      %1201 = vmatprep.subr.mxu0 0.0
      %1202 = vmatpush2.msra.mxu0 0.0
      %1203 = vmatprep.subr.mxu0 0.0
      %1204 = vmatpush2.msra.mxu0 0.0
      %1205 = vmatprep.subr.mxu0 0.0
      %1206 = vmatpush2.msra.mxu0 0.0
      %1207 = vmatprep.subr.mxu0 0.0
      %1208 = vmatpush2.msra.mxu0 0.0
      %1209 = vmatprep.subr.mxu0 0.0
      %1210 = vmatpush2.msra.mxu0 0.0
      %1211 = vmatprep.subr.mxu0 0.0
      %1212 = vmatpush2.msra.mxu0 0.0
      %1213 = vmatprep.subr.mxu0 0.0
      %1214 = vmatpush2.msra.mxu0 0.0
      %1215 = vmatprep.subr.mxu0 0.0
      %1216 = vmatpush2.msra.mxu0 0.0
      %1217 = vmatprep.mubr.f32.mxu0 0.0
      %1218 = vmatmul.mubr.f32.gmra.mxu0 %v435
      %v1219 = vpop.f32.mrf.mxu0
      %v1220 = vadd.f32 %v1115, %v1219
      %v1221 = vpop.f32.mrf.mxu0
      %1222 = vmatprep.mubr.f32.mxu0 0.0
      %1223 = vmatmul.mubr.f32.gmra.mxu0 %v438
      %v1224 = vpop.f32.mrf.mxu0
      %v1225 = vadd.f32 %v1120, %v1224
      %v1226 = vpop.f32.mrf.mxu0
      %1227 = vmatprep.mubr.f32.mxu0 0.0
      %1228 = vmatmul.mubr.f32.gmra.mxu0 %v441
      %v1229 = vpop.f32.mrf.mxu0
      %v1230 = vadd.f32 %v1125, %v1229
      %v1231 = vpop.f32.mrf.mxu0
      %1232 = vmatprep.mubr.f32.mxu0 0.0
      %1233 = vmatmul.mubr.f32.gmra.mxu0 %v444
      %v1234 = vpop.f32.mrf.mxu0
      %v1235 = vadd.f32 %v1130, %v1234
      %v1236 = vpop.f32.mrf.mxu0
      %1237 = vmatprep.mubr.f32.mxu0 0.0
      %1238 = vmatmul.mubr.f32.gmra.mxu0 %v447
      %v1239 = vpop.f32.mrf.mxu0
      %v1240 = vadd.f32 %v1135, %v1239
      %v1241 = vpop.f32.mrf.mxu0
      %1242 = vmatprep.mubr.f32.mxu0 0.0
      %1243 = vmatmul.mubr.f32.gmra.mxu0 %v450
      %v1244 = vpop.f32.mrf.mxu0
      %v1245 = vadd.f32 %v1140, %v1244
      %v1246 = vpop.f32.mrf.mxu0
      %1247 = vmatprep.mubr.f32.mxu0 0.0
      %1248 = vmatmul.mubr.f32.gmra.mxu0 %v453
      %v1249 = vpop.f32.mrf.mxu0
      %v1250 = vadd.f32 %v1145, %v1249
      %v1251 = vpop.f32.mrf.mxu0
      %1252 = vmatprep.mubr.f32.mxu0 0.0
      %1253 = vmatmul.mubr.f32.gmra.mxu0 %v456
      %v1254 = vpop.f32.mrf.mxu0
      %v1255 = vadd.f32 %v1150, %v1254
      %v1256 = vpop.f32.mrf.mxu0
      %1257 = vdwg.mxu0
      %s1258 = scalar_lea.vmem %s3, 192
      %v1259 = vld [vmem:[%s1258] sm:$0xff]
      %v1260 = vld [vmem:[%s1258 + $0x8] sm:$0xff]
      %v1261 = vld [vmem:[%s1258 + $0x10] sm:$0xff]
      %v1262 = vld [vmem:[%s1258 + $0x18] sm:$0xff]
      %1263 = vmatprep.subr.mxu0 0.0
      %1264 = vmatpush1.msra.mxu0 0.0
      %1265 = vmatprep.subr.mxu0 0.0
      %1266 = vmatpush1.msra.mxu0 0.0
      %1267 = vmatprep.subr.mxu0 0.0
      %1268 = vmatpush1.msra.mxu0 0.0
      %1269 = vmatprep.subr.mxu0 0.0
      %1270 = vmatpush1.msra.mxu0 0.0
      %1271 = vmatprep.subr.mxu0 0.0
      %1272 = vmatpush1.msra.mxu0 0.0
      %1273 = vmatprep.subr.mxu0 0.0
      %1274 = vmatpush1.msra.mxu0 0.0
      %1275 = vmatprep.subr.mxu0 0.0
      %1276 = vmatpush1.msra.mxu0 0.0
      %1277 = vmatprep.subr.mxu0 0.0
      %1278 = vmatpush1.msra.mxu0 0.0
      %1279 = vmatprep.subr.mxu0 0.0
      %1280 = vmatpush1.msra.mxu0 0.0
      %1281 = vmatprep.subr.mxu0 0.0
      %1282 = vmatpush1.msra.mxu0 0.0
      %1283 = vmatprep.subr.mxu0 0.0
      %1284 = vmatpush1.msra.mxu0 0.0
      %1285 = vmatprep.subr.mxu0 0.0
      %1286 = vmatpush1.msra.mxu0 0.0
      %1287 = vmatprep.subr.mxu0 0.0
      %1288 = vmatpush1.msra.mxu0 %v1262
      %1289 = vmatprep.subr.mxu0 0.0
      %1290 = vmatpush1.msra.mxu0 %v1261
      %1291 = vmatprep.subr.mxu0 0.0
      %1292 = vmatpush1.msra.mxu0 %v1260
      %1293 = vmatprep.subr.mxu0 0.0
      %1294 = vmatpush1.msra.mxu0 %v1259
      %1295 = vmatprep.subr.mxu0 0.0
      %1296 = vmatpush2.msra.mxu0 0.0
      %1297 = vmatprep.subr.mxu0 0.0
      %1298 = vmatpush2.msra.mxu0 0.0
      %1299 = vmatprep.subr.mxu0 0.0
      %1300 = vmatpush2.msra.mxu0 0.0
      %1301 = vmatprep.subr.mxu0 0.0
      %1302 = vmatpush2.msra.mxu0 0.0
      %1303 = vmatprep.subr.mxu0 0.0
      %1304 = vmatpush2.msra.mxu0 0.0
      %1305 = vmatprep.subr.mxu0 0.0
      %1306 = vmatpush2.msra.mxu0 0.0
      %1307 = vmatprep.subr.mxu0 0.0
      %1308 = vmatpush2.msra.mxu0 0.0
      %1309 = vmatprep.subr.mxu0 0.0
      %1310 = vmatpush2.msra.mxu0 0.0
      %1311 = vmatprep.subr.mxu0 0.0
      %1312 = vmatpush2.msra.mxu0 0.0
      %1313 = vmatprep.subr.mxu0 0.0
      %1314 = vmatpush2.msra.mxu0 0.0
      %1315 = vmatprep.subr.mxu0 0.0
      %1316 = vmatpush2.msra.mxu0 0.0
      %1317 = vmatprep.subr.mxu0 0.0
      %1318 = vmatpush2.msra.mxu0 0.0
      %1319 = vmatprep.subr.mxu0 0.0
      %1320 = vmatpush2.msra.mxu0 0.0
      %1321 = vmatprep.subr.mxu0 0.0
      %1322 = vmatpush2.msra.mxu0 0.0
      %1323 = vmatprep.subr.mxu0 0.0
      %1324 = vmatpush2.msra.mxu0 0.0
      %1325 = vmatprep.subr.mxu0 0.0
      %1326 = vmatpush2.msra.mxu0 0.0
      %1327 = vmatprep.mubr.f32.mxu0 0.0
      %1328 = vmatmul.mubr.f32.gmra.mxu0 %v856
      %v1329 = vpop.f32.mrf.mxu0
      %v1330 = vadd.f32 0.0, %v1329
      %v1331 = vpop.f32.mrf.mxu0
      %1332 = vmatprep.mubr.f32.mxu0 0.0
      %1333 = vmatmul.mubr.f32.gmra.mxu0 %v859
      %v1334 = vpop.f32.mrf.mxu0
      %v1335 = vadd.f32 0.0, %v1334
      %v1336 = vpop.f32.mrf.mxu0
      %1337 = vmatprep.mubr.f32.mxu0 0.0
      %1338 = vmatmul.mubr.f32.gmra.mxu0 %v862
      %v1339 = vpop.f32.mrf.mxu0
      %v1340 = vadd.f32 0.0, %v1339
      %v1341 = vpop.f32.mrf.mxu0
      %1342 = vmatprep.mubr.f32.mxu0 0.0
      %1343 = vmatmul.mubr.f32.gmra.mxu0 %v865
      %v1344 = vpop.f32.mrf.mxu0
      %v1345 = vadd.f32 0.0, %v1344
      %v1346 = vpop.f32.mrf.mxu0
      %1347 = vmatprep.mubr.f32.mxu0 0.0
      %1348 = vmatmul.mubr.f32.gmra.mxu0 %v868
      %v1349 = vpop.f32.mrf.mxu0
      %v1350 = vadd.f32 0.0, %v1349
      %v1351 = vpop.f32.mrf.mxu0
      %1352 = vmatprep.mubr.f32.mxu0 0.0
      %1353 = vmatmul.mubr.f32.gmra.mxu0 %v871
      %v1354 = vpop.f32.mrf.mxu0
      %v1355 = vadd.f32 0.0, %v1354
      %v1356 = vpop.f32.mrf.mxu0
      %1357 = vmatprep.mubr.f32.mxu0 0.0
      %1358 = vmatmul.mubr.f32.gmra.mxu0 %v874
      %v1359 = vpop.f32.mrf.mxu0
      %v1360 = vadd.f32 0.0, %v1359
      %v1361 = vpop.f32.mrf.mxu0
      %1362 = vmatprep.mubr.f32.mxu0 0.0
      %1363 = vmatmul.mubr.f32.gmra.mxu0 %v877
      %v1364 = vpop.f32.mrf.mxu0
      %v1365 = vadd.f32 0.0, %v1364
      %v1366 = vpop.f32.mrf.mxu0
      %1367 = vdwg.mxu0
      %v1368 = vadd.f32 %v1220, %v1330
      %v1369 = vadd.f32 %v1225, %v1335
      %v1370 = vadd.f32 %v1230, %v1340
      %v1371 = vadd.f32 %v1235, %v1345
      %v1372 = vadd.f32 %v1240, %v1350
      %v1373 = vadd.f32 %v1245, %v1355
      %v1374 = vadd.f32 %v1250, %v1360
      %v1375 = vadd.f32 %v1255, %v1365
      %v1376 = vld [vmem:[%s399 + $0x2] sm:$0xff]
      %v1377 = vld [vmem:[%s399 + $0x12] sm:$0xff]
      %v1378 = vld [vmem:[%s399 + $0x22] sm:$0xff]
      %v1379 = vld [vmem:[%s399 + $0x32] sm:$0xff]
      %v1380 = vld [vmem:[%s399 + $0x42] sm:$0xff]
      %v1381 = vld [vmem:[%s399 + $0x52] sm:$0xff]
      %v1382 = vld [vmem:[%s399 + $0x62] sm:$0xff]
      %v1383 = vld [vmem:[%s399 + $0x72] sm:$0xff]
      %s1384 = scalar_lea.vmem %s3, 224
      %v1385 = vld [vmem:[%s1384] sm:$0xff]
      %v1386 = vld [vmem:[%s1384 + $0x8] sm:$0xff]
      %v1387 = vld [vmem:[%s1384 + $0x10] sm:$0xff]
      %v1388 = vld [vmem:[%s1384 + $0x18] sm:$0xff]
      %v1390 = vsel %vm371, %v1376, 0
      %v1393 = vsel %vm371, %v1377, 0
      %v1396 = vsel %vm371, %v1378, 0
      %v1399 = vsel %vm371, %v1379, 0
      %v1402 = vsel %vm371, %v1380, 0
      %v1405 = vsel %vm371, %v1381, 0
      %v1408 = vsel %vm371, %v1382, 0
      %v1411 = vsel %vm371, %v1383, 0
      %1413 = vmatprep.subr.mxu0 0.0
      %1414 = vmatpush1.msra.mxu0 0.0
      %1415 = vmatprep.subr.mxu0 0.0
      %1416 = vmatpush1.msra.mxu0 0.0
      %1417 = vmatprep.subr.mxu0 0.0
      %1418 = vmatpush1.msra.mxu0 0.0
      %1419 = vmatprep.subr.mxu0 0.0
      %1420 = vmatpush1.msra.mxu0 0.0
      %1421 = vmatprep.subr.mxu0 0.0
      %1422 = vmatpush1.msra.mxu0 0.0
      %1423 = vmatprep.subr.mxu0 0.0
      %1424 = vmatpush1.msra.mxu0 0.0
      %1425 = vmatprep.subr.mxu0 0.0
      %1426 = vmatpush1.msra.mxu0 0.0
      %1427 = vmatprep.subr.mxu0 0.0
      %1428 = vmatpush1.msra.mxu0 0.0
      %1429 = vmatprep.subr.mxu0 0.0
      %1430 = vmatpush1.msra.mxu0 0.0
      %1431 = vmatprep.subr.mxu0 0.0
      %1432 = vmatpush1.msra.mxu0 0.0
      %1433 = vmatprep.subr.mxu0 0.0
      %1434 = vmatpush1.msra.mxu0 0.0
      %1435 = vmatprep.subr.mxu0 0.0
      %1436 = vmatpush1.msra.mxu0 0.0
      %1437 = vmatprep.subr.mxu0 0.0
      %1438 = vmatpush1.msra.mxu0 %v1388
      %1439 = vmatprep.subr.mxu0 0.0
      %1440 = vmatpush1.msra.mxu0 %v1387
      %1441 = vmatprep.subr.mxu0 0.0
      %1442 = vmatpush1.msra.mxu0 %v1386
      %1443 = vmatprep.subr.mxu0 0.0
      %1444 = vmatpush1.msra.mxu0 %v1385
      %1445 = vmatprep.subr.mxu0 0.0
      %1446 = vmatpush2.msra.mxu0 0.0
      %1447 = vmatprep.subr.mxu0 0.0
      %1448 = vmatpush2.msra.mxu0 0.0
      %1449 = vmatprep.subr.mxu0 0.0
      %1450 = vmatpush2.msra.mxu0 0.0
      %1451 = vmatprep.subr.mxu0 0.0
      %1452 = vmatpush2.msra.mxu0 0.0
      %1453 = vmatprep.subr.mxu0 0.0
      %1454 = vmatpush2.msra.mxu0 0.0
      %1455 = vmatprep.subr.mxu0 0.0
      %1456 = vmatpush2.msra.mxu0 0.0
      %1457 = vmatprep.subr.mxu0 0.0
      %1458 = vmatpush2.msra.mxu0 0.0
      %1459 = vmatprep.subr.mxu0 0.0
      %1460 = vmatpush2.msra.mxu0 0.0
      %1461 = vmatprep.subr.mxu0 0.0
      %1462 = vmatpush2.msra.mxu0 0.0
      %1463 = vmatprep.subr.mxu0 0.0
      %1464 = vmatpush2.msra.mxu0 0.0
      %1465 = vmatprep.subr.mxu0 0.0
      %1466 = vmatpush2.msra.mxu0 0.0
      %1467 = vmatprep.subr.mxu0 0.0
      %1468 = vmatpush2.msra.mxu0 0.0
      %1469 = vmatprep.subr.mxu0 0.0
      %1470 = vmatpush2.msra.mxu0 0.0
      %1471 = vmatprep.subr.mxu0 0.0
      %1472 = vmatpush2.msra.mxu0 0.0
      %1473 = vmatprep.subr.mxu0 0.0
      %1474 = vmatpush2.msra.mxu0 0.0
      %1475 = vmatprep.subr.mxu0 0.0
      %1476 = vmatpush2.msra.mxu0 0.0
      %1477 = vmatprep.mubr.f32.mxu0 0.0
      %1478 = vmatmul.mubr.f32.gmra.mxu0 %v1390
      %v1479 = vpop.f32.mrf.mxu0
      %v1480 = vadd.f32 0.0, %v1479
      %v1481 = vpop.f32.mrf.mxu0
      %1482 = vmatprep.mubr.f32.mxu0 0.0
      %1483 = vmatmul.mubr.f32.gmra.mxu0 %v1393
      %v1484 = vpop.f32.mrf.mxu0
      %v1485 = vadd.f32 0.0, %v1484
      %v1486 = vpop.f32.mrf.mxu0
      %1487 = vmatprep.mubr.f32.mxu0 0.0
      %1488 = vmatmul.mubr.f32.gmra.mxu0 %v1396
      %v1489 = vpop.f32.mrf.mxu0
      %v1490 = vadd.f32 0.0, %v1489
      %v1491 = vpop.f32.mrf.mxu0
      %1492 = vmatprep.mubr.f32.mxu0 0.0
      %1493 = vmatmul.mubr.f32.gmra.mxu0 %v1399
      %v1494 = vpop.f32.mrf.mxu0
      %v1495 = vadd.f32 0.0, %v1494
      %v1496 = vpop.f32.mrf.mxu0
      %1497 = vmatprep.mubr.f32.mxu0 0.0
      %1498 = vmatmul.mubr.f32.gmra.mxu0 %v1402
      %v1499 = vpop.f32.mrf.mxu0
      %v1500 = vadd.f32 0.0, %v1499
      %v1501 = vpop.f32.mrf.mxu0
      %1502 = vmatprep.mubr.f32.mxu0 0.0
      %1503 = vmatmul.mubr.f32.gmra.mxu0 %v1405
      %v1504 = vpop.f32.mrf.mxu0
      %v1505 = vadd.f32 0.0, %v1504
      %v1506 = vpop.f32.mrf.mxu0
      %1507 = vmatprep.mubr.f32.mxu0 0.0
      %1508 = vmatmul.mubr.f32.gmra.mxu0 %v1408
      %v1509 = vpop.f32.mrf.mxu0
      %v1510 = vadd.f32 0.0, %v1509
      %v1511 = vpop.f32.mrf.mxu0
      %1512 = vmatprep.mubr.f32.mxu0 0.0
      %1513 = vmatmul.mubr.f32.gmra.mxu0 %v1411
      %v1514 = vpop.f32.mrf.mxu0
      %v1515 = vadd.f32 0.0, %v1514
      %v1516 = vpop.f32.mrf.mxu0
      %1517 = vdwg.mxu0
      %v1518 = vadd.f32 %v1368, %v1480
      %v1519 = vadd.f32 %v1369, %v1485
      %v1520 = vadd.f32 %v1370, %v1490
      %v1521 = vadd.f32 %v1371, %v1495
      %v1522 = vadd.f32 %v1372, %v1500
      %v1523 = vadd.f32 %v1373, %v1505
      %v1524 = vadd.f32 %v1374, %v1510
      %v1525 = vadd.f32 %v1375, %v1515
      %v1526 = vadd.f32 %v1518, %v996
      %v1527 = vadd.f32 %v1519, %v996
      %v1528 = vadd.f32 %v1520, %v996
      %v1529 = vadd.f32 %v1521, %v996
      %v1530 = vadd.f32 %v1522, %v996
      %v1531 = vadd.f32 %v1523, %v996
      %v1532 = vadd.f32 %v1524, %v996
      %v1533 = vadd.f32 %v1525, %v996
      %s1534 = scalar_lea.vmem %s3, 256
      %v1535 = vld [vmem:[%s1534] sm:$0xff]
      %v1536 = vld [vmem:[%s1534 + $0x8] sm:$0xff]
      %v1537 = vld [vmem:[%s1534 + $0x10] sm:$0xff]
      %v1538 = vld [vmem:[%s1534 + $0x18] sm:$0xff]
      %s1539 = scalar_lea.vmem %s3, 288
      %v1540 = vld [vmem:[%s1539] sm:$0xff]
      %v1541 = vld [vmem:[%s1539 + $0x8] sm:$0xff]
      %v1542 = vld [vmem:[%s1539 + $0x10] sm:$0xff]
      %v1543 = vld [vmem:[%s1539 + $0x18] sm:$0xff]
      %1544 = vmatprep.subr.mxu0 0.0
      %1545 = vmatpush1.msra.mxu0 0.0
      %1546 = vmatprep.subr.mxu0 0.0
      %1547 = vmatpush1.msra.mxu0 0.0
      %1548 = vmatprep.subr.mxu0 0.0
      %1549 = vmatpush1.msra.mxu0 0.0
      %1550 = vmatprep.subr.mxu0 0.0
      %1551 = vmatpush1.msra.mxu0 0.0
      %1552 = vmatprep.subr.mxu0 0.0
      %1553 = vmatpush1.msra.mxu0 0.0
      %1554 = vmatprep.subr.mxu0 0.0
      %1555 = vmatpush1.msra.mxu0 0.0
      %1556 = vmatprep.subr.mxu0 0.0
      %1557 = vmatpush1.msra.mxu0 0.0
      %1558 = vmatprep.subr.mxu0 0.0
      %1559 = vmatpush1.msra.mxu0 0.0
      %1560 = vmatprep.subr.mxu0 0.0
      %1561 = vmatpush1.msra.mxu0 0.0
      %1562 = vmatprep.subr.mxu0 0.0
      %1563 = vmatpush1.msra.mxu0 0.0
      %1564 = vmatprep.subr.mxu0 0.0
      %1565 = vmatpush1.msra.mxu0 0.0
      %1566 = vmatprep.subr.mxu0 0.0
      %1567 = vmatpush1.msra.mxu0 0.0
      %1568 = vmatprep.subr.mxu0 0.0
      %1569 = vmatpush1.msra.mxu0 %v1543
      %1570 = vmatprep.subr.mxu0 0.0
      %1571 = vmatpush1.msra.mxu0 %v1542
      %1572 = vmatprep.subr.mxu0 0.0
      %1573 = vmatpush1.msra.mxu0 %v1541
      %1574 = vmatprep.subr.mxu0 0.0
      %1575 = vmatpush1.msra.mxu0 %v1540
      %1576 = vmatprep.subr.mxu0 0.0
      %1577 = vmatpush2.msra.mxu0 0.0
      %1578 = vmatprep.subr.mxu0 0.0
      %1579 = vmatpush2.msra.mxu0 0.0
      %1580 = vmatprep.subr.mxu0 0.0
      %1581 = vmatpush2.msra.mxu0 0.0
      %1582 = vmatprep.subr.mxu0 0.0
      %1583 = vmatpush2.msra.mxu0 0.0
      %1584 = vmatprep.subr.mxu0 0.0
      %1585 = vmatpush2.msra.mxu0 0.0
      %1586 = vmatprep.subr.mxu0 0.0
      %1587 = vmatpush2.msra.mxu0 0.0
      %1588 = vmatprep.subr.mxu0 0.0
      %1589 = vmatpush2.msra.mxu0 0.0
      %1590 = vmatprep.subr.mxu0 0.0
      %1591 = vmatpush2.msra.mxu0 0.0
      %1592 = vmatprep.subr.mxu0 0.0
      %1593 = vmatpush2.msra.mxu0 0.0
      %1594 = vmatprep.subr.mxu0 0.0
      %1595 = vmatpush2.msra.mxu0 0.0
      %1596 = vmatprep.subr.mxu0 0.0
      %1597 = vmatpush2.msra.mxu0 0.0
      %1598 = vmatprep.subr.mxu0 0.0
      %1599 = vmatpush2.msra.mxu0 0.0
      %1600 = vmatprep.subr.mxu0 0.0
      %1601 = vmatpush2.msra.mxu0 0.0
      %1602 = vmatprep.subr.mxu0 0.0
      %1603 = vmatpush2.msra.mxu0 0.0
      %1604 = vmatprep.subr.mxu0 0.0
      %1605 = vmatpush2.msra.mxu0 0.0
      %1606 = vmatprep.subr.mxu0 0.0
      %1607 = vmatpush2.msra.mxu0 0.0
      %1608 = vmatprep.mubr.f32.mxu0 0.0
      %1609 = vmatmul.mubr.f32.gmra.mxu0 %v856
      %v1610 = vpop.f32.mrf.mxu0
      %v1611 = vadd.f32 0.0, %v1610
      %v1612 = vpop.f32.mrf.mxu0
      %1613 = vmatprep.mubr.f32.mxu0 0.0
      %1614 = vmatmul.mubr.f32.gmra.mxu0 %v859
      %v1615 = vpop.f32.mrf.mxu0
      %v1616 = vadd.f32 0.0, %v1615
      %v1617 = vpop.f32.mrf.mxu0
      %1618 = vmatprep.mubr.f32.mxu0 0.0
      %1619 = vmatmul.mubr.f32.gmra.mxu0 %v862
      %v1620 = vpop.f32.mrf.mxu0
      %v1621 = vadd.f32 0.0, %v1620
      %v1622 = vpop.f32.mrf.mxu0
      %1623 = vmatprep.mubr.f32.mxu0 0.0
      %1624 = vmatmul.mubr.f32.gmra.mxu0 %v865
      %v1625 = vpop.f32.mrf.mxu0
      %v1626 = vadd.f32 0.0, %v1625
      %v1627 = vpop.f32.mrf.mxu0
      %1628 = vmatprep.mubr.f32.mxu0 0.0
      %1629 = vmatmul.mubr.f32.gmra.mxu0 %v868
      %v1630 = vpop.f32.mrf.mxu0
      %v1631 = vadd.f32 0.0, %v1630
      %v1632 = vpop.f32.mrf.mxu0
      %1633 = vmatprep.mubr.f32.mxu0 0.0
      %1634 = vmatmul.mubr.f32.gmra.mxu0 %v871
      %v1635 = vpop.f32.mrf.mxu0
      %v1636 = vadd.f32 0.0, %v1635
      %v1637 = vpop.f32.mrf.mxu0
      %1638 = vmatprep.mubr.f32.mxu0 0.0
      %1639 = vmatmul.mubr.f32.gmra.mxu0 %v874
      %v1640 = vpop.f32.mrf.mxu0
      %v1641 = vadd.f32 0.0, %v1640
      %v1642 = vpop.f32.mrf.mxu0
      %1643 = vmatprep.mubr.f32.mxu0 0.0
      %1644 = vmatmul.mubr.f32.gmra.mxu0 %v877
      %v1645 = vpop.f32.mrf.mxu0
      %v1646 = vadd.f32 0.0, %v1645
      %v1647 = vpop.f32.mrf.mxu0
      %1648 = vdwg.mxu0
      %1649 = vmatprep.subr.mxu0 0.0
      %1650 = vmatpush1.msra.mxu0 0.0
      %1651 = vmatprep.subr.mxu0 0.0
      %1652 = vmatpush1.msra.mxu0 0.0
      %1653 = vmatprep.subr.mxu0 0.0
      %1654 = vmatpush1.msra.mxu0 0.0
      %1655 = vmatprep.subr.mxu0 0.0
      %1656 = vmatpush1.msra.mxu0 0.0
      %1657 = vmatprep.subr.mxu0 0.0
      %1658 = vmatpush1.msra.mxu0 0.0
      %1659 = vmatprep.subr.mxu0 0.0
      %1660 = vmatpush1.msra.mxu0 0.0
      %1661 = vmatprep.subr.mxu0 0.0
      %1662 = vmatpush1.msra.mxu0 0.0
      %1663 = vmatprep.subr.mxu0 0.0
      %1664 = vmatpush1.msra.mxu0 0.0
      %1665 = vmatprep.subr.mxu0 0.0
      %1666 = vmatpush1.msra.mxu0 0.0
      %1667 = vmatprep.subr.mxu0 0.0
      %1668 = vmatpush1.msra.mxu0 0.0
      %1669 = vmatprep.subr.mxu0 0.0
      %1670 = vmatpush1.msra.mxu0 0.0
      %1671 = vmatprep.subr.mxu0 0.0
      %1672 = vmatpush1.msra.mxu0 0.0
      %1673 = vmatprep.subr.mxu0 0.0
      %1674 = vmatpush1.msra.mxu0 %v1538
      %1675 = vmatprep.subr.mxu0 0.0
      %1676 = vmatpush1.msra.mxu0 %v1537
      %1677 = vmatprep.subr.mxu0 0.0
      %1678 = vmatpush1.msra.mxu0 %v1536
      %1679 = vmatprep.subr.mxu0 0.0
      %1680 = vmatpush1.msra.mxu0 %v1535
      %1681 = vmatprep.subr.mxu0 0.0
      %1682 = vmatpush2.msra.mxu0 0.0
      %1683 = vmatprep.subr.mxu0 0.0
      %1684 = vmatpush2.msra.mxu0 0.0
      %1685 = vmatprep.subr.mxu0 0.0
      %1686 = vmatpush2.msra.mxu0 0.0
      %1687 = vmatprep.subr.mxu0 0.0
      %1688 = vmatpush2.msra.mxu0 0.0
      %1689 = vmatprep.subr.mxu0 0.0
      %1690 = vmatpush2.msra.mxu0 0.0
      %1691 = vmatprep.subr.mxu0 0.0
      %1692 = vmatpush2.msra.mxu0 0.0
      %1693 = vmatprep.subr.mxu0 0.0
      %1694 = vmatpush2.msra.mxu0 0.0
      %1695 = vmatprep.subr.mxu0 0.0
      %1696 = vmatpush2.msra.mxu0 0.0
      %1697 = vmatprep.subr.mxu0 0.0
      %1698 = vmatpush2.msra.mxu0 0.0
      %1699 = vmatprep.subr.mxu0 0.0
      %1700 = vmatpush2.msra.mxu0 0.0
      %1701 = vmatprep.subr.mxu0 0.0
      %1702 = vmatpush2.msra.mxu0 0.0
      %1703 = vmatprep.subr.mxu0 0.0
      %1704 = vmatpush2.msra.mxu0 0.0
      %1705 = vmatprep.subr.mxu0 0.0
      %1706 = vmatpush2.msra.mxu0 0.0
      %1707 = vmatprep.subr.mxu0 0.0
      %1708 = vmatpush2.msra.mxu0 0.0
      %1709 = vmatprep.subr.mxu0 0.0
      %1710 = vmatpush2.msra.mxu0 0.0
      %1711 = vmatprep.subr.mxu0 0.0
      %1712 = vmatpush2.msra.mxu0 0.0
      %1713 = vmatprep.mubr.f32.mxu0 0.0
      %1714 = vmatmul.mubr.f32.gmra.mxu0 %v706
      %v1715 = vpop.f32.mrf.mxu0
      %v1716 = vadd.f32 %v1611, %v1715
      %v1717 = vpop.f32.mrf.mxu0
      %1718 = vmatprep.mubr.f32.mxu0 0.0
      %1719 = vmatmul.mubr.f32.gmra.mxu0 %v709
      %v1720 = vpop.f32.mrf.mxu0
      %v1721 = vadd.f32 %v1616, %v1720
      %v1722 = vpop.f32.mrf.mxu0
      %1723 = vmatprep.mubr.f32.mxu0 0.0
      %1724 = vmatmul.mubr.f32.gmra.mxu0 %v712
      %v1725 = vpop.f32.mrf.mxu0
      %v1726 = vadd.f32 %v1621, %v1725
      %v1727 = vpop.f32.mrf.mxu0
      %1728 = vmatprep.mubr.f32.mxu0 0.0
      %1729 = vmatmul.mubr.f32.gmra.mxu0 %v715
      %v1730 = vpop.f32.mrf.mxu0
      %v1731 = vadd.f32 %v1626, %v1730
      %v1732 = vpop.f32.mrf.mxu0
      %1733 = vmatprep.mubr.f32.mxu0 0.0
      %1734 = vmatmul.mubr.f32.gmra.mxu0 %v718
      %v1735 = vpop.f32.mrf.mxu0
      %v1736 = vadd.f32 %v1631, %v1735
      %v1737 = vpop.f32.mrf.mxu0
      %1738 = vmatprep.mubr.f32.mxu0 0.0
      %1739 = vmatmul.mubr.f32.gmra.mxu0 %v721
      %v1740 = vpop.f32.mrf.mxu0
      %v1741 = vadd.f32 %v1636, %v1740
      %v1742 = vpop.f32.mrf.mxu0
      %1743 = vmatprep.mubr.f32.mxu0 0.0
      %1744 = vmatmul.mubr.f32.gmra.mxu0 %v724
      %v1745 = vpop.f32.mrf.mxu0
      %v1746 = vadd.f32 %v1641, %v1745
      %v1747 = vpop.f32.mrf.mxu0
      %1748 = vmatprep.mubr.f32.mxu0 0.0
      %1749 = vmatmul.mubr.f32.gmra.mxu0 %v727
      %v1750 = vpop.f32.mrf.mxu0
      %v1751 = vadd.f32 %v1646, %v1750
      %v1752 = vpop.f32.mrf.mxu0
      %1753 = vdwg.mxu0
      %s1754 = scalar_lea.vmem [#allocation2], 32
      %v1755 = vld [vmem:[%s1754] sm:$0xff]
      %v1756 = vld [vmem:[%s1754 + $0x10] sm:$0xff]
      %v1757 = vld [vmem:[%s1754 + $0x20] sm:$0xff]
      %v1758 = vld [vmem:[%s1754 + $0x30] sm:$0xff]
      %v1759 = vld [vmem:[%s1754 + $0x40] sm:$0xff]
      %v1760 = vld [vmem:[%s1754 + $0x50] sm:$0xff]
      %v1761 = vld [vmem:[%s1754 + $0x60] sm:$0xff]
      %v1762 = vld [vmem:[%s1754 + $0x70] sm:$0xff]
      %s1763 = scalar_lea.vmem %s3, 320
      %v1764 = vld [vmem:[%s1763] sm:$0xff]
      %v1765 = vld [vmem:[%s1763 + $0x8] sm:$0xff]
      %v1766 = vld [vmem:[%s1763 + $0x10] sm:$0xff]
      %v1767 = vld [vmem:[%s1763 + $0x18] sm:$0xff]
      %v1769 = vsel %vm371, %v1755, 0
      %v1772 = vsel %vm371, %v1756, 0
      %v1775 = vsel %vm371, %v1757, 0
      %v1778 = vsel %vm371, %v1758, 0
      %v1781 = vsel %vm371, %v1759, 0
      %v1784 = vsel %vm371, %v1760, 0
      %v1787 = vsel %vm371, %v1761, 0
      %v1790 = vsel %vm371, %v1762, 0
      %1792 = vmatprep.subr.mxu0 0.0
      %1793 = vmatpush1.msra.mxu0 0.0
      %1794 = vmatprep.subr.mxu0 0.0
      %1795 = vmatpush1.msra.mxu0 0.0
      %1796 = vmatprep.subr.mxu0 0.0
      %1797 = vmatpush1.msra.mxu0 0.0
      %1798 = vmatprep.subr.mxu0 0.0
      %1799 = vmatpush1.msra.mxu0 0.0
      %1800 = vmatprep.subr.mxu0 0.0
      %1801 = vmatpush1.msra.mxu0 0.0
      %1802 = vmatprep.subr.mxu0 0.0
      %1803 = vmatpush1.msra.mxu0 0.0
      %1804 = vmatprep.subr.mxu0 0.0
      %1805 = vmatpush1.msra.mxu0 0.0
      %1806 = vmatprep.subr.mxu0 0.0
      %1807 = vmatpush1.msra.mxu0 0.0
      %1808 = vmatprep.subr.mxu0 0.0
      %1809 = vmatpush1.msra.mxu0 0.0
      %1810 = vmatprep.subr.mxu0 0.0
      %1811 = vmatpush1.msra.mxu0 0.0
      %1812 = vmatprep.subr.mxu0 0.0
      %1813 = vmatpush1.msra.mxu0 0.0
      %1814 = vmatprep.subr.mxu0 0.0
      %1815 = vmatpush1.msra.mxu0 0.0
      %1816 = vmatprep.subr.mxu0 0.0
      %1817 = vmatpush1.msra.mxu0 %v1767
      %1818 = vmatprep.subr.mxu0 0.0
      %1819 = vmatpush1.msra.mxu0 %v1766
      %1820 = vmatprep.subr.mxu0 0.0
      %1821 = vmatpush1.msra.mxu0 %v1765
      %1822 = vmatprep.subr.mxu0 0.0
      %1823 = vmatpush1.msra.mxu0 %v1764
      %1824 = vmatprep.subr.mxu0 0.0
      %1825 = vmatpush2.msra.mxu0 0.0
      %1826 = vmatprep.subr.mxu0 0.0
      %1827 = vmatpush2.msra.mxu0 0.0
      %1828 = vmatprep.subr.mxu0 0.0
      %1829 = vmatpush2.msra.mxu0 0.0
      %1830 = vmatprep.subr.mxu0 0.0
      %1831 = vmatpush2.msra.mxu0 0.0
      %1832 = vmatprep.subr.mxu0 0.0
      %1833 = vmatpush2.msra.mxu0 0.0
      %1834 = vmatprep.subr.mxu0 0.0
      %1835 = vmatpush2.msra.mxu0 0.0
      %1836 = vmatprep.subr.mxu0 0.0
      %1837 = vmatpush2.msra.mxu0 0.0
      %1838 = vmatprep.subr.mxu0 0.0
      %1839 = vmatpush2.msra.mxu0 0.0
      %1840 = vmatprep.subr.mxu0 0.0
      %1841 = vmatpush2.msra.mxu0 0.0
      %1842 = vmatprep.subr.mxu0 0.0
      %1843 = vmatpush2.msra.mxu0 0.0
      %1844 = vmatprep.subr.mxu0 0.0
      %1845 = vmatpush2.msra.mxu0 0.0
      %1846 = vmatprep.subr.mxu0 0.0
      %1847 = vmatpush2.msra.mxu0 0.0
      %1848 = vmatprep.subr.mxu0 0.0
      %1849 = vmatpush2.msra.mxu0 0.0
      %1850 = vmatprep.subr.mxu0 0.0
      %1851 = vmatpush2.msra.mxu0 0.0
      %1852 = vmatprep.subr.mxu0 0.0
      %1853 = vmatpush2.msra.mxu0 0.0
      %1854 = vmatprep.subr.mxu0 0.0
      %1855 = vmatpush2.msra.mxu0 0.0
      %1856 = vmatprep.mubr.f32.mxu0 0.0
      %1857 = vmatmul.mubr.f32.gmra.mxu0 %v1769
      %v1858 = vpop.f32.mrf.mxu0
      %v1859 = vadd.f32 0.0, %v1858
      %v1860 = vpop.f32.mrf.mxu0
      %1861 = vmatprep.mubr.f32.mxu0 0.0
      %1862 = vmatmul.mubr.f32.gmra.mxu0 %v1772
      %v1863 = vpop.f32.mrf.mxu0
      %v1864 = vadd.f32 0.0, %v1863
      %v1865 = vpop.f32.mrf.mxu0
      %1866 = vmatprep.mubr.f32.mxu0 0.0
      %1867 = vmatmul.mubr.f32.gmra.mxu0 %v1775
      %v1868 = vpop.f32.mrf.mxu0
      %v1869 = vadd.f32 0.0, %v1868
      %v1870 = vpop.f32.mrf.mxu0
      %1871 = vmatprep.mubr.f32.mxu0 0.0
      %1872 = vmatmul.mubr.f32.gmra.mxu0 %v1778
      %v1873 = vpop.f32.mrf.mxu0
      %v1874 = vadd.f32 0.0, %v1873
      %v1875 = vpop.f32.mrf.mxu0
      %1876 = vmatprep.mubr.f32.mxu0 0.0
      %1877 = vmatmul.mubr.f32.gmra.mxu0 %v1781
      %v1878 = vpop.f32.mrf.mxu0
      %v1879 = vadd.f32 0.0, %v1878
      %v1880 = vpop.f32.mrf.mxu0
      %1881 = vmatprep.mubr.f32.mxu0 0.0
      %1882 = vmatmul.mubr.f32.gmra.mxu0 %v1784
      %v1883 = vpop.f32.mrf.mxu0
      %v1884 = vadd.f32 0.0, %v1883
      %v1885 = vpop.f32.mrf.mxu0
      %1886 = vmatprep.mubr.f32.mxu0 0.0
      %1887 = vmatmul.mubr.f32.gmra.mxu0 %v1787
      %v1888 = vpop.f32.mrf.mxu0
      %v1889 = vadd.f32 0.0, %v1888
      %v1890 = vpop.f32.mrf.mxu0
      %1891 = vmatprep.mubr.f32.mxu0 0.0
      %1892 = vmatmul.mubr.f32.gmra.mxu0 %v1790
      %v1893 = vpop.f32.mrf.mxu0
      %v1894 = vadd.f32 0.0, %v1893
      %v1895 = vpop.f32.mrf.mxu0
      %1896 = vdwg.mxu0
      %v1897 = vadd.f32 %v1716, %v1859
      %v1898 = vadd.f32 %v1721, %v1864
      %v1899 = vadd.f32 %v1726, %v1869
      %v1900 = vadd.f32 %v1731, %v1874
      %v1901 = vadd.f32 %v1736, %v1879
      %v1902 = vadd.f32 %v1741, %v1884
      %v1903 = vadd.f32 %v1746, %v1889
      %v1904 = vadd.f32 %v1751, %v1894
      %v1905 = vld [vmem:[%s1754 + $0x1] sm:$0xff]
      %v1906 = vld [vmem:[%s1754 + $0x11] sm:$0xff]
      %v1907 = vld [vmem:[%s1754 + $0x21] sm:$0xff]
      %v1908 = vld [vmem:[%s1754 + $0x31] sm:$0xff]
      %v1909 = vld [vmem:[%s1754 + $0x41] sm:$0xff]
      %v1910 = vld [vmem:[%s1754 + $0x51] sm:$0xff]
      %v1911 = vld [vmem:[%s1754 + $0x61] sm:$0xff]
      %v1912 = vld [vmem:[%s1754 + $0x71] sm:$0xff]
      %s1913 = scalar_lea.vmem %s3, 352
      %v1914 = vld [vmem:[%s1913] sm:$0xff]
      %v1915 = vld [vmem:[%s1913 + $0x8] sm:$0xff]
      %v1916 = vld [vmem:[%s1913 + $0x10] sm:$0xff]
      %v1917 = vld [vmem:[%s1913 + $0x18] sm:$0xff]
      %v1919 = vsel %vm371, %v1905, 0
      %v1922 = vsel %vm371, %v1906, 0
      %v1925 = vsel %vm371, %v1907, 0
      %v1928 = vsel %vm371, %v1908, 0
      %v1931 = vsel %vm371, %v1909, 0
      %v1934 = vsel %vm371, %v1910, 0
      %v1937 = vsel %vm371, %v1911, 0
      %v1940 = vsel %vm371, %v1912, 0
      %1942 = vmatprep.subr.mxu0 0.0
      %1943 = vmatpush1.msra.mxu0 0.0
      %1944 = vmatprep.subr.mxu0 0.0
      %1945 = vmatpush1.msra.mxu0 0.0
      %1946 = vmatprep.subr.mxu0 0.0
      %1947 = vmatpush1.msra.mxu0 0.0
      %1948 = vmatprep.subr.mxu0 0.0
      %1949 = vmatpush1.msra.mxu0 0.0
      %1950 = vmatprep.subr.mxu0 0.0
      %1951 = vmatpush1.msra.mxu0 0.0
      %1952 = vmatprep.subr.mxu0 0.0
      %1953 = vmatpush1.msra.mxu0 0.0
      %1954 = vmatprep.subr.mxu0 0.0
      %1955 = vmatpush1.msra.mxu0 0.0
      %1956 = vmatprep.subr.mxu0 0.0
      %1957 = vmatpush1.msra.mxu0 0.0
      %1958 = vmatprep.subr.mxu0 0.0
      %1959 = vmatpush1.msra.mxu0 0.0
      %1960 = vmatprep.subr.mxu0 0.0
      %1961 = vmatpush1.msra.mxu0 0.0
      %1962 = vmatprep.subr.mxu0 0.0
      %1963 = vmatpush1.msra.mxu0 0.0
      %1964 = vmatprep.subr.mxu0 0.0
      %1965 = vmatpush1.msra.mxu0 0.0
      %1966 = vmatprep.subr.mxu0 0.0
      %1967 = vmatpush1.msra.mxu0 %v1917
      %1968 = vmatprep.subr.mxu0 0.0
      %1969 = vmatpush1.msra.mxu0 %v1916
      %1970 = vmatprep.subr.mxu0 0.0
      %1971 = vmatpush1.msra.mxu0 %v1915
      %1972 = vmatprep.subr.mxu0 0.0
      %1973 = vmatpush1.msra.mxu0 %v1914
      %1974 = vmatprep.subr.mxu0 0.0
      %1975 = vmatpush2.msra.mxu0 0.0
      %1976 = vmatprep.subr.mxu0 0.0
      %1977 = vmatpush2.msra.mxu0 0.0
      %1978 = vmatprep.subr.mxu0 0.0
      %1979 = vmatpush2.msra.mxu0 0.0
      %1980 = vmatprep.subr.mxu0 0.0
      %1981 = vmatpush2.msra.mxu0 0.0
      %1982 = vmatprep.subr.mxu0 0.0
      %1983 = vmatpush2.msra.mxu0 0.0
      %1984 = vmatprep.subr.mxu0 0.0
      %1985 = vmatpush2.msra.mxu0 0.0
      %1986 = vmatprep.subr.mxu0 0.0
      %1987 = vmatpush2.msra.mxu0 0.0
      %1988 = vmatprep.subr.mxu0 0.0
      %1989 = vmatpush2.msra.mxu0 0.0
      %1990 = vmatprep.subr.mxu0 0.0
      %1991 = vmatpush2.msra.mxu0 0.0
      %1992 = vmatprep.subr.mxu0 0.0
      %1993 = vmatpush2.msra.mxu0 0.0
      %1994 = vmatprep.subr.mxu0 0.0
      %1995 = vmatpush2.msra.mxu0 0.0
      %1996 = vmatprep.subr.mxu0 0.0
      %1997 = vmatpush2.msra.mxu0 0.0
      %1998 = vmatprep.subr.mxu0 0.0
      %1999 = vmatpush2.msra.mxu0 0.0
      %2000 = vmatprep.subr.mxu0 0.0
      %2001 = vmatpush2.msra.mxu0 0.0
      %2002 = vmatprep.subr.mxu0 0.0
      %2003 = vmatpush2.msra.mxu0 0.0
      %2004 = vmatprep.subr.mxu0 0.0
      %2005 = vmatpush2.msra.mxu0 0.0
      %2006 = vmatprep.mubr.f32.mxu0 0.0
      %2007 = vmatmul.mubr.f32.gmra.mxu0 %v1919
      %v2008 = vpop.f32.mrf.mxu0
      %v2009 = vadd.f32 0.0, %v2008
      %v2010 = vpop.f32.mrf.mxu0
      %2011 = vmatprep.mubr.f32.mxu0 0.0
      %2012 = vmatmul.mubr.f32.gmra.mxu0 %v1922
      %v2013 = vpop.f32.mrf.mxu0
      %v2014 = vadd.f32 0.0, %v2013
      %v2015 = vpop.f32.mrf.mxu0
      %2016 = vmatprep.mubr.f32.mxu0 0.0
      %2017 = vmatmul.mubr.f32.gmra.mxu0 %v1925
      %v2018 = vpop.f32.mrf.mxu0
      %v2019 = vadd.f32 0.0, %v2018
      %v2020 = vpop.f32.mrf.mxu0
      %2021 = vmatprep.mubr.f32.mxu0 0.0
      %2022 = vmatmul.mubr.f32.gmra.mxu0 %v1928
      %v2023 = vpop.f32.mrf.mxu0
      %v2024 = vadd.f32 0.0, %v2023
      %v2025 = vpop.f32.mrf.mxu0
      %2026 = vmatprep.mubr.f32.mxu0 0.0
      %2027 = vmatmul.mubr.f32.gmra.mxu0 %v1931
      %v2028 = vpop.f32.mrf.mxu0
      %v2029 = vadd.f32 0.0, %v2028
      %v2030 = vpop.f32.mrf.mxu0
      %2031 = vmatprep.mubr.f32.mxu0 0.0
      %2032 = vmatmul.mubr.f32.gmra.mxu0 %v1934
      %v2033 = vpop.f32.mrf.mxu0
      %v2034 = vadd.f32 0.0, %v2033
      %v2035 = vpop.f32.mrf.mxu0
      %2036 = vmatprep.mubr.f32.mxu0 0.0
      %2037 = vmatmul.mubr.f32.gmra.mxu0 %v1937
      %v2038 = vpop.f32.mrf.mxu0
      %v2039 = vadd.f32 0.0, %v2038
      %v2040 = vpop.f32.mrf.mxu0
      %2041 = vmatprep.mubr.f32.mxu0 0.0
      %2042 = vmatmul.mubr.f32.gmra.mxu0 %v1940
      %v2043 = vpop.f32.mrf.mxu0
      %v2044 = vadd.f32 0.0, %v2043
      %v2045 = vpop.f32.mrf.mxu0
      %2046 = vdwg.mxu0
      %v2047 = vadd.f32 %v1897, %v2009
      %v2048 = vadd.f32 %v1898, %v2014
      %v2049 = vadd.f32 %v1899, %v2019
      %v2050 = vadd.f32 %v1900, %v2024
      %v2051 = vadd.f32 %v1901, %v2029
      %v2052 = vadd.f32 %v1902, %v2034
      %v2053 = vadd.f32 %v1903, %v2039
      %v2054 = vadd.f32 %v1904, %v2044
      %v2055 = vadd.f32 %v2047, %v996
      %v2056 = vadd.f32 %v2048, %v996
      %v2057 = vadd.f32 %v2049, %v996
      %v2058 = vadd.f32 %v2050, %v996
      %v2059 = vadd.f32 %v2051, %v996
      %v2060 = vadd.f32 %v2052, %v996
      %v2061 = vadd.f32 %v2053, %v996
      %v2062 = vadd.f32 %v2054, %v996
      %s2063 = scalar_lea.vmem %s3, 384
      %v2064 = vld [vmem:[%s2063] sm:$0xff]
      %v2065 = vld [vmem:[%s2063 + $0x8] sm:$0xff]
      %v2066 = vld [vmem:[%s2063 + $0x10] sm:$0xff]
      %v2067 = vld [vmem:[%s2063 + $0x18] sm:$0xff]
      %s2068 = scalar_lea.vmem %s3, 416
      %v2069 = vld [vmem:[%s2068] sm:$0xff]
      %v2070 = vld [vmem:[%s2068 + $0x8] sm:$0xff]
      %v2071 = vld [vmem:[%s2068 + $0x10] sm:$0xff]
      %v2072 = vld [vmem:[%s2068 + $0x18] sm:$0xff]
      %2073 = vmatprep.subr.mxu0 0.0
      %2074 = vmatpush1.msra.mxu0 0.0
      %2075 = vmatprep.subr.mxu0 0.0
      %2076 = vmatpush1.msra.mxu0 0.0
      %2077 = vmatprep.subr.mxu0 0.0
      %2078 = vmatpush1.msra.mxu0 0.0
      %2079 = vmatprep.subr.mxu0 0.0
      %2080 = vmatpush1.msra.mxu0 0.0
      %2081 = vmatprep.subr.mxu0 0.0
      %2082 = vmatpush1.msra.mxu0 0.0
      %2083 = vmatprep.subr.mxu0 0.0
      %2084 = vmatpush1.msra.mxu0 0.0
      %2085 = vmatprep.subr.mxu0 0.0
      %2086 = vmatpush1.msra.mxu0 0.0
      %2087 = vmatprep.subr.mxu0 0.0
      %2088 = vmatpush1.msra.mxu0 0.0
      %2089 = vmatprep.subr.mxu0 0.0
      %2090 = vmatpush1.msra.mxu0 0.0
      %2091 = vmatprep.subr.mxu0 0.0
      %2092 = vmatpush1.msra.mxu0 0.0
      %2093 = vmatprep.subr.mxu0 0.0
      %2094 = vmatpush1.msra.mxu0 0.0
      %2095 = vmatprep.subr.mxu0 0.0
      %2096 = vmatpush1.msra.mxu0 0.0
      %2097 = vmatprep.subr.mxu0 0.0
      %2098 = vmatpush1.msra.mxu0 %v2072
      %2099 = vmatprep.subr.mxu0 0.0
      %2100 = vmatpush1.msra.mxu0 %v2071
      %2101 = vmatprep.subr.mxu0 0.0
      %2102 = vmatpush1.msra.mxu0 %v2070
      %2103 = vmatprep.subr.mxu0 0.0
      %2104 = vmatpush1.msra.mxu0 %v2069
      %2105 = vmatprep.subr.mxu0 0.0
      %2106 = vmatpush2.msra.mxu0 0.0
      %2107 = vmatprep.subr.mxu0 0.0
      %2108 = vmatpush2.msra.mxu0 0.0
      %2109 = vmatprep.subr.mxu0 0.0
      %2110 = vmatpush2.msra.mxu0 0.0
      %2111 = vmatprep.subr.mxu0 0.0
      %2112 = vmatpush2.msra.mxu0 0.0
      %2113 = vmatprep.subr.mxu0 0.0
      %2114 = vmatpush2.msra.mxu0 0.0
      %2115 = vmatprep.subr.mxu0 0.0
      %2116 = vmatpush2.msra.mxu0 0.0
      %2117 = vmatprep.subr.mxu0 0.0
      %2118 = vmatpush2.msra.mxu0 0.0
      %2119 = vmatprep.subr.mxu0 0.0
      %2120 = vmatpush2.msra.mxu0 0.0
      %2121 = vmatprep.subr.mxu0 0.0
      %2122 = vmatpush2.msra.mxu0 0.0
      %2123 = vmatprep.subr.mxu0 0.0
      %2124 = vmatpush2.msra.mxu0 0.0
      %2125 = vmatprep.subr.mxu0 0.0
      %2126 = vmatpush2.msra.mxu0 0.0
      %2127 = vmatprep.subr.mxu0 0.0
      %2128 = vmatpush2.msra.mxu0 0.0
      %2129 = vmatprep.subr.mxu0 0.0
      %2130 = vmatpush2.msra.mxu0 0.0
      %2131 = vmatprep.subr.mxu0 0.0
      %2132 = vmatpush2.msra.mxu0 0.0
      %2133 = vmatprep.subr.mxu0 0.0
      %2134 = vmatpush2.msra.mxu0 0.0
      %2135 = vmatprep.subr.mxu0 0.0
      %2136 = vmatpush2.msra.mxu0 0.0
      %2137 = vmatprep.mubr.f32.mxu0 0.0
      %2138 = vmatmul.mubr.f32.gmra.mxu0 %v1390
      %v2139 = vpop.f32.mrf.mxu0
      %v2140 = vadd.f32 0.0, %v2139
      %v2141 = vpop.f32.mrf.mxu0
      %2142 = vmatprep.mubr.f32.mxu0 0.0
      %2143 = vmatmul.mubr.f32.gmra.mxu0 %v1393
      %v2144 = vpop.f32.mrf.mxu0
      %v2145 = vadd.f32 0.0, %v2144
      %v2146 = vpop.f32.mrf.mxu0
      %2147 = vmatprep.mubr.f32.mxu0 0.0
      %2148 = vmatmul.mubr.f32.gmra.mxu0 %v1396
      %v2149 = vpop.f32.mrf.mxu0
      %v2150 = vadd.f32 0.0, %v2149
      %v2151 = vpop.f32.mrf.mxu0
      %2152 = vmatprep.mubr.f32.mxu0 0.0
      %2153 = vmatmul.mubr.f32.gmra.mxu0 %v1399
      %v2154 = vpop.f32.mrf.mxu0
      %v2155 = vadd.f32 0.0, %v2154
      %v2156 = vpop.f32.mrf.mxu0
      %2157 = vmatprep.mubr.f32.mxu0 0.0
      %2158 = vmatmul.mubr.f32.gmra.mxu0 %v1402
      %v2159 = vpop.f32.mrf.mxu0
      %v2160 = vadd.f32 0.0, %v2159
      %v2161 = vpop.f32.mrf.mxu0
      %2162 = vmatprep.mubr.f32.mxu0 0.0
      %2163 = vmatmul.mubr.f32.gmra.mxu0 %v1405
      %v2164 = vpop.f32.mrf.mxu0
      %v2165 = vadd.f32 0.0, %v2164
      %v2166 = vpop.f32.mrf.mxu0
      %2167 = vmatprep.mubr.f32.mxu0 0.0
      %2168 = vmatmul.mubr.f32.gmra.mxu0 %v1408
      %v2169 = vpop.f32.mrf.mxu0
      %v2170 = vadd.f32 0.0, %v2169
      %v2171 = vpop.f32.mrf.mxu0
      %2172 = vmatprep.mubr.f32.mxu0 0.0
      %2173 = vmatmul.mubr.f32.gmra.mxu0 %v1411
      %v2174 = vpop.f32.mrf.mxu0
      %v2175 = vadd.f32 0.0, %v2174
      %v2176 = vpop.f32.mrf.mxu0
      %2177 = vdwg.mxu0
      %2178 = vmatprep.subr.mxu0 0.0
      %2179 = vmatpush1.msra.mxu0 0.0
      %2180 = vmatprep.subr.mxu0 0.0
      %2181 = vmatpush1.msra.mxu0 0.0
      %2182 = vmatprep.subr.mxu0 0.0
      %2183 = vmatpush1.msra.mxu0 0.0
      %2184 = vmatprep.subr.mxu0 0.0
      %2185 = vmatpush1.msra.mxu0 0.0
      %2186 = vmatprep.subr.mxu0 0.0
      %2187 = vmatpush1.msra.mxu0 0.0
      %2188 = vmatprep.subr.mxu0 0.0
      %2189 = vmatpush1.msra.mxu0 0.0
      %2190 = vmatprep.subr.mxu0 0.0
      %2191 = vmatpush1.msra.mxu0 0.0
      %2192 = vmatprep.subr.mxu0 0.0
      %2193 = vmatpush1.msra.mxu0 0.0
      %2194 = vmatprep.subr.mxu0 0.0
      %2195 = vmatpush1.msra.mxu0 0.0
      %2196 = vmatprep.subr.mxu0 0.0
      %2197 = vmatpush1.msra.mxu0 0.0
      %2198 = vmatprep.subr.mxu0 0.0
      %2199 = vmatpush1.msra.mxu0 0.0
      %2200 = vmatprep.subr.mxu0 0.0
      %2201 = vmatpush1.msra.mxu0 0.0
      %2202 = vmatprep.subr.mxu0 0.0
      %2203 = vmatpush1.msra.mxu0 %v2067
      %2204 = vmatprep.subr.mxu0 0.0
      %2205 = vmatpush1.msra.mxu0 %v2066
      %2206 = vmatprep.subr.mxu0 0.0
      %2207 = vmatpush1.msra.mxu0 %v2065
      %2208 = vmatprep.subr.mxu0 0.0
      %2209 = vmatpush1.msra.mxu0 %v2064
      %2210 = vmatprep.subr.mxu0 0.0
      %2211 = vmatpush2.msra.mxu0 0.0
      %2212 = vmatprep.subr.mxu0 0.0
      %2213 = vmatpush2.msra.mxu0 0.0
      %2214 = vmatprep.subr.mxu0 0.0
      %2215 = vmatpush2.msra.mxu0 0.0
      %2216 = vmatprep.subr.mxu0 0.0
      %2217 = vmatpush2.msra.mxu0 0.0
      %2218 = vmatprep.subr.mxu0 0.0
      %2219 = vmatpush2.msra.mxu0 0.0
      %2220 = vmatprep.subr.mxu0 0.0
      %2221 = vmatpush2.msra.mxu0 0.0
      %2222 = vmatprep.subr.mxu0 0.0
      %2223 = vmatpush2.msra.mxu0 0.0
      %2224 = vmatprep.subr.mxu0 0.0
      %2225 = vmatpush2.msra.mxu0 0.0
      %2226 = vmatprep.subr.mxu0 0.0
      %2227 = vmatpush2.msra.mxu0 0.0
      %2228 = vmatprep.subr.mxu0 0.0
      %2229 = vmatpush2.msra.mxu0 0.0
      %2230 = vmatprep.subr.mxu0 0.0
      %2231 = vmatpush2.msra.mxu0 0.0
      %2232 = vmatprep.subr.mxu0 0.0
      %2233 = vmatpush2.msra.mxu0 0.0
      %2234 = vmatprep.subr.mxu0 0.0
      %2235 = vmatpush2.msra.mxu0 0.0
      %2236 = vmatprep.subr.mxu0 0.0
      %2237 = vmatpush2.msra.mxu0 0.0
      %2238 = vmatprep.subr.mxu0 0.0
      %2239 = vmatpush2.msra.mxu0 0.0
      %2240 = vmatprep.subr.mxu0 0.0
      %2241 = vmatpush2.msra.mxu0 0.0
      %2242 = vmatprep.mubr.f32.mxu0 0.0
      %2243 = vmatmul.mubr.f32.gmra.mxu0 %v856
      %v2244 = vpop.f32.mrf.mxu0
      %v2245 = vadd.f32 %v2140, %v2244
      %v2246 = vpop.f32.mrf.mxu0
      %2247 = vmatprep.mubr.f32.mxu0 0.0
      %2248 = vmatmul.mubr.f32.gmra.mxu0 %v859
      %v2249 = vpop.f32.mrf.mxu0
      %v2250 = vadd.f32 %v2145, %v2249
      %v2251 = vpop.f32.mrf.mxu0
      %2252 = vmatprep.mubr.f32.mxu0 0.0
      %2253 = vmatmul.mubr.f32.gmra.mxu0 %v862
      %v2254 = vpop.f32.mrf.mxu0
      %v2255 = vadd.f32 %v2150, %v2254
      %v2256 = vpop.f32.mrf.mxu0
      %2257 = vmatprep.mubr.f32.mxu0 0.0
      %2258 = vmatmul.mubr.f32.gmra.mxu0 %v865
      %v2259 = vpop.f32.mrf.mxu0
      %v2260 = vadd.f32 %v2155, %v2259
      %v2261 = vpop.f32.mrf.mxu0
      %2262 = vmatprep.mubr.f32.mxu0 0.0
      %2263 = vmatmul.mubr.f32.gmra.mxu0 %v868
      %v2264 = vpop.f32.mrf.mxu0
      %v2265 = vadd.f32 %v2160, %v2264
      %v2266 = vpop.f32.mrf.mxu0
      %2267 = vmatprep.mubr.f32.mxu0 0.0
      %2268 = vmatmul.mubr.f32.gmra.mxu0 %v871
      %v2269 = vpop.f32.mrf.mxu0
      %v2270 = vadd.f32 %v2165, %v2269
      %v2271 = vpop.f32.mrf.mxu0
      %2272 = vmatprep.mubr.f32.mxu0 0.0
      %2273 = vmatmul.mubr.f32.gmra.mxu0 %v874
      %v2274 = vpop.f32.mrf.mxu0
      %v2275 = vadd.f32 %v2170, %v2274
      %v2276 = vpop.f32.mrf.mxu0
      %2277 = vmatprep.mubr.f32.mxu0 0.0
      %2278 = vmatmul.mubr.f32.gmra.mxu0 %v877
      %v2279 = vpop.f32.mrf.mxu0
      %v2280 = vadd.f32 %v2175, %v2279
      %v2281 = vpop.f32.mrf.mxu0
      %2282 = vdwg.mxu0
      %s2283 = scalar_lea.vmem %s3, 448
      %v2284 = vld [vmem:[%s2283] sm:$0xff]
      %v2285 = vld [vmem:[%s2283 + $0x8] sm:$0xff]
      %v2286 = vld [vmem:[%s2283 + $0x10] sm:$0xff]
      %v2287 = vld [vmem:[%s2283 + $0x18] sm:$0xff]
      %2288 = vmatprep.subr.mxu0 0.0
      %2289 = vmatpush1.msra.mxu0 0.0
      %2290 = vmatprep.subr.mxu0 0.0
      %2291 = vmatpush1.msra.mxu0 0.0
      %2292 = vmatprep.subr.mxu0 0.0
      %2293 = vmatpush1.msra.mxu0 0.0
      %2294 = vmatprep.subr.mxu0 0.0
      %2295 = vmatpush1.msra.mxu0 0.0
      %2296 = vmatprep.subr.mxu0 0.0
      %2297 = vmatpush1.msra.mxu0 0.0
      %2298 = vmatprep.subr.mxu0 0.0
      %2299 = vmatpush1.msra.mxu0 0.0
      %2300 = vmatprep.subr.mxu0 0.0
      %2301 = vmatpush1.msra.mxu0 0.0
      %2302 = vmatprep.subr.mxu0 0.0
      %2303 = vmatpush1.msra.mxu0 0.0
      %2304 = vmatprep.subr.mxu0 0.0
      %2305 = vmatpush1.msra.mxu0 0.0
      %2306 = vmatprep.subr.mxu0 0.0
      %2307 = vmatpush1.msra.mxu0 0.0
      %2308 = vmatprep.subr.mxu0 0.0
      %2309 = vmatpush1.msra.mxu0 0.0
      %2310 = vmatprep.subr.mxu0 0.0
      %2311 = vmatpush1.msra.mxu0 0.0
      %2312 = vmatprep.subr.mxu0 0.0
      %2313 = vmatpush1.msra.mxu0 %v2287
      %2314 = vmatprep.subr.mxu0 0.0
      %2315 = vmatpush1.msra.mxu0 %v2286
      %2316 = vmatprep.subr.mxu0 0.0
      %2317 = vmatpush1.msra.mxu0 %v2285
      %2318 = vmatprep.subr.mxu0 0.0
      %2319 = vmatpush1.msra.mxu0 %v2284
      %2320 = vmatprep.subr.mxu0 0.0
      %2321 = vmatpush2.msra.mxu0 0.0
      %2322 = vmatprep.subr.mxu0 0.0
      %2323 = vmatpush2.msra.mxu0 0.0
      %2324 = vmatprep.subr.mxu0 0.0
      %2325 = vmatpush2.msra.mxu0 0.0
      %2326 = vmatprep.subr.mxu0 0.0
      %2327 = vmatpush2.msra.mxu0 0.0
      %2328 = vmatprep.subr.mxu0 0.0
      %2329 = vmatpush2.msra.mxu0 0.0
      %2330 = vmatprep.subr.mxu0 0.0
      %2331 = vmatpush2.msra.mxu0 0.0
      %2332 = vmatprep.subr.mxu0 0.0
      %2333 = vmatpush2.msra.mxu0 0.0
      %2334 = vmatprep.subr.mxu0 0.0
      %2335 = vmatpush2.msra.mxu0 0.0
      %2336 = vmatprep.subr.mxu0 0.0
      %2337 = vmatpush2.msra.mxu0 0.0
      %2338 = vmatprep.subr.mxu0 0.0
      %2339 = vmatpush2.msra.mxu0 0.0
      %2340 = vmatprep.subr.mxu0 0.0
      %2341 = vmatpush2.msra.mxu0 0.0
      %2342 = vmatprep.subr.mxu0 0.0
      %2343 = vmatpush2.msra.mxu0 0.0
      %2344 = vmatprep.subr.mxu0 0.0
      %2345 = vmatpush2.msra.mxu0 0.0
      %2346 = vmatprep.subr.mxu0 0.0
      %2347 = vmatpush2.msra.mxu0 0.0
      %2348 = vmatprep.subr.mxu0 0.0
      %2349 = vmatpush2.msra.mxu0 0.0
      %2350 = vmatprep.subr.mxu0 0.0
      %2351 = vmatpush2.msra.mxu0 0.0
      %2352 = vmatprep.mubr.f32.mxu0 0.0
      %2353 = vmatmul.mubr.f32.gmra.mxu0 %v1919
      %v2354 = vpop.f32.mrf.mxu0
      %v2355 = vadd.f32 0.0, %v2354
      %v2356 = vpop.f32.mrf.mxu0
      %2357 = vmatprep.mubr.f32.mxu0 0.0
      %2358 = vmatmul.mubr.f32.gmra.mxu0 %v1922
      %v2359 = vpop.f32.mrf.mxu0
      %v2360 = vadd.f32 0.0, %v2359
      %v2361 = vpop.f32.mrf.mxu0
      %2362 = vmatprep.mubr.f32.mxu0 0.0
      %2363 = vmatmul.mubr.f32.gmra.mxu0 %v1925
      %v2364 = vpop.f32.mrf.mxu0
      %v2365 = vadd.f32 0.0, %v2364
      %v2366 = vpop.f32.mrf.mxu0
      %2367 = vmatprep.mubr.f32.mxu0 0.0
      %2368 = vmatmul.mubr.f32.gmra.mxu0 %v1928
      %v2369 = vpop.f32.mrf.mxu0
      %v2370 = vadd.f32 0.0, %v2369
      %v2371 = vpop.f32.mrf.mxu0
      %2372 = vmatprep.mubr.f32.mxu0 0.0
      %2373 = vmatmul.mubr.f32.gmra.mxu0 %v1931
      %v2374 = vpop.f32.mrf.mxu0
      %v2375 = vadd.f32 0.0, %v2374
      %v2376 = vpop.f32.mrf.mxu0
      %2377 = vmatprep.mubr.f32.mxu0 0.0
      %2378 = vmatmul.mubr.f32.gmra.mxu0 %v1934
      %v2379 = vpop.f32.mrf.mxu0
      %v2380 = vadd.f32 0.0, %v2379
      %v2381 = vpop.f32.mrf.mxu0
      %2382 = vmatprep.mubr.f32.mxu0 0.0
      %2383 = vmatmul.mubr.f32.gmra.mxu0 %v1937
      %v2384 = vpop.f32.mrf.mxu0
      %v2385 = vadd.f32 0.0, %v2384
      %v2386 = vpop.f32.mrf.mxu0
      %2387 = vmatprep.mubr.f32.mxu0 0.0
      %2388 = vmatmul.mubr.f32.gmra.mxu0 %v1940
      %v2389 = vpop.f32.mrf.mxu0
      %v2390 = vadd.f32 0.0, %v2389
      %v2391 = vpop.f32.mrf.mxu0
      %2392 = vdwg.mxu0
      %v2393 = vadd.f32 %v2245, %v2355
      %v2394 = vadd.f32 %v2250, %v2360
      %v2395 = vadd.f32 %v2255, %v2365
      %v2396 = vadd.f32 %v2260, %v2370
      %v2397 = vadd.f32 %v2265, %v2375
      %v2398 = vadd.f32 %v2270, %v2380
      %v2399 = vadd.f32 %v2275, %v2385
      %v2400 = vadd.f32 %v2280, %v2390
      %v2401 = vld [vmem:[%s1754 + $0x2] sm:$0xff]
      %v2402 = vld [vmem:[%s1754 + $0x12] sm:$0xff]
      %v2403 = vld [vmem:[%s1754 + $0x22] sm:$0xff]
      %v2404 = vld [vmem:[%s1754 + $0x32] sm:$0xff]
      %v2405 = vld [vmem:[%s1754 + $0x42] sm:$0xff]
      %v2406 = vld [vmem:[%s1754 + $0x52] sm:$0xff]
      %v2407 = vld [vmem:[%s1754 + $0x62] sm:$0xff]
      %v2408 = vld [vmem:[%s1754 + $0x72] sm:$0xff]
      %s2409 = scalar_lea.vmem %s3, 480
      %v2410 = vld [vmem:[%s2409] sm:$0xff]
      %v2411 = vld [vmem:[%s2409 + $0x8] sm:$0xff]
      %v2412 = vld [vmem:[%s2409 + $0x10] sm:$0xff]
      %v2413 = vld [vmem:[%s2409 + $0x18] sm:$0xff]
      %v2415 = vsel %vm371, %v2401, 0
      %v2418 = vsel %vm371, %v2402, 0
      %v2421 = vsel %vm371, %v2403, 0
      %v2424 = vsel %vm371, %v2404, 0
      %v2427 = vsel %vm371, %v2405, 0
      %v2430 = vsel %vm371, %v2406, 0
      %v2433 = vsel %vm371, %v2407, 0
      %v2436 = vsel %vm371, %v2408, 0
      %2438 = vmatprep.subr.mxu0 0.0
      %2439 = vmatpush1.msra.mxu0 0.0
      %2440 = vmatprep.subr.mxu0 0.0
      %2441 = vmatpush1.msra.mxu0 0.0
      %2442 = vmatprep.subr.mxu0 0.0
      %2443 = vmatpush1.msra.mxu0 0.0
      %2444 = vmatprep.subr.mxu0 0.0
      %2445 = vmatpush1.msra.mxu0 0.0
      %2446 = vmatprep.subr.mxu0 0.0
      %2447 = vmatpush1.msra.mxu0 0.0
      %2448 = vmatprep.subr.mxu0 0.0
      %2449 = vmatpush1.msra.mxu0 0.0
      %2450 = vmatprep.subr.mxu0 0.0
      %2451 = vmatpush1.msra.mxu0 0.0
      %2452 = vmatprep.subr.mxu0 0.0
      %2453 = vmatpush1.msra.mxu0 0.0
      %2454 = vmatprep.subr.mxu0 0.0
      %2455 = vmatpush1.msra.mxu0 0.0
      %2456 = vmatprep.subr.mxu0 0.0
      %2457 = vmatpush1.msra.mxu0 0.0
      %2458 = vmatprep.subr.mxu0 0.0
      %2459 = vmatpush1.msra.mxu0 0.0
      %2460 = vmatprep.subr.mxu0 0.0
      %2461 = vmatpush1.msra.mxu0 0.0
      %2462 = vmatprep.subr.mxu0 0.0
      %2463 = vmatpush1.msra.mxu0 %v2413
      %2464 = vmatprep.subr.mxu0 0.0
      %2465 = vmatpush1.msra.mxu0 %v2412
      %2466 = vmatprep.subr.mxu0 0.0
      %2467 = vmatpush1.msra.mxu0 %v2411
      %2468 = vmatprep.subr.mxu0 0.0
      %2469 = vmatpush1.msra.mxu0 %v2410
      %2470 = vmatprep.subr.mxu0 0.0
      %2471 = vmatpush2.msra.mxu0 0.0
      %2472 = vmatprep.subr.mxu0 0.0
      %2473 = vmatpush2.msra.mxu0 0.0
      %2474 = vmatprep.subr.mxu0 0.0
      %2475 = vmatpush2.msra.mxu0 0.0
      %2476 = vmatprep.subr.mxu0 0.0
      %2477 = vmatpush2.msra.mxu0 0.0
      %2478 = vmatprep.subr.mxu0 0.0
      %2479 = vmatpush2.msra.mxu0 0.0
      %2480 = vmatprep.subr.mxu0 0.0
      %2481 = vmatpush2.msra.mxu0 0.0
      %2482 = vmatprep.subr.mxu0 0.0
      %2483 = vmatpush2.msra.mxu0 0.0
      %2484 = vmatprep.subr.mxu0 0.0
      %2485 = vmatpush2.msra.mxu0 0.0
      %2486 = vmatprep.subr.mxu0 0.0
      %2487 = vmatpush2.msra.mxu0 0.0
      %2488 = vmatprep.subr.mxu0 0.0
      %2489 = vmatpush2.msra.mxu0 0.0
      %2490 = vmatprep.subr.mxu0 0.0
      %2491 = vmatpush2.msra.mxu0 0.0
      %2492 = vmatprep.subr.mxu0 0.0
      %2493 = vmatpush2.msra.mxu0 0.0
      %2494 = vmatprep.subr.mxu0 0.0
      %2495 = vmatpush2.msra.mxu0 0.0
      %2496 = vmatprep.subr.mxu0 0.0
      %2497 = vmatpush2.msra.mxu0 0.0
      %2498 = vmatprep.subr.mxu0 0.0
      %2499 = vmatpush2.msra.mxu0 0.0
      %2500 = vmatprep.subr.mxu0 0.0
      %2501 = vmatpush2.msra.mxu0 0.0
      %2502 = vmatprep.mubr.f32.mxu0 0.0
      %2503 = vmatmul.mubr.f32.gmra.mxu0 %v2415
      %v2504 = vpop.f32.mrf.mxu0
      %v2505 = vadd.f32 0.0, %v2504
      %v2506 = vpop.f32.mrf.mxu0
      %2507 = vmatprep.mubr.f32.mxu0 0.0
      %2508 = vmatmul.mubr.f32.gmra.mxu0 %v2418
      %v2509 = vpop.f32.mrf.mxu0
      %v2510 = vadd.f32 0.0, %v2509
      %v2511 = vpop.f32.mrf.mxu0
      %2512 = vmatprep.mubr.f32.mxu0 0.0
      %2513 = vmatmul.mubr.f32.gmra.mxu0 %v2421
      %v2514 = vpop.f32.mrf.mxu0
      %v2515 = vadd.f32 0.0, %v2514
      %v2516 = vpop.f32.mrf.mxu0
      %2517 = vmatprep.mubr.f32.mxu0 0.0
      %2518 = vmatmul.mubr.f32.gmra.mxu0 %v2424
      %v2519 = vpop.f32.mrf.mxu0
      %v2520 = vadd.f32 0.0, %v2519
      %v2521 = vpop.f32.mrf.mxu0
      %2522 = vmatprep.mubr.f32.mxu0 0.0
      %2523 = vmatmul.mubr.f32.gmra.mxu0 %v2427
      %v2524 = vpop.f32.mrf.mxu0
      %v2525 = vadd.f32 0.0, %v2524
      %v2526 = vpop.f32.mrf.mxu0
      %2527 = vmatprep.mubr.f32.mxu0 0.0
      %2528 = vmatmul.mubr.f32.gmra.mxu0 %v2430
      %v2529 = vpop.f32.mrf.mxu0
      %v2530 = vadd.f32 0.0, %v2529
      %v2531 = vpop.f32.mrf.mxu0
      %2532 = vmatprep.mubr.f32.mxu0 0.0
      %2533 = vmatmul.mubr.f32.gmra.mxu0 %v2433
      %v2534 = vpop.f32.mrf.mxu0
      %v2535 = vadd.f32 0.0, %v2534
      %v2536 = vpop.f32.mrf.mxu0
      %2537 = vmatprep.mubr.f32.mxu0 0.0
      %2538 = vmatmul.mubr.f32.gmra.mxu0 %v2436
      %v2539 = vpop.f32.mrf.mxu0
      %v2540 = vadd.f32 0.0, %v2539
      %v2541 = vpop.f32.mrf.mxu0
      %2542 = vdwg.mxu0
      %v2543 = vadd.f32 %v2393, %v2505
      %v2544 = vadd.f32 %v2394, %v2510
      %v2545 = vadd.f32 %v2395, %v2515
      %v2546 = vadd.f32 %v2396, %v2520
      %v2547 = vadd.f32 %v2397, %v2525
      %v2548 = vadd.f32 %v2398, %v2530
      %v2549 = vadd.f32 %v2399, %v2535
      %v2550 = vadd.f32 %v2400, %v2540
      %v2551 = vadd.f32 %v2543, %v996
      %v2552 = vadd.f32 %v2544, %v996
      %v2553 = vadd.f32 %v2545, %v996
      %v2554 = vadd.f32 %v2546, %v996
      %v2555 = vadd.f32 %v2547, %v996
      %v2556 = vadd.f32 %v2548, %v996
      %v2557 = vadd.f32 %v2549, %v996
      %v2558 = vadd.f32 %v2550, %v996
      %2567 = vrot.lane.b32.xlu0 %v1526, 4
      %v2568 = vpop.permute.xlu0 %2567
      %2569 = vrot.lane.b32.xlu0 %v1527, 4
      %v2570 = vpop.permute.xlu0 %2569
      %2571 = vrot.lane.b32.xlu0 %v1528, 4
      %v2572 = vpop.permute.xlu0 %2571
      %2573 = vrot.lane.b32.xlu0 %v1529, 4
      %v2574 = vpop.permute.xlu0 %2573
      %2575 = vrot.lane.b32.xlu0 %v1530, 4
      %v2576 = vpop.permute.xlu0 %2575
      %2577 = vrot.lane.b32.xlu0 %v1531, 4
      %v2578 = vpop.permute.xlu0 %2577
      %2579 = vrot.lane.b32.xlu0 %v1532, 4
      %v2580 = vpop.permute.xlu0 %2579
      %2581 = vrot.lane.b32.xlu0 %v1533, 4
      %v2582 = vpop.permute.xlu0 %2581
      %2599 = vrot.lane.b32.xlu0 %v2055, 8
      %v2600 = vpop.permute.xlu0 %2599
      %2601 = vrot.lane.b32.xlu0 %v2056, 8
      %v2602 = vpop.permute.xlu0 %2601
      %2603 = vrot.lane.b32.xlu0 %v2057, 8
      %v2604 = vpop.permute.xlu0 %2603
      %2605 = vrot.lane.b32.xlu0 %v2058, 8
      %v2606 = vpop.permute.xlu0 %2605
      %2607 = vrot.lane.b32.xlu0 %v2059, 8
      %v2608 = vpop.permute.xlu0 %2607
      %2609 = vrot.lane.b32.xlu0 %v2060, 8
      %v2610 = vpop.permute.xlu0 %2609
      %2611 = vrot.lane.b32.xlu0 %v2061, 8
      %v2612 = vpop.permute.xlu0 %2611
      %2613 = vrot.lane.b32.xlu0 %v2062, 8
      %v2614 = vpop.permute.xlu0 %2613
      %2631 = vrot.lane.b32.xlu0 %v2551, 12
      %v2632 = vpop.permute.xlu0 %2631
      %2633 = vrot.lane.b32.xlu0 %v2552, 12
      %v2634 = vpop.permute.xlu0 %2633
      %2635 = vrot.lane.b32.xlu0 %v2553, 12
      %v2636 = vpop.permute.xlu0 %2635
      %2637 = vrot.lane.b32.xlu0 %v2554, 12
      %v2638 = vpop.permute.xlu0 %2637
      %2639 = vrot.lane.b32.xlu0 %v2555, 12
      %v2640 = vpop.permute.xlu0 %2639
      %2641 = vrot.lane.b32.xlu0 %v2556, 12
      %v2642 = vpop.permute.xlu0 %2641
      %2643 = vrot.lane.b32.xlu0 %v2557, 12
      %v2644 = vpop.permute.xlu0 %2643
      %2645 = vrot.lane.b32.xlu0 %v2558, 12
      %v2646 = vpop.permute.xlu0 %2645
      %vm2655 = vcmask 31744
      %v2656 = vsel %vm2655, %v998, %v2568
      %v2657 = vsel %vm2655, %v999, %v2570
      %v2658 = vsel %vm2655, %v1000, %v2572
      %v2659 = vsel %vm2655, %v1001, %v2574
      %v2660 = vsel %vm2655, %v1002, %v2576
      %v2661 = vsel %vm2655, %v1003, %v2578
      %v2662 = vsel %vm2655, %v1004, %v2580
      %v2663 = vsel %vm2655, %v1005, %v2582
      %v2664 = vsel %vm241, %v2656, %v2600
      %v2665 = vsel %vm241, %v2657, %v2602
      %v2666 = vsel %vm241, %v2658, %v2604
      %v2667 = vsel %vm241, %v2659, %v2606
      %v2668 = vsel %vm241, %v2660, %v2608
      %v2669 = vsel %vm241, %v2661, %v2610
      %v2670 = vsel %vm241, %v2662, %v2612
      %v2671 = vsel %vm241, %v2663, %v2614
      %vm2672 = vcmask 97280
      %v2673 = vsel %vm2672, %v2664, %v2632
      %v2674 = vsel %vm2672, %v2665, %v2634
      %v2675 = vsel %vm2672, %v2666, %v2636
      %v2676 = vsel %vm2672, %v2667, %v2638
      %v2677 = vsel %vm2672, %v2668, %v2640
      %v2678 = vsel %vm2672, %v2669, %v2642
      %v2679 = vsel %vm2672, %v2670, %v2644
      %v2680 = vsel %vm2672, %v2671, %v2646
      %vm2681 = vcmask 130048
      %2682 = vst.msk [vmem:[%s224] sm:$0xff] %vm2681, %v2673
      %2683 = vst.msk [vmem:[%s224 + $0x8] sm:$0xff] %vm2681, %v2674
      %2684 = vst.msk [vmem:[%s224 + $0x10] sm:$0xff] %vm2681, %v2675
      %2685 = vst.msk [vmem:[%s224 + $0x18] sm:$0xff] %vm2681, %v2676
      %2686 = vst.msk [vmem:[%s224 + $0x20] sm:$0xff] %vm2681, %v2677
      %2687 = vst.msk [vmem:[%s224 + $0x28] sm:$0xff] %vm2681, %v2678
      %2688 = vst.msk [vmem:[%s224 + $0x30] sm:$0xff] %vm2681, %v2679
      %2689 = vst.msk [vmem:[%s224 + $0x38] sm:$0xff] %vm2681, %v2680
      %p2690 = scmp.lt.s32.totalorder %s16, 1
      %s2691 = scalar_select %p2690, %s16, 1
      %s2692 = smul.addr %s2691, 8
      %s2693 = smul.addr %s2692, 8
      %s2694 = scalar_lea.vmem %s5, %s2693
      // Predicated region
      $region41: #{dec_attention3_forward.2} parent=39 // pred_check
        %p2695 = pneg %p144
      $region42: #{dec_attention3_forward.2} parent=39 // pred_check_branch
        %2697 = sbr.rel (%p2695) target = $region44
      $region43: #{dec_attention3_forward.2} parent=39 // pred_region
        _
      $region44: #{dec_attention3_forward.2} parent=39 // pred_fallthru
        _
    $region40: #{dec_attention3_forward.2} parent=5 // pred_fallthru
      _
    %p2698 = scmp.le.s32.totalorder 2, %s11
    // Predicated region
    $region45: #{dec_attention3_forward.2} parent=5 // pred_check
      %p2699 = pneg %p2698
    $region46: #{dec_attention3_forward.2} parent=5 // pred_check_branch
      %2701 = sbr.rel (%p2699) target = $region48
    $region47: #{dec_attention3_forward.2} parent=5 // pred_region
      %s2702 = ssub.s32 %s11, 2
      // Predicated region
      $region49: #{dec_attention3_forward.2} parent=47 // pred_check
        %p2703 = pneg %p150
      $region50: #{dec_attention3_forward.2} parent=47 // pred_check_branch
        %2705 = sbr.rel (%p2703) target = $region52
      $region51: #{dec_attention3_forward.2} parent=47 // pred_region
        %p2706 = scmp.lt.s32.totalorder %s17, 1
        %s2707 = scalar_select %p2706, %s17, 1
        %s2708 = smul.addr %s2707, 8
        %s2709 = smul.addr %s2708, 8
        %s2710 = scalar_lea.vmem %s5, %s2709
      $region52: #{dec_attention3_forward.2} parent=47 // pred_fallthru
        _
    $region48: #{dec_attention3_forward.2} parent=5 // pred_fallthru
      _
  $region6: #{dec_attention3_forward.2} parent=0 // loop_footer
    %s15 = sadd.s32 1, %s11
  $region7: #{dec_attention3_forward.2} parent=0 // loop_footer_branch
    %10 = sbr.rel target = $region3
  $region8: #{dec_attention3_forward.2} parent=0 // loop_exit
    _

// kernel: dec_attention3_forward.3
$region0: #{dec_attention3_forward.3}
  #allocation0 [shape = 'u32[]', space=smem, size = 0x4, offset = 0x4, fixed_abs, tag = 'smem constant byte address 0x4 - core index']
  #allocation1 [shape = 'u32[144,128]{1,0:T(1,128)}', space=vmem, size = 0x12000, scoped, tag = 'internal scratch']
  #allocation2 [shape = 'f32[10,10,32]{2,1,0:T(8,128)}', space=vmem, size = 0x14000, scoped, tag = 'scratch operand']
  %s0 = inlined_call_operand.vmem [shape: f32[2,8,8,16], index: 0, kind: input, shape index: {}]
  %s1 = inlined_call_operand.vmem [shape: f32[2,8,8,16], index: 1, kind: input, shape index: {}]
  %s2 = inlined_call_operand.vmem [shape: f32[4,4,32,4], index: 2, kind: input, shape index: {}]
  %s3 = inlined_call_operand.vmem [shape: f32[1,4], index: 3, kind: input, shape index: {}]
  %s4 = inlined_call_operand.vmem [shape: f32[2,64,16], index: 4, kind: output, shape index: {}]
  %s5 = sld [smem:[#allocation0]]
  $region49: #{dec_attention3_forward.3} parent=0
    _
  %s7 = ssub.s32 1, %s5
  %s8 = scalar_select 0, %s7, %s5
  loop: start=0, step=1, limit=4
  $region2: #{dec_attention3_forward.3} parent=0 // loop_pre_header
    _
  $region3: #{dec_attention3_forward.3} parent=0 // loop_header
    %s10 = sphi 0, %s14
    %p11 = scmp.ge.s32.totalorder %s10, 4
    %s20 = sphi 0, %s22
    %s23 = sphi 0, %s20
    %s24 = sphi 0, %s23
    %s40 = sphi 0, %s24
    %s46 = sphi 0, %s48
    %s49 = sphi 0, %s46
    %s50 = sphi 0, %s49
    %s66 = sphi 0, %s50
    %s70 = sphi 0, %s70
    %s72 = sphi 0, %s70
    %s73 = sphi 0, %s72
    %s87 = sphi 0, %s73
    %s91 = sphi 0, %s91
    %s93 = sphi 0, %s91
    %s94 = sphi 0, %s93
    %s108 = sphi 0, %s94
    %s114 = sphi 0, %s116
    %s117 = sphi 0, %s114
    %s118 = sphi 0, %s117
    %s134 = sphi 0, %s118
  $region4: #{dec_attention3_forward.3} parent=0 // loop_header_branch
    %13 = sbr.rel (%p11) target = $region8
  $region5: #{dec_attention3_forward.3} parent=0 // loop_body
    %s15 = ssub.s32 %s10, 1
    %s16 = ssub.s32 %s10, 2
    %s17 = sadd.s32 %s10, 1
    %s18 = ssub.s32 %s10, %s17
    %p19 = scmp.eq.s32.totalorder %s18, 0
    %s21 = sadd.s32 %s20, 1
    %s22 = scalar_select %p19, %s20, %s21
    %p25 = pneg %p19
    %p26 = scmp.eq.s32.totalorder %s10, 1
    %p27 = por %p25, %p26
    %p28 = scmp.ne.s32.totalorder %s20, %s23
    %p29 = scmp.eq.s32.totalorder %s10, 0
    %p30 = por %p28, %p29
    %p31 = scmp.ne.s32.totalorder %s20, %s23
    %p32 = scmp.eq.s32.totalorder %s15, 1
    %p33 = por %p31, %p32
    %p34 = scmp.ne.s32.totalorder %s23, %s24
    %p35 = scmp.eq.s32.totalorder %s15, 0
    %p36 = por %p34, %p35
    %p37 = scmp.ne.s32.totalorder %s23, %s24
    %p38 = scmp.eq.s32.totalorder %s16, 1
    %p39 = por %p37, %p38
    %p41 = scmp.ne.s32.totalorder %s24, %s40
    %p42 = scmp.eq.s32.totalorder %s16, 0
    %p43 = por %p41, %p42
    %s44 = ssub.s32 %s10, %s17
    %p45 = scmp.eq.s32.totalorder %s44, 0
    %s47 = sadd.s32 %s46, 1
    %s48 = scalar_select %p45, %s46, %s47
    %p51 = pneg %p45
    %p52 = scmp.eq.s32.totalorder %s10, 1
    %p53 = por %p51, %p52
    %p54 = scmp.ne.s32.totalorder %s46, %s49
    %p55 = scmp.eq.s32.totalorder %s10, 0
    %p56 = por %p54, %p55
    %p57 = scmp.ne.s32.totalorder %s46, %s49
    %p58 = scmp.eq.s32.totalorder %s15, 1
    %p59 = por %p57, %p58
    %p60 = scmp.ne.s32.totalorder %s49, %s50
    %p61 = scmp.eq.s32.totalorder %s15, 0
    %p62 = por %p60, %p61
    %p63 = scmp.ne.s32.totalorder %s49, %s50
    %p64 = scmp.eq.s32.totalorder %s16, 1
    %p65 = por %p63, %p64
    %p67 = scmp.ne.s32.totalorder %s50, %s66
    %p68 = scmp.eq.s32.totalorder %s16, 0
    %p69 = por %p67, %p68
    %s71 = sadd.s32 %s70, 1
    %p74 = scmp.eq.s32.totalorder %s10, 1
    %p75 = scmp.ne.s32.totalorder %s70, %s72
    %p76 = scmp.eq.s32.totalorder %s10, 0
    %p77 = por %p75, %p76
    %p78 = scmp.ne.s32.totalorder %s70, %s72
    %p79 = scmp.eq.s32.totalorder %s15, 1
    %p80 = por %p78, %p79
    %p81 = scmp.ne.s32.totalorder %s72, %s73
    %p82 = scmp.eq.s32.totalorder %s15, 0
    %p83 = por %p81, %p82
    %p84 = scmp.ne.s32.totalorder %s72, %s73
    %p85 = scmp.eq.s32.totalorder %s16, 1
    %p86 = por %p84, %p85
    %p88 = scmp.ne.s32.totalorder %s73, %s87
    %p89 = scmp.eq.s32.totalorder %s16, 0
    %p90 = por %p88, %p89
    %s92 = sadd.s32 %s91, 1
    %p95 = scmp.eq.s32.totalorder %s10, 1
    %p96 = scmp.ne.s32.totalorder %s91, %s93
    %p97 = scmp.eq.s32.totalorder %s10, 0
    %p98 = por %p96, %p97
    %p99 = scmp.ne.s32.totalorder %s91, %s93
    %p100 = scmp.eq.s32.totalorder %s15, 1
    %p101 = por %p99, %p100
    %p102 = scmp.ne.s32.totalorder %s93, %s94
    %p103 = scmp.eq.s32.totalorder %s15, 0
    %p104 = por %p102, %p103
    %p105 = scmp.ne.s32.totalorder %s93, %s94
    %p106 = scmp.eq.s32.totalorder %s16, 1
    %p107 = por %p105, %p106
    %p109 = scmp.ne.s32.totalorder %s94, %s108
    %p110 = scmp.eq.s32.totalorder %s16, 0
    %p111 = por %p109, %p110
    %s112 = ssub.s32 %s10, %s17
    %p113 = scmp.eq.s32.totalorder %s112, 0
    %s115 = sadd.s32 %s114, 1
    %s116 = scalar_select %p113, %s114, %s115
    %p119 = pneg %p113
    %p120 = scmp.eq.s32.totalorder %s10, 1
    %p121 = por %p119, %p120
    %p122 = scmp.ne.s32.totalorder %s114, %s117
    %p123 = scmp.eq.s32.totalorder %s10, 0
    %p124 = por %p122, %p123
    %p125 = scmp.ne.s32.totalorder %s114, %s117
    %p126 = scmp.eq.s32.totalorder %s15, 1
    %p127 = por %p125, %p126
    %p128 = scmp.ne.s32.totalorder %s117, %s118
    %p129 = scmp.eq.s32.totalorder %s15, 0
    %p130 = por %p128, %p129
    %p131 = scmp.ne.s32.totalorder %s117, %s118
    %p132 = scmp.eq.s32.totalorder %s16, 1
    %p133 = por %p131, %p132
    %p135 = scmp.ne.s32.totalorder %s118, %s134
    %p136 = scmp.eq.s32.totalorder %s16, 0
    %p137 = por %p135, %p136
    %p138 = scmp.le.s32.totalorder 1, %s10
    %p139 = scmp.lt.s32.totalorder %s10, 3
    %p140 = pnand %p138, %p139
    %p141 = pneg %p140
    // Predicated region
    $region9: #{dec_attention3_forward.3} parent=5 // pred_check
      _
    $region10: #{dec_attention3_forward.3} parent=5 // pred_check_branch
      %143 = sbr.rel (%p140) target = $region12
    $region11: #{dec_attention3_forward.3} parent=5 // pred_region
      %s144 = ssub.s32 %s10, 1
      // Predicated region
      $region13: #{dec_attention3_forward.3} parent=11 // pred_check
        %p145 = pneg %p83
      $region14: #{dec_attention3_forward.3} parent=11 // pred_check_branch
        %147 = sbr.rel (%p145) target = $region16
      $region15: #{dec_attention3_forward.3} parent=11 // pred_region
        _
      $region16: #{dec_attention3_forward.3} parent=11 // pred_fallthru
        _
      // Predicated region
      $region17: #{dec_attention3_forward.3} parent=11 // pred_check
        %p148 = pneg %p104
      $region18: #{dec_attention3_forward.3} parent=11 // pred_check_branch
        %150 = sbr.rel (%p148) target = $region20
      $region19: #{dec_attention3_forward.3} parent=11 // pred_region
        _
      $region20: #{dec_attention3_forward.3} parent=11 // pred_fallthru
        _
    $region12: #{dec_attention3_forward.3} parent=5 // pred_fallthru
      _
    %p151 = scmp.lt.s32.totalorder %s10, 2
    // Predicated region
    $region21: #{dec_attention3_forward.3} parent=5 // pred_check
      %p152 = pneg %p151
    $region22: #{dec_attention3_forward.3} parent=5 // pred_check_branch
      %154 = sbr.rel (%p152) target = $region24
    $region23: #{dec_attention3_forward.3} parent=5 // pred_region
      // Predicated region
      $region25: #{dec_attention3_forward.3} parent=23 // pred_check
        %p155 = pneg %p30
      $region26: #{dec_attention3_forward.3} parent=23 // pred_check_branch
        %157 = sbr.rel (%p155) target = $region28
      $region27: #{dec_attention3_forward.3} parent=23 // pred_region
        %p158 = scmp.lt.s32.totalorder %s10, 1
        %s159 = scalar_select %p158, %s10, 1
        %s160 = smul.addr %s159, 8
        %s161 = smul.addr %s160, 8
        %s162 = scalar_lea.vmem %s0, %s161
      $region28: #{dec_attention3_forward.3} parent=23 // pred_fallthru
        _
      // Predicated region
      $region29: #{dec_attention3_forward.3} parent=23 // pred_check
        %p163 = pneg %p56
      $region30: #{dec_attention3_forward.3} parent=23 // pred_check_branch
        %165 = sbr.rel (%p163) target = $region32
      $region31: #{dec_attention3_forward.3} parent=23 // pred_region
        %p166 = scmp.lt.s32.totalorder %s10, 1
        %s167 = scalar_select %p166, %s10, 1
        %s168 = smul.addr %s167, 8
        %s169 = smul.addr %s168, 8
        %s170 = scalar_lea.vmem %s1, %s169
      $region32: #{dec_attention3_forward.3} parent=23 // pred_fallthru
        _
    $region24: #{dec_attention3_forward.3} parent=5 // pred_fallthru
      _
    %p171 = scmp.le.s32.totalorder 1, %s10
    %p172 = scmp.lt.s32.totalorder %s10, 3
    %p173 = pnand %p171, %p172
    %p174 = pneg %p173
    // Predicated region
    $region33: #{dec_attention3_forward.3} parent=5 // pred_check
      _
    $region34: #{dec_attention3_forward.3} parent=5 // pred_check_branch
      %176 = sbr.rel (%p173) target = $region36
    $region35: #{dec_attention3_forward.3} parent=5 // pred_region
      %s177 = ssub.s32 %s10, 1
      %p178 = scmp.lt.s32.totalorder %s15, 1
      %s179 = scalar_select %p178, %s15, 1
      %s180 = smul.addr %s179, 8
      %s181 = smul.addr %s180, 8
      %s182 = scalar_lea.vmem %s0, %s181
      %p183 = pneg %p36
      %p184 = pneg %p33
      %p185 = scmp.lt.s32.totalorder %s15, 1
      %s186 = scalar_select %p185, %s15, 1
      %s187 = smul.addr %s186, 8
      %s188 = smul.addr %s187, 8
      %s189 = scalar_lea.vmem %s1, %s188
      %p190 = pneg %p62
      %p191 = pneg %p59
      %p192 = pneg %p83
      %p193 = pneg %p80
      %p194 = pneg %p104
      %p195 = pneg %p101
      %p196 = pneg %p130
      %p197 = pneg %p127
      %p198 = scmp.lt.s32.totalorder %s15, 1
      %s199 = scalar_select %p198, %s15, 1
      %s200 = smul.addr %s199, 8
      %s201 = smul.addr %s200, 8
      %s202 = scalar_lea.vmem %s4, %s201
      %p203 = scmp.lt.s32.totalorder %s15, 1
      %s204 = scalar_select %p203, %s15, 1
      %s205 = smul.addr %s204, 8
      %s206 = smul.addr %s205, 8
      %s207 = scalar_lea.vmem %s0, %s206
      %p208 = scmp.lt.s32.totalorder %s15, 1
      %s209 = scalar_select %p208, %s15, 1
      %s210 = smul.addr %s209, 8
      %s211 = smul.addr %s210, 8
      %s212 = scalar_lea.vmem %s1, %s211
      %p213 = scmp.lt.s32.totalorder %s15, 1
      %s214 = scalar_select %p213, %s15, 1
      %s215 = smul.addr %s214, 8
      %s216 = smul.addr %s215, 8
      %s217 = scalar_lea.vmem %s4, %s216
      %vm218 = vcmask 261120
      %219 = vst.msk [vmem:[#allocation2] sm:$0xff] %vm218, 0.0
      %vm220 = vcmask 254976
      %221 = vst.msk [vmem:[#allocation2 + $0x8] sm:$0x3] %vm220, 0.0
      %s222 = scalar_lea.vmem [#allocation2], 144
      %223 = vst.msk [vmem:[%s222] sm:$0xff] %vm218, 0.0
      %224 = vst.msk [vmem:[%s222 + $0x8] sm:$0x3] %vm220, 0.0
      %vm225 = vcmask 253952
      %226 = vst.msk [vmem:[#allocation2] sm:$0x1] %vm225, 0.0
      %227 = vst.msk [vmem:[#allocation2 + $0x10] sm:$0x1] %vm225, 0.0
      %228 = vst.msk [vmem:[#allocation2 + $0x20] sm:$0x1] %vm225, 0.0
      %229 = vst.msk [vmem:[#allocation2 + $0x30] sm:$0x1] %vm225, 0.0
      %230 = vst.msk [vmem:[#allocation2 + $0x40] sm:$0x1] %vm225, 0.0
      %231 = vst.msk [vmem:[#allocation2 + $0x50] sm:$0x1] %vm225, 0.0
      %232 = vst.msk [vmem:[#allocation2 + $0x60] sm:$0x1] %vm225, 0.0
      %233 = vst.msk [vmem:[#allocation2 + $0x70] sm:$0x1] %vm225, 0.0
      %234 = vst.msk [vmem:[#allocation2 + $0x80] sm:$0x1] %vm225, 0.0
      %235 = vst.msk [vmem:[#allocation2 + $0x90] sm:$0x1] %vm225, 0.0
      %236 = vst.msk [vmem:[#allocation2 + $0x9] sm:$0x1] %vm225, 0.0
      %237 = vst.msk [vmem:[#allocation2 + $0x19] sm:$0x1] %vm225, 0.0
      %238 = vst.msk [vmem:[#allocation2 + $0x29] sm:$0x1] %vm225, 0.0
      %239 = vst.msk [vmem:[#allocation2 + $0x39] sm:$0x1] %vm225, 0.0
      %240 = vst.msk [vmem:[#allocation2 + $0x49] sm:$0x1] %vm225, 0.0
      %241 = vst.msk [vmem:[#allocation2 + $0x59] sm:$0x1] %vm225, 0.0
      %242 = vst.msk [vmem:[#allocation2 + $0x69] sm:$0x1] %vm225, 0.0
      %243 = vst.msk [vmem:[#allocation2 + $0x79] sm:$0x1] %vm225, 0.0
      %244 = vst.msk [vmem:[#allocation2 + $0x89] sm:$0x1] %vm225, 0.0
      %245 = vst.msk [vmem:[#allocation2 + $0x99] sm:$0x1] %vm225, 0.0
      %v246 = vld [vmem:[%s207] sm:$0xff]
      %v247 = vld [vmem:[%s207 + $0x8] sm:$0xff]
      %v248 = vld [vmem:[%s207 + $0x10] sm:$0xff]
      %v249 = vld [vmem:[%s207 + $0x18] sm:$0xff]
      %v250 = vld [vmem:[%s207 + $0x20] sm:$0xff]
      %v251 = vld [vmem:[%s207 + $0x28] sm:$0xff]
      %v252 = vld [vmem:[%s207 + $0x30] sm:$0xff]
      %v253 = vld [vmem:[%s207 + $0x38] sm:$0xff]
      %s254 = scalar_lea.vmem [#allocation2], 16
      %vm255 = vcmask 130048
      %256 = vst.msk [vmem:[%s254 + $0x1] sm:$0xff] %vm255, %v246
      %257 = vst.msk [vmem:[%s254 + $0x11] sm:$0xff] %vm255, %v247
      %258 = vst.msk [vmem:[%s254 + $0x21] sm:$0xff] %vm255, %v248
      %259 = vst.msk [vmem:[%s254 + $0x31] sm:$0xff] %vm255, %v249
      %260 = vst.msk [vmem:[%s254 + $0x41] sm:$0xff] %vm255, %v250
      %261 = vst.msk [vmem:[%s254 + $0x51] sm:$0xff] %vm255, %v251
      %262 = vst.msk [vmem:[%s254 + $0x61] sm:$0xff] %vm255, %v252
      %263 = vst.msk [vmem:[%s254 + $0x71] sm:$0xff] %vm255, %v253
      %v264 = vld [vmem:[%s212] sm:$0xff]
      %v265 = vld [vmem:[%s212 + $0x8] sm:$0xff]
      %v266 = vld [vmem:[%s212 + $0x10] sm:$0xff]
      %v267 = vld [vmem:[%s212 + $0x18] sm:$0xff]
      %v268 = vld [vmem:[%s212 + $0x20] sm:$0xff]
      %v269 = vld [vmem:[%s212 + $0x28] sm:$0xff]
      %v270 = vld [vmem:[%s212 + $0x30] sm:$0xff]
      %v271 = vld [vmem:[%s212 + $0x38] sm:$0xff]
      %280 = vrot.lane.b32.xlu0 %v264, 16
      %v281 = vpop.permute.xlu0 %280
      %282 = vrot.lane.b32.xlu0 %v265, 16
      %v283 = vpop.permute.xlu0 %282
      %284 = vrot.lane.b32.xlu0 %v266, 16
      %v285 = vpop.permute.xlu0 %284
      %286 = vrot.lane.b32.xlu0 %v267, 16
      %v287 = vpop.permute.xlu0 %286
      %288 = vrot.lane.b32.xlu0 %v268, 16
      %v289 = vpop.permute.xlu0 %288
      %290 = vrot.lane.b32.xlu0 %v269, 16
      %v291 = vpop.permute.xlu0 %290
      %292 = vrot.lane.b32.xlu0 %v270, 16
      %v293 = vpop.permute.xlu0 %292
      %294 = vrot.lane.b32.xlu0 %v271, 16
      %v295 = vpop.permute.xlu0 %294
      %vm304 = vcmask 261248
      %305 = vst.msk [vmem:[%s254 + $0x1] sm:$0xff] %vm304, %v281
      %306 = vst.msk [vmem:[%s254 + $0x11] sm:$0xff] %vm304, %v283
      %307 = vst.msk [vmem:[%s254 + $0x21] sm:$0xff] %vm304, %v285
      %308 = vst.msk [vmem:[%s254 + $0x31] sm:$0xff] %vm304, %v287
      %309 = vst.msk [vmem:[%s254 + $0x41] sm:$0xff] %vm304, %v289
      %310 = vst.msk [vmem:[%s254 + $0x51] sm:$0xff] %vm304, %v291
      %311 = vst.msk [vmem:[%s254 + $0x61] sm:$0xff] %vm304, %v293
      %312 = vst.msk [vmem:[%s254 + $0x71] sm:$0xff] %vm304, %v295
      %v313 = vld [vmem:[%s3] sm:$0x1]
      %v314 = vld [vmem:[#allocation2] sm:$0xff]
      %v315 = vld [vmem:[#allocation2 + $0x10] sm:$0xff]
      %v316 = vld [vmem:[#allocation2 + $0x20] sm:$0xff]
      %v317 = vld [vmem:[#allocation2 + $0x30] sm:$0xff]
      %v318 = vld [vmem:[#allocation2 + $0x40] sm:$0xff]
      %v319 = vld [vmem:[#allocation2 + $0x50] sm:$0xff]
      %v320 = vld [vmem:[#allocation2 + $0x60] sm:$0xff]
      %v321 = vld [vmem:[#allocation2 + $0x70] sm:$0xff]
      %v322 = vld [vmem:[%s2] sm:$0xff]
      %v323 = vld [vmem:[%s2 + $0x8] sm:$0xff]
      %v324 = vld [vmem:[%s2 + $0x10] sm:$0xff]
      %v325 = vld [vmem:[%s2 + $0x18] sm:$0xff]
      %v326 = vld [vmem:[#allocation2 + $0x1] sm:$0xff]
      %v327 = vld [vmem:[#allocation2 + $0x11] sm:$0xff]
      %v328 = vld [vmem:[#allocation2 + $0x21] sm:$0xff]
      %v329 = vld [vmem:[#allocation2 + $0x31] sm:$0xff]
      %v330 = vld [vmem:[#allocation2 + $0x41] sm:$0xff]
      %v331 = vld [vmem:[#allocation2 + $0x51] sm:$0xff]
      %v332 = vld [vmem:[#allocation2 + $0x61] sm:$0xff]
      %v333 = vld [vmem:[#allocation2 + $0x71] sm:$0xff]
      %s334 = scalar_lea.vmem %s2, 32
      %v335 = vld [vmem:[%s334] sm:$0xff]
      %v336 = vld [vmem:[%s334 + $0x8] sm:$0xff]
      %v337 = vld [vmem:[%s334 + $0x10] sm:$0xff]
      %v338 = vld [vmem:[%s334 + $0x18] sm:$0xff]
      %v340 = vsel %vm218, %v326, 0
      %v343 = vsel %vm218, %v327, 0
      %v346 = vsel %vm218, %v328, 0
      %v349 = vsel %vm218, %v329, 0
      %v352 = vsel %vm218, %v330, 0
      %v355 = vsel %vm218, %v331, 0
      %v358 = vsel %vm218, %v332, 0
      %v361 = vsel %vm218, %v333, 0
      %363 = vmatprep.subr.mxu0 0.0
      %364 = vmatpush1.msra.mxu0 0.0
      %365 = vmatprep.subr.mxu0 0.0
      %366 = vmatpush1.msra.mxu0 0.0
      %367 = vmatprep.subr.mxu0 0.0
      %368 = vmatpush1.msra.mxu0 0.0
      %369 = vmatprep.subr.mxu0 0.0
      %370 = vmatpush1.msra.mxu0 0.0
      %371 = vmatprep.subr.mxu0 0.0
      %372 = vmatpush1.msra.mxu0 0.0
      %373 = vmatprep.subr.mxu0 0.0
      %374 = vmatpush1.msra.mxu0 0.0
      %375 = vmatprep.subr.mxu0 0.0
      %376 = vmatpush1.msra.mxu0 0.0
      %377 = vmatprep.subr.mxu0 0.0
      %378 = vmatpush1.msra.mxu0 0.0
      %379 = vmatprep.subr.mxu0 0.0
      %380 = vmatpush1.msra.mxu0 0.0
      %381 = vmatprep.subr.mxu0 0.0
      %382 = vmatpush1.msra.mxu0 0.0
      %383 = vmatprep.subr.mxu0 0.0
      %384 = vmatpush1.msra.mxu0 0.0
      %385 = vmatprep.subr.mxu0 0.0
      %386 = vmatpush1.msra.mxu0 0.0
      %387 = vmatprep.subr.mxu0 0.0
      %388 = vmatpush1.msra.mxu0 %v338
      %389 = vmatprep.subr.mxu0 0.0
      %390 = vmatpush1.msra.mxu0 %v337
      %391 = vmatprep.subr.mxu0 0.0
      %392 = vmatpush1.msra.mxu0 %v336
      %393 = vmatprep.subr.mxu0 0.0
      %394 = vmatpush1.msra.mxu0 %v335
      %395 = vmatprep.subr.mxu0 0.0
      %396 = vmatpush2.msra.mxu0 0.0
      %397 = vmatprep.subr.mxu0 0.0
      %398 = vmatpush2.msra.mxu0 0.0
      %399 = vmatprep.subr.mxu0 0.0
      %400 = vmatpush2.msra.mxu0 0.0
      %401 = vmatprep.subr.mxu0 0.0
      %402 = vmatpush2.msra.mxu0 0.0
      %403 = vmatprep.subr.mxu0 0.0
      %404 = vmatpush2.msra.mxu0 0.0
      %405 = vmatprep.subr.mxu0 0.0
      %406 = vmatpush2.msra.mxu0 0.0
      %407 = vmatprep.subr.mxu0 0.0
      %408 = vmatpush2.msra.mxu0 0.0
      %409 = vmatprep.subr.mxu0 0.0
      %410 = vmatpush2.msra.mxu0 0.0
      %411 = vmatprep.subr.mxu0 0.0
      %412 = vmatpush2.msra.mxu0 0.0
      %413 = vmatprep.subr.mxu0 0.0
      %414 = vmatpush2.msra.mxu0 0.0
      %415 = vmatprep.subr.mxu0 0.0
      %416 = vmatpush2.msra.mxu0 0.0
      %417 = vmatprep.subr.mxu0 0.0
      %418 = vmatpush2.msra.mxu0 0.0
      %419 = vmatprep.subr.mxu0 0.0
      %420 = vmatpush2.msra.mxu0 0.0
      %421 = vmatprep.subr.mxu0 0.0
      %422 = vmatpush2.msra.mxu0 0.0
      %423 = vmatprep.subr.mxu0 0.0
      %424 = vmatpush2.msra.mxu0 0.0
      %425 = vmatprep.subr.mxu0 0.0
      %426 = vmatpush2.msra.mxu0 0.0
      %427 = vmatprep.mubr.f32.mxu0 0.0
      %428 = vmatmul.mubr.f32.gmra.mxu0 %v340
      %v429 = vpop.f32.mrf.mxu0
      %v430 = vadd.f32 0.0, %v429
      %v431 = vpop.f32.mrf.mxu0
      %432 = vmatprep.mubr.f32.mxu0 0.0
      %433 = vmatmul.mubr.f32.gmra.mxu0 %v343
      %v434 = vpop.f32.mrf.mxu0
      %v435 = vadd.f32 0.0, %v434
      %v436 = vpop.f32.mrf.mxu0
      %437 = vmatprep.mubr.f32.mxu0 0.0
      %438 = vmatmul.mubr.f32.gmra.mxu0 %v346
      %v439 = vpop.f32.mrf.mxu0
      %v440 = vadd.f32 0.0, %v439
      %v441 = vpop.f32.mrf.mxu0
      %442 = vmatprep.mubr.f32.mxu0 0.0
      %443 = vmatmul.mubr.f32.gmra.mxu0 %v349
      %v444 = vpop.f32.mrf.mxu0
      %v445 = vadd.f32 0.0, %v444
      %v446 = vpop.f32.mrf.mxu0
      %447 = vmatprep.mubr.f32.mxu0 0.0
      %448 = vmatmul.mubr.f32.gmra.mxu0 %v352
      %v449 = vpop.f32.mrf.mxu0
      %v450 = vadd.f32 0.0, %v449
      %v451 = vpop.f32.mrf.mxu0
      %452 = vmatprep.mubr.f32.mxu0 0.0
      %453 = vmatmul.mubr.f32.gmra.mxu0 %v355
      %v454 = vpop.f32.mrf.mxu0
      %v455 = vadd.f32 0.0, %v454
      %v456 = vpop.f32.mrf.mxu0
      %457 = vmatprep.mubr.f32.mxu0 0.0
      %458 = vmatmul.mubr.f32.gmra.mxu0 %v358
      %v459 = vpop.f32.mrf.mxu0
      %v460 = vadd.f32 0.0, %v459
      %v461 = vpop.f32.mrf.mxu0
      %462 = vmatprep.mubr.f32.mxu0 0.0
      %463 = vmatmul.mubr.f32.gmra.mxu0 %v361
      %v464 = vpop.f32.mrf.mxu0
      %v465 = vadd.f32 0.0, %v464
      %v466 = vpop.f32.mrf.mxu0
      %467 = vdwg.mxu0
      %v469 = vsel %vm218, %v314, 0
      %v472 = vsel %vm218, %v315, 0
      %v475 = vsel %vm218, %v316, 0
      %v478 = vsel %vm218, %v317, 0
      %v481 = vsel %vm218, %v318, 0
      %v484 = vsel %vm218, %v319, 0
      %v487 = vsel %vm218, %v320, 0
      %v490 = vsel %vm218, %v321, 0
      %492 = vmatprep.subr.mxu0 0.0
      %493 = vmatpush1.msra.mxu0 0.0
      %494 = vmatprep.subr.mxu0 0.0
      %495 = vmatpush1.msra.mxu0 0.0
      %496 = vmatprep.subr.mxu0 0.0
      %497 = vmatpush1.msra.mxu0 0.0
      %498 = vmatprep.subr.mxu0 0.0
      %499 = vmatpush1.msra.mxu0 0.0
      %500 = vmatprep.subr.mxu0 0.0
      %501 = vmatpush1.msra.mxu0 0.0
      %502 = vmatprep.subr.mxu0 0.0
      %503 = vmatpush1.msra.mxu0 0.0
      %504 = vmatprep.subr.mxu0 0.0
      %505 = vmatpush1.msra.mxu0 0.0
      %506 = vmatprep.subr.mxu0 0.0
      %507 = vmatpush1.msra.mxu0 0.0
      %508 = vmatprep.subr.mxu0 0.0
      %509 = vmatpush1.msra.mxu0 0.0
      %510 = vmatprep.subr.mxu0 0.0
      %511 = vmatpush1.msra.mxu0 0.0
      %512 = vmatprep.subr.mxu0 0.0
      %513 = vmatpush1.msra.mxu0 0.0
      %514 = vmatprep.subr.mxu0 0.0
      %515 = vmatpush1.msra.mxu0 0.0
      %516 = vmatprep.subr.mxu0 0.0
      %517 = vmatpush1.msra.mxu0 %v325
      %518 = vmatprep.subr.mxu0 0.0
      %519 = vmatpush1.msra.mxu0 %v324
      %520 = vmatprep.subr.mxu0 0.0
      %521 = vmatpush1.msra.mxu0 %v323
      %522 = vmatprep.subr.mxu0 0.0
      %523 = vmatpush1.msra.mxu0 %v322
      %524 = vmatprep.subr.mxu0 0.0
      %525 = vmatpush2.msra.mxu0 0.0
      %526 = vmatprep.subr.mxu0 0.0
      %527 = vmatpush2.msra.mxu0 0.0
      %528 = vmatprep.subr.mxu0 0.0
      %529 = vmatpush2.msra.mxu0 0.0
      %530 = vmatprep.subr.mxu0 0.0
      %531 = vmatpush2.msra.mxu0 0.0
      %532 = vmatprep.subr.mxu0 0.0
      %533 = vmatpush2.msra.mxu0 0.0
      %534 = vmatprep.subr.mxu0 0.0
      %535 = vmatpush2.msra.mxu0 0.0
      %536 = vmatprep.subr.mxu0 0.0
      %537 = vmatpush2.msra.mxu0 0.0
      %538 = vmatprep.subr.mxu0 0.0
      %539 = vmatpush2.msra.mxu0 0.0
      %540 = vmatprep.subr.mxu0 0.0
      %541 = vmatpush2.msra.mxu0 0.0
      %542 = vmatprep.subr.mxu0 0.0
      %543 = vmatpush2.msra.mxu0 0.0
      %544 = vmatprep.subr.mxu0 0.0
      %545 = vmatpush2.msra.mxu0 0.0
      %546 = vmatprep.subr.mxu0 0.0
      %547 = vmatpush2.msra.mxu0 0.0
      %548 = vmatprep.subr.mxu0 0.0
      %549 = vmatpush2.msra.mxu0 0.0
      %550 = vmatprep.subr.mxu0 0.0
      %551 = vmatpush2.msra.mxu0 0.0
      %552 = vmatprep.subr.mxu0 0.0
      %553 = vmatpush2.msra.mxu0 0.0
      %554 = vmatprep.subr.mxu0 0.0
      %555 = vmatpush2.msra.mxu0 0.0
      %556 = vmatprep.mubr.f32.mxu0 0.0
      %557 = vmatmul.mubr.f32.gmra.mxu0 %v469
      %v558 = vpop.f32.mrf.mxu0
      %v559 = vadd.f32 %v430, %v558
      %v560 = vpop.f32.mrf.mxu0
      %561 = vmatprep.mubr.f32.mxu0 0.0
      %562 = vmatmul.mubr.f32.gmra.mxu0 %v472
      %v563 = vpop.f32.mrf.mxu0
      %v564 = vadd.f32 %v435, %v563
      %v565 = vpop.f32.mrf.mxu0
      %566 = vmatprep.mubr.f32.mxu0 0.0
      %567 = vmatmul.mubr.f32.gmra.mxu0 %v475
      %v568 = vpop.f32.mrf.mxu0
      %v569 = vadd.f32 %v440, %v568
      %v570 = vpop.f32.mrf.mxu0
      %571 = vmatprep.mubr.f32.mxu0 0.0
      %572 = vmatmul.mubr.f32.gmra.mxu0 %v478
      %v573 = vpop.f32.mrf.mxu0
      %v574 = vadd.f32 %v445, %v573
      %v575 = vpop.f32.mrf.mxu0
      %576 = vmatprep.mubr.f32.mxu0 0.0
      %577 = vmatmul.mubr.f32.gmra.mxu0 %v481
      %v578 = vpop.f32.mrf.mxu0
      %v579 = vadd.f32 %v450, %v578
      %v580 = vpop.f32.mrf.mxu0
      %581 = vmatprep.mubr.f32.mxu0 0.0
      %582 = vmatmul.mubr.f32.gmra.mxu0 %v484
      %v583 = vpop.f32.mrf.mxu0
      %v584 = vadd.f32 %v455, %v583
      %v585 = vpop.f32.mrf.mxu0
      %586 = vmatprep.mubr.f32.mxu0 0.0
      %587 = vmatmul.mubr.f32.gmra.mxu0 %v487
      %v588 = vpop.f32.mrf.mxu0
      %v589 = vadd.f32 %v460, %v588
      %v590 = vpop.f32.mrf.mxu0
      %591 = vmatprep.mubr.f32.mxu0 0.0
      %592 = vmatmul.mubr.f32.gmra.mxu0 %v490
      %v593 = vpop.f32.mrf.mxu0
      %v594 = vadd.f32 %v465, %v593
      %v595 = vpop.f32.mrf.mxu0
      %596 = vdwg.mxu0
      %v597 = vld [vmem:[%s254] sm:$0xff]
      %v598 = vld [vmem:[%s254 + $0x10] sm:$0xff]
      %v599 = vld [vmem:[%s254 + $0x20] sm:$0xff]
      %v600 = vld [vmem:[%s254 + $0x30] sm:$0xff]
      %v601 = vld [vmem:[%s254 + $0x40] sm:$0xff]
      %v602 = vld [vmem:[%s254 + $0x50] sm:$0xff]
      %v603 = vld [vmem:[%s254 + $0x60] sm:$0xff]
      %v604 = vld [vmem:[%s254 + $0x70] sm:$0xff]
      %s605 = scalar_lea.vmem %s2, 64
      %v606 = vld [vmem:[%s605] sm:$0xff]
      %v607 = vld [vmem:[%s605 + $0x8] sm:$0xff]
      %v608 = vld [vmem:[%s605 + $0x10] sm:$0xff]
      %v609 = vld [vmem:[%s605 + $0x18] sm:$0xff]
      %v611 = vsel %vm218, %v597, 0
      %v614 = vsel %vm218, %v598, 0
      %v617 = vsel %vm218, %v599, 0
      %v620 = vsel %vm218, %v600, 0
      %v623 = vsel %vm218, %v601, 0
      %v626 = vsel %vm218, %v602, 0
      %v629 = vsel %vm218, %v603, 0
      %v632 = vsel %vm218, %v604, 0
      %634 = vmatprep.subr.mxu0 0.0
      %635 = vmatpush1.msra.mxu0 0.0
      %636 = vmatprep.subr.mxu0 0.0
      %637 = vmatpush1.msra.mxu0 0.0
      %638 = vmatprep.subr.mxu0 0.0
      %639 = vmatpush1.msra.mxu0 0.0
      %640 = vmatprep.subr.mxu0 0.0
      %641 = vmatpush1.msra.mxu0 0.0
      %642 = vmatprep.subr.mxu0 0.0
      %643 = vmatpush1.msra.mxu0 0.0
      %644 = vmatprep.subr.mxu0 0.0
      %645 = vmatpush1.msra.mxu0 0.0
      %646 = vmatprep.subr.mxu0 0.0
      %647 = vmatpush1.msra.mxu0 0.0
      %648 = vmatprep.subr.mxu0 0.0
      %649 = vmatpush1.msra.mxu0 0.0
      %650 = vmatprep.subr.mxu0 0.0
      %651 = vmatpush1.msra.mxu0 0.0
      %652 = vmatprep.subr.mxu0 0.0
      %653 = vmatpush1.msra.mxu0 0.0
      %654 = vmatprep.subr.mxu0 0.0
      %655 = vmatpush1.msra.mxu0 0.0
      %656 = vmatprep.subr.mxu0 0.0
      %657 = vmatpush1.msra.mxu0 0.0
      %658 = vmatprep.subr.mxu0 0.0
      %659 = vmatpush1.msra.mxu0 %v609
      %660 = vmatprep.subr.mxu0 0.0
      %661 = vmatpush1.msra.mxu0 %v608
      %662 = vmatprep.subr.mxu0 0.0
      %663 = vmatpush1.msra.mxu0 %v607
      %664 = vmatprep.subr.mxu0 0.0
      %665 = vmatpush1.msra.mxu0 %v606
      %666 = vmatprep.subr.mxu0 0.0
      %667 = vmatpush2.msra.mxu0 0.0
      %668 = vmatprep.subr.mxu0 0.0
      %669 = vmatpush2.msra.mxu0 0.0
      %670 = vmatprep.subr.mxu0 0.0
      %671 = vmatpush2.msra.mxu0 0.0
      %672 = vmatprep.subr.mxu0 0.0
      %673 = vmatpush2.msra.mxu0 0.0
      %674 = vmatprep.subr.mxu0 0.0
      %675 = vmatpush2.msra.mxu0 0.0
      %676 = vmatprep.subr.mxu0 0.0
      %677 = vmatpush2.msra.mxu0 0.0
      %678 = vmatprep.subr.mxu0 0.0
      %679 = vmatpush2.msra.mxu0 0.0
      %680 = vmatprep.subr.mxu0 0.0
      %681 = vmatpush2.msra.mxu0 0.0
      %682 = vmatprep.subr.mxu0 0.0
      %683 = vmatpush2.msra.mxu0 0.0
      %684 = vmatprep.subr.mxu0 0.0
      %685 = vmatpush2.msra.mxu0 0.0
      %686 = vmatprep.subr.mxu0 0.0
      %687 = vmatpush2.msra.mxu0 0.0
      %688 = vmatprep.subr.mxu0 0.0
      %689 = vmatpush2.msra.mxu0 0.0
      %690 = vmatprep.subr.mxu0 0.0
      %691 = vmatpush2.msra.mxu0 0.0
      %692 = vmatprep.subr.mxu0 0.0
      %693 = vmatpush2.msra.mxu0 0.0
      %694 = vmatprep.subr.mxu0 0.0
      %695 = vmatpush2.msra.mxu0 0.0
      %696 = vmatprep.subr.mxu0 0.0
      %697 = vmatpush2.msra.mxu0 0.0
      %698 = vmatprep.mubr.f32.mxu0 0.0
      %699 = vmatmul.mubr.f32.gmra.mxu0 %v611
      %v700 = vpop.f32.mrf.mxu0
      %v701 = vadd.f32 0.0, %v700
      %v702 = vpop.f32.mrf.mxu0
      %703 = vmatprep.mubr.f32.mxu0 0.0
      %704 = vmatmul.mubr.f32.gmra.mxu0 %v614
      %v705 = vpop.f32.mrf.mxu0
      %v706 = vadd.f32 0.0, %v705
      %v707 = vpop.f32.mrf.mxu0
      %708 = vmatprep.mubr.f32.mxu0 0.0
      %709 = vmatmul.mubr.f32.gmra.mxu0 %v617
      %v710 = vpop.f32.mrf.mxu0
      %v711 = vadd.f32 0.0, %v710
      %v712 = vpop.f32.mrf.mxu0
      %713 = vmatprep.mubr.f32.mxu0 0.0
      %714 = vmatmul.mubr.f32.gmra.mxu0 %v620
      %v715 = vpop.f32.mrf.mxu0
      %v716 = vadd.f32 0.0, %v715
      %v717 = vpop.f32.mrf.mxu0
      %718 = vmatprep.mubr.f32.mxu0 0.0
      %719 = vmatmul.mubr.f32.gmra.mxu0 %v623
      %v720 = vpop.f32.mrf.mxu0
      %v721 = vadd.f32 0.0, %v720
      %v722 = vpop.f32.mrf.mxu0
      %723 = vmatprep.mubr.f32.mxu0 0.0
      %724 = vmatmul.mubr.f32.gmra.mxu0 %v626
      %v725 = vpop.f32.mrf.mxu0
      %v726 = vadd.f32 0.0, %v725
      %v727 = vpop.f32.mrf.mxu0
      %728 = vmatprep.mubr.f32.mxu0 0.0
      %729 = vmatmul.mubr.f32.gmra.mxu0 %v629
      %v730 = vpop.f32.mrf.mxu0
      %v731 = vadd.f32 0.0, %v730
      %v732 = vpop.f32.mrf.mxu0
      %733 = vmatprep.mubr.f32.mxu0 0.0
      %734 = vmatmul.mubr.f32.gmra.mxu0 %v632
      %v735 = vpop.f32.mrf.mxu0
      %v736 = vadd.f32 0.0, %v735
      %v737 = vpop.f32.mrf.mxu0
      %738 = vdwg.mxu0
      %v739 = vadd.f32 %v559, %v701
      %v740 = vadd.f32 %v564, %v706
      %v741 = vadd.f32 %v569, %v711
      %v742 = vadd.f32 %v574, %v716
      %v743 = vadd.f32 %v579, %v721
      %v744 = vadd.f32 %v584, %v726
      %v745 = vadd.f32 %v589, %v731
      %v746 = vadd.f32 %v594, %v736
      %v747 = vld [vmem:[%s254 + $0x1] sm:$0xff]
      %v748 = vld [vmem:[%s254 + $0x11] sm:$0xff]
      %v749 = vld [vmem:[%s254 + $0x21] sm:$0xff]
      %v750 = vld [vmem:[%s254 + $0x31] sm:$0xff]
      %v751 = vld [vmem:[%s254 + $0x41] sm:$0xff]
      %v752 = vld [vmem:[%s254 + $0x51] sm:$0xff]
      %v753 = vld [vmem:[%s254 + $0x61] sm:$0xff]
      %v754 = vld [vmem:[%s254 + $0x71] sm:$0xff]
      %s755 = scalar_lea.vmem %s2, 96
      %v756 = vld [vmem:[%s755] sm:$0xff]
      %v757 = vld [vmem:[%s755 + $0x8] sm:$0xff]
      %v758 = vld [vmem:[%s755 + $0x10] sm:$0xff]
      %v759 = vld [vmem:[%s755 + $0x18] sm:$0xff]
      %v761 = vsel %vm218, %v747, 0
      %v764 = vsel %vm218, %v748, 0
      %v767 = vsel %vm218, %v749, 0
      %v770 = vsel %vm218, %v750, 0
      %v773 = vsel %vm218, %v751, 0
      %v776 = vsel %vm218, %v752, 0
      %v779 = vsel %vm218, %v753, 0
      %v782 = vsel %vm218, %v754, 0
      %784 = vmatprep.subr.mxu0 0.0
      %785 = vmatpush1.msra.mxu0 0.0
      %786 = vmatprep.subr.mxu0 0.0
      %787 = vmatpush1.msra.mxu0 0.0
      %788 = vmatprep.subr.mxu0 0.0
      %789 = vmatpush1.msra.mxu0 0.0
      %790 = vmatprep.subr.mxu0 0.0
      %791 = vmatpush1.msra.mxu0 0.0
      %792 = vmatprep.subr.mxu0 0.0
      %793 = vmatpush1.msra.mxu0 0.0
      %794 = vmatprep.subr.mxu0 0.0
      %795 = vmatpush1.msra.mxu0 0.0
      %796 = vmatprep.subr.mxu0 0.0
      %797 = vmatpush1.msra.mxu0 0.0
      %798 = vmatprep.subr.mxu0 0.0
      %799 = vmatpush1.msra.mxu0 0.0
      %800 = vmatprep.subr.mxu0 0.0
      %801 = vmatpush1.msra.mxu0 0.0
      %802 = vmatprep.subr.mxu0 0.0
      %803 = vmatpush1.msra.mxu0 0.0
      %804 = vmatprep.subr.mxu0 0.0
      %805 = vmatpush1.msra.mxu0 0.0
      %806 = vmatprep.subr.mxu0 0.0
      %807 = vmatpush1.msra.mxu0 0.0
      %808 = vmatprep.subr.mxu0 0.0
      %809 = vmatpush1.msra.mxu0 %v759
      %810 = vmatprep.subr.mxu0 0.0
      %811 = vmatpush1.msra.mxu0 %v758
      %812 = vmatprep.subr.mxu0 0.0
      %813 = vmatpush1.msra.mxu0 %v757
      %814 = vmatprep.subr.mxu0 0.0
      %815 = vmatpush1.msra.mxu0 %v756
      %816 = vmatprep.subr.mxu0 0.0
      %817 = vmatpush2.msra.mxu0 0.0
      %818 = vmatprep.subr.mxu0 0.0
      %819 = vmatpush2.msra.mxu0 0.0
      %820 = vmatprep.subr.mxu0 0.0
      %821 = vmatpush2.msra.mxu0 0.0
      %822 = vmatprep.subr.mxu0 0.0
      %823 = vmatpush2.msra.mxu0 0.0
      %824 = vmatprep.subr.mxu0 0.0
      %825 = vmatpush2.msra.mxu0 0.0
      %826 = vmatprep.subr.mxu0 0.0
      %827 = vmatpush2.msra.mxu0 0.0
      %828 = vmatprep.subr.mxu0 0.0
      %829 = vmatpush2.msra.mxu0 0.0
      %830 = vmatprep.subr.mxu0 0.0
      %831 = vmatpush2.msra.mxu0 0.0
      %832 = vmatprep.subr.mxu0 0.0
      %833 = vmatpush2.msra.mxu0 0.0
      %834 = vmatprep.subr.mxu0 0.0
      %835 = vmatpush2.msra.mxu0 0.0
      %836 = vmatprep.subr.mxu0 0.0
      %837 = vmatpush2.msra.mxu0 0.0
      %838 = vmatprep.subr.mxu0 0.0
      %839 = vmatpush2.msra.mxu0 0.0
      %840 = vmatprep.subr.mxu0 0.0
      %841 = vmatpush2.msra.mxu0 0.0
      %842 = vmatprep.subr.mxu0 0.0
      %843 = vmatpush2.msra.mxu0 0.0
      %844 = vmatprep.subr.mxu0 0.0
      %845 = vmatpush2.msra.mxu0 0.0
      %846 = vmatprep.subr.mxu0 0.0
      %847 = vmatpush2.msra.mxu0 0.0
      %848 = vmatprep.mubr.f32.mxu0 0.0
      %849 = vmatmul.mubr.f32.gmra.mxu0 %v761
      %v850 = vpop.f32.mrf.mxu0
      %v851 = vadd.f32 0.0, %v850
      %v852 = vpop.f32.mrf.mxu0
      %853 = vmatprep.mubr.f32.mxu0 0.0
      %854 = vmatmul.mubr.f32.gmra.mxu0 %v764
      %v855 = vpop.f32.mrf.mxu0
      %v856 = vadd.f32 0.0, %v855
      %v857 = vpop.f32.mrf.mxu0
      %858 = vmatprep.mubr.f32.mxu0 0.0
      %859 = vmatmul.mubr.f32.gmra.mxu0 %v767
      %v860 = vpop.f32.mrf.mxu0
      %v861 = vadd.f32 0.0, %v860
      %v862 = vpop.f32.mrf.mxu0
      %863 = vmatprep.mubr.f32.mxu0 0.0
      %864 = vmatmul.mubr.f32.gmra.mxu0 %v770
      %v865 = vpop.f32.mrf.mxu0
      %v866 = vadd.f32 0.0, %v865
      %v867 = vpop.f32.mrf.mxu0
      %868 = vmatprep.mubr.f32.mxu0 0.0
      %869 = vmatmul.mubr.f32.gmra.mxu0 %v773
      %v870 = vpop.f32.mrf.mxu0
      %v871 = vadd.f32 0.0, %v870
      %v872 = vpop.f32.mrf.mxu0
      %873 = vmatprep.mubr.f32.mxu0 0.0
      %874 = vmatmul.mubr.f32.gmra.mxu0 %v776
      %v875 = vpop.f32.mrf.mxu0
      %v876 = vadd.f32 0.0, %v875
      %v877 = vpop.f32.mrf.mxu0
      %878 = vmatprep.mubr.f32.mxu0 0.0
      %879 = vmatmul.mubr.f32.gmra.mxu0 %v779
      %v880 = vpop.f32.mrf.mxu0
      %v881 = vadd.f32 0.0, %v880
      %v882 = vpop.f32.mrf.mxu0
      %883 = vmatprep.mubr.f32.mxu0 0.0
      %884 = vmatmul.mubr.f32.gmra.mxu0 %v782
      %v885 = vpop.f32.mrf.mxu0
      %v886 = vadd.f32 0.0, %v885
      %v887 = vpop.f32.mrf.mxu0
      %888 = vdwg.mxu0
      %v889 = vadd.f32 %v739, %v851
      %v890 = vadd.f32 %v740, %v856
      %v891 = vadd.f32 %v741, %v861
      %v892 = vadd.f32 %v742, %v866
      %v893 = vadd.f32 %v743, %v871
      %v894 = vadd.f32 %v744, %v876
      %v895 = vadd.f32 %v745, %v881
      %v896 = vadd.f32 %v746, %v886
      %v898 = vlaneseq
      %v899 = vshrl.u32 %v898, 7
      %v900 = vsub.s32 0, %v899
      %v901 = vrot.slane %v313, %v900
      %v903 = vadd.f32 %v889, %v901
      %v904 = vadd.f32 %v890, %v901
      %v905 = vadd.f32 %v891, %v901
      %v906 = vadd.f32 %v892, %v901
      %v907 = vadd.f32 %v893, %v901
      %v908 = vadd.f32 %v894, %v901
      %v909 = vadd.f32 %v895, %v901
      %v910 = vadd.f32 %v896, %v901
      %v911 = vmax.f32 %v903, 0.0
      %v912 = vmax.f32 %v904, 0.0
      %v913 = vmax.f32 %v905, 0.0
      %v914 = vmax.f32 %v906, 0.0
      %v915 = vmax.f32 %v907, 0.0
      %v916 = vmax.f32 %v908, 0.0
      %v917 = vmax.f32 %v909, 0.0
      %v918 = vmax.f32 %v910, 0.0
      %v919 = vxor.u32 %v911, 2147483648
      %v920 = vxor.u32 %v912, 2147483648
      %v921 = vxor.u32 %v913, 2147483648
      %v922 = vxor.u32 %v914, 2147483648
      %v923 = vxor.u32 %v915, 2147483648
      %v924 = vxor.u32 %v916, 2147483648
      %v925 = vxor.u32 %v917, 2147483648
      %v926 = vxor.u32 %v918, 2147483648
      %v927 = vmul.f32 %v919, 1.442695
      %v928 = vpow.pop %v927
      %v929 = vmul.f32 %v920, 1.442695
      %v930 = vpow.pop %v929
      %v931 = vmul.f32 %v921, 1.442695
      %v932 = vpow.pop %v931
      %v933 = vmul.f32 %v922, 1.442695
      %v934 = vpow.pop %v933
      %v935 = vmul.f32 %v923, 1.442695
      %v936 = vpow.pop %v935
      %v937 = vmul.f32 %v924, 1.442695
      %v938 = vpow.pop %v937
      %v939 = vmul.f32 %v925, 1.442695
      %v940 = vpow.pop %v939
      %v941 = vmul.f32 %v926, 1.442695
      %v942 = vpow.pop %v941
      %v943 = vadd.f32 %v928, 1.0
      %v944 = vadd.f32 %v930, 1.0
      %v945 = vadd.f32 %v932, 1.0
      %v946 = vadd.f32 %v934, 1.0
      %v947 = vadd.f32 %v936, 1.0
      %v948 = vadd.f32 %v938, 1.0
      %v949 = vadd.f32 %v940, 1.0
      %v950 = vadd.f32 %v942, 1.0
      %v951 = vrcp.pop %v943
      %v952 = vmul.f32 1.0, %v951
      %v953 = vrcp.pop %v944
      %v954 = vmul.f32 1.0, %v953
      %v955 = vrcp.pop %v945
      %v956 = vmul.f32 1.0, %v955
      %v957 = vrcp.pop %v946
      %v958 = vmul.f32 1.0, %v957
      %v959 = vrcp.pop %v947
      %v960 = vmul.f32 1.0, %v959
      %v961 = vrcp.pop %v948
      %v962 = vmul.f32 1.0, %v961
      %v963 = vrcp.pop %v949
      %v964 = vmul.f32 1.0, %v963
      %v965 = vrcp.pop %v950
      %v966 = vmul.f32 1.0, %v965
      %s967 = scalar_lea.vmem %s2, 128
      %v968 = vld [vmem:[%s967] sm:$0xff]
      %v969 = vld [vmem:[%s967 + $0x8] sm:$0xff]
      %v970 = vld [vmem:[%s967 + $0x10] sm:$0xff]
      %v971 = vld [vmem:[%s967 + $0x18] sm:$0xff]
      %v972 = vld [vmem:[#allocation2 + $0x2] sm:$0xff]
      %v973 = vld [vmem:[#allocation2 + $0x12] sm:$0xff]
      %v974 = vld [vmem:[#allocation2 + $0x22] sm:$0xff]
      %v975 = vld [vmem:[#allocation2 + $0x32] sm:$0xff]
      %v976 = vld [vmem:[#allocation2 + $0x42] sm:$0xff]
      %v977 = vld [vmem:[#allocation2 + $0x52] sm:$0xff]
      %v978 = vld [vmem:[#allocation2 + $0x62] sm:$0xff]
      %v979 = vld [vmem:[#allocation2 + $0x72] sm:$0xff]
      %s980 = scalar_lea.vmem %s2, 160
      %v981 = vld [vmem:[%s980] sm:$0xff]
      %v982 = vld [vmem:[%s980 + $0x8] sm:$0xff]
      %v983 = vld [vmem:[%s980 + $0x10] sm:$0xff]
      %v984 = vld [vmem:[%s980 + $0x18] sm:$0xff]
      %v986 = vsel %vm218, %v972, 0
      %v989 = vsel %vm218, %v973, 0
      %v992 = vsel %vm218, %v974, 0
      %v995 = vsel %vm218, %v975, 0
      %v998 = vsel %vm218, %v976, 0
      %v1001 = vsel %vm218, %v977, 0
      %v1004 = vsel %vm218, %v978, 0
      %v1007 = vsel %vm218, %v979, 0
      %1009 = vmatprep.subr.mxu0 0.0
      %1010 = vmatpush1.msra.mxu0 0.0
      %1011 = vmatprep.subr.mxu0 0.0
      %1012 = vmatpush1.msra.mxu0 0.0
      %1013 = vmatprep.subr.mxu0 0.0
      %1014 = vmatpush1.msra.mxu0 0.0
      %1015 = vmatprep.subr.mxu0 0.0
      %1016 = vmatpush1.msra.mxu0 0.0
      %1017 = vmatprep.subr.mxu0 0.0
      %1018 = vmatpush1.msra.mxu0 0.0
      %1019 = vmatprep.subr.mxu0 0.0
      %1020 = vmatpush1.msra.mxu0 0.0
      %1021 = vmatprep.subr.mxu0 0.0
      %1022 = vmatpush1.msra.mxu0 0.0
      %1023 = vmatprep.subr.mxu0 0.0
      %1024 = vmatpush1.msra.mxu0 0.0
      %1025 = vmatprep.subr.mxu0 0.0
      %1026 = vmatpush1.msra.mxu0 0.0
      %1027 = vmatprep.subr.mxu0 0.0
      %1028 = vmatpush1.msra.mxu0 0.0
      %1029 = vmatprep.subr.mxu0 0.0
      %1030 = vmatpush1.msra.mxu0 0.0
      %1031 = vmatprep.subr.mxu0 0.0
      %1032 = vmatpush1.msra.mxu0 0.0
      %1033 = vmatprep.subr.mxu0 0.0
      %1034 = vmatpush1.msra.mxu0 %v984
      %1035 = vmatprep.subr.mxu0 0.0
      %1036 = vmatpush1.msra.mxu0 %v983
      %1037 = vmatprep.subr.mxu0 0.0
      %1038 = vmatpush1.msra.mxu0 %v982
      %1039 = vmatprep.subr.mxu0 0.0
      %1040 = vmatpush1.msra.mxu0 %v981
      %1041 = vmatprep.subr.mxu0 0.0
      %1042 = vmatpush2.msra.mxu0 0.0
      %1043 = vmatprep.subr.mxu0 0.0
      %1044 = vmatpush2.msra.mxu0 0.0
      %1045 = vmatprep.subr.mxu0 0.0
      %1046 = vmatpush2.msra.mxu0 0.0
      %1047 = vmatprep.subr.mxu0 0.0
      %1048 = vmatpush2.msra.mxu0 0.0
      %1049 = vmatprep.subr.mxu0 0.0
      %1050 = vmatpush2.msra.mxu0 0.0
      %1051 = vmatprep.subr.mxu0 0.0
      %1052 = vmatpush2.msra.mxu0 0.0
      %1053 = vmatprep.subr.mxu0 0.0
      %1054 = vmatpush2.msra.mxu0 0.0
      %1055 = vmatprep.subr.mxu0 0.0
      %1056 = vmatpush2.msra.mxu0 0.0
      %1057 = vmatprep.subr.mxu0 0.0
      %1058 = vmatpush2.msra.mxu0 0.0
      %1059 = vmatprep.subr.mxu0 0.0
      %1060 = vmatpush2.msra.mxu0 0.0
      %1061 = vmatprep.subr.mxu0 0.0
      %1062 = vmatpush2.msra.mxu0 0.0
      %1063 = vmatprep.subr.mxu0 0.0
      %1064 = vmatpush2.msra.mxu0 0.0
      %1065 = vmatprep.subr.mxu0 0.0
      %1066 = vmatpush2.msra.mxu0 0.0
      %1067 = vmatprep.subr.mxu0 0.0
      %1068 = vmatpush2.msra.mxu0 0.0
      %1069 = vmatprep.subr.mxu0 0.0
      %1070 = vmatpush2.msra.mxu0 0.0
      %1071 = vmatprep.subr.mxu0 0.0
      %1072 = vmatpush2.msra.mxu0 0.0
      %1073 = vmatprep.mubr.f32.mxu0 0.0
      %1074 = vmatmul.mubr.f32.gmra.mxu0 %v986
      %v1075 = vpop.f32.mrf.mxu0
      %v1076 = vadd.f32 0.0, %v1075
      %v1077 = vpop.f32.mrf.mxu0
      %1078 = vmatprep.mubr.f32.mxu0 0.0
      %1079 = vmatmul.mubr.f32.gmra.mxu0 %v989
      %v1080 = vpop.f32.mrf.mxu0
      %v1081 = vadd.f32 0.0, %v1080
      %v1082 = vpop.f32.mrf.mxu0
      %1083 = vmatprep.mubr.f32.mxu0 0.0
      %1084 = vmatmul.mubr.f32.gmra.mxu0 %v992
      %v1085 = vpop.f32.mrf.mxu0
      %v1086 = vadd.f32 0.0, %v1085
      %v1087 = vpop.f32.mrf.mxu0
      %1088 = vmatprep.mubr.f32.mxu0 0.0
      %1089 = vmatmul.mubr.f32.gmra.mxu0 %v995
      %v1090 = vpop.f32.mrf.mxu0
      %v1091 = vadd.f32 0.0, %v1090
      %v1092 = vpop.f32.mrf.mxu0
      %1093 = vmatprep.mubr.f32.mxu0 0.0
      %1094 = vmatmul.mubr.f32.gmra.mxu0 %v998
      %v1095 = vpop.f32.mrf.mxu0
      %v1096 = vadd.f32 0.0, %v1095
      %v1097 = vpop.f32.mrf.mxu0
      %1098 = vmatprep.mubr.f32.mxu0 0.0
      %1099 = vmatmul.mubr.f32.gmra.mxu0 %v1001
      %v1100 = vpop.f32.mrf.mxu0
      %v1101 = vadd.f32 0.0, %v1100
      %v1102 = vpop.f32.mrf.mxu0
      %1103 = vmatprep.mubr.f32.mxu0 0.0
      %1104 = vmatmul.mubr.f32.gmra.mxu0 %v1004
      %v1105 = vpop.f32.mrf.mxu0
      %v1106 = vadd.f32 0.0, %v1105
      %v1107 = vpop.f32.mrf.mxu0
      %1108 = vmatprep.mubr.f32.mxu0 0.0
      %1109 = vmatmul.mubr.f32.gmra.mxu0 %v1007
      %v1110 = vpop.f32.mrf.mxu0
      %v1111 = vadd.f32 0.0, %v1110
      %v1112 = vpop.f32.mrf.mxu0
      %1113 = vdwg.mxu0
      %1114 = vmatprep.subr.mxu0 0.0
      %1115 = vmatpush1.msra.mxu0 0.0
      %1116 = vmatprep.subr.mxu0 0.0
      %1117 = vmatpush1.msra.mxu0 0.0
      %1118 = vmatprep.subr.mxu0 0.0
      %1119 = vmatpush1.msra.mxu0 0.0
      %1120 = vmatprep.subr.mxu0 0.0
      %1121 = vmatpush1.msra.mxu0 0.0
      %1122 = vmatprep.subr.mxu0 0.0
      %1123 = vmatpush1.msra.mxu0 0.0
      %1124 = vmatprep.subr.mxu0 0.0
      %1125 = vmatpush1.msra.mxu0 0.0
      %1126 = vmatprep.subr.mxu0 0.0
      %1127 = vmatpush1.msra.mxu0 0.0
      %1128 = vmatprep.subr.mxu0 0.0
      %1129 = vmatpush1.msra.mxu0 0.0
      %1130 = vmatprep.subr.mxu0 0.0
      %1131 = vmatpush1.msra.mxu0 0.0
      %1132 = vmatprep.subr.mxu0 0.0
      %1133 = vmatpush1.msra.mxu0 0.0
      %1134 = vmatprep.subr.mxu0 0.0
      %1135 = vmatpush1.msra.mxu0 0.0
      %1136 = vmatprep.subr.mxu0 0.0
      %1137 = vmatpush1.msra.mxu0 0.0
      %1138 = vmatprep.subr.mxu0 0.0
      %1139 = vmatpush1.msra.mxu0 %v971
      %1140 = vmatprep.subr.mxu0 0.0
      %1141 = vmatpush1.msra.mxu0 %v970
      %1142 = vmatprep.subr.mxu0 0.0
      %1143 = vmatpush1.msra.mxu0 %v969
      %1144 = vmatprep.subr.mxu0 0.0
      %1145 = vmatpush1.msra.mxu0 %v968
      %1146 = vmatprep.subr.mxu0 0.0
      %1147 = vmatpush2.msra.mxu0 0.0
      %1148 = vmatprep.subr.mxu0 0.0
      %1149 = vmatpush2.msra.mxu0 0.0
      %1150 = vmatprep.subr.mxu0 0.0
      %1151 = vmatpush2.msra.mxu0 0.0
      %1152 = vmatprep.subr.mxu0 0.0
      %1153 = vmatpush2.msra.mxu0 0.0
      %1154 = vmatprep.subr.mxu0 0.0
      %1155 = vmatpush2.msra.mxu0 0.0
      %1156 = vmatprep.subr.mxu0 0.0
      %1157 = vmatpush2.msra.mxu0 0.0
      %1158 = vmatprep.subr.mxu0 0.0
      %1159 = vmatpush2.msra.mxu0 0.0
      %1160 = vmatprep.subr.mxu0 0.0
      %1161 = vmatpush2.msra.mxu0 0.0
      %1162 = vmatprep.subr.mxu0 0.0
      %1163 = vmatpush2.msra.mxu0 0.0
      %1164 = vmatprep.subr.mxu0 0.0
      %1165 = vmatpush2.msra.mxu0 0.0
      %1166 = vmatprep.subr.mxu0 0.0
      %1167 = vmatpush2.msra.mxu0 0.0
      %1168 = vmatprep.subr.mxu0 0.0
      %1169 = vmatpush2.msra.mxu0 0.0
      %1170 = vmatprep.subr.mxu0 0.0
      %1171 = vmatpush2.msra.mxu0 0.0
      %1172 = vmatprep.subr.mxu0 0.0
      %1173 = vmatpush2.msra.mxu0 0.0
      %1174 = vmatprep.subr.mxu0 0.0
      %1175 = vmatpush2.msra.mxu0 0.0
      %1176 = vmatprep.subr.mxu0 0.0
      %1177 = vmatpush2.msra.mxu0 0.0
      %1178 = vmatprep.mubr.f32.mxu0 0.0
      %1179 = vmatmul.mubr.f32.gmra.mxu0 %v340
      %v1180 = vpop.f32.mrf.mxu0
      %v1181 = vadd.f32 %v1076, %v1180
      %v1182 = vpop.f32.mrf.mxu0
      %1183 = vmatprep.mubr.f32.mxu0 0.0
      %1184 = vmatmul.mubr.f32.gmra.mxu0 %v343
      %v1185 = vpop.f32.mrf.mxu0
      %v1186 = vadd.f32 %v1081, %v1185
      %v1187 = vpop.f32.mrf.mxu0
      %1188 = vmatprep.mubr.f32.mxu0 0.0
      %1189 = vmatmul.mubr.f32.gmra.mxu0 %v346
      %v1190 = vpop.f32.mrf.mxu0
      %v1191 = vadd.f32 %v1086, %v1190
      %v1192 = vpop.f32.mrf.mxu0
      %1193 = vmatprep.mubr.f32.mxu0 0.0
      %1194 = vmatmul.mubr.f32.gmra.mxu0 %v349
      %v1195 = vpop.f32.mrf.mxu0
      %v1196 = vadd.f32 %v1091, %v1195
      %v1197 = vpop.f32.mrf.mxu0
      %1198 = vmatprep.mubr.f32.mxu0 0.0
      %1199 = vmatmul.mubr.f32.gmra.mxu0 %v352
      %v1200 = vpop.f32.mrf.mxu0
      %v1201 = vadd.f32 %v1096, %v1200
      %v1202 = vpop.f32.mrf.mxu0
      %1203 = vmatprep.mubr.f32.mxu0 0.0
      %1204 = vmatmul.mubr.f32.gmra.mxu0 %v355
      %v1205 = vpop.f32.mrf.mxu0
      %v1206 = vadd.f32 %v1101, %v1205
      %v1207 = vpop.f32.mrf.mxu0
      %1208 = vmatprep.mubr.f32.mxu0 0.0
      %1209 = vmatmul.mubr.f32.gmra.mxu0 %v358
      %v1210 = vpop.f32.mrf.mxu0
      %v1211 = vadd.f32 %v1106, %v1210
      %v1212 = vpop.f32.mrf.mxu0
      %1213 = vmatprep.mubr.f32.mxu0 0.0
      %1214 = vmatmul.mubr.f32.gmra.mxu0 %v361
      %v1215 = vpop.f32.mrf.mxu0
      %v1216 = vadd.f32 %v1111, %v1215
      %v1217 = vpop.f32.mrf.mxu0
      %1218 = vdwg.mxu0
      %s1219 = scalar_lea.vmem %s2, 192
      %v1220 = vld [vmem:[%s1219] sm:$0xff]
      %v1221 = vld [vmem:[%s1219 + $0x8] sm:$0xff]
      %v1222 = vld [vmem:[%s1219 + $0x10] sm:$0xff]
      %v1223 = vld [vmem:[%s1219 + $0x18] sm:$0xff]
      %1224 = vmatprep.subr.mxu0 0.0
      %1225 = vmatpush1.msra.mxu0 0.0
      %1226 = vmatprep.subr.mxu0 0.0
      %1227 = vmatpush1.msra.mxu0 0.0
      %1228 = vmatprep.subr.mxu0 0.0
      %1229 = vmatpush1.msra.mxu0 0.0
      %1230 = vmatprep.subr.mxu0 0.0
      %1231 = vmatpush1.msra.mxu0 0.0
      %1232 = vmatprep.subr.mxu0 0.0
      %1233 = vmatpush1.msra.mxu0 0.0
      %1234 = vmatprep.subr.mxu0 0.0
      %1235 = vmatpush1.msra.mxu0 0.0
      %1236 = vmatprep.subr.mxu0 0.0
      %1237 = vmatpush1.msra.mxu0 0.0
      %1238 = vmatprep.subr.mxu0 0.0
      %1239 = vmatpush1.msra.mxu0 0.0
      %1240 = vmatprep.subr.mxu0 0.0
      %1241 = vmatpush1.msra.mxu0 0.0
      %1242 = vmatprep.subr.mxu0 0.0
      %1243 = vmatpush1.msra.mxu0 0.0
      %1244 = vmatprep.subr.mxu0 0.0
      %1245 = vmatpush1.msra.mxu0 0.0
      %1246 = vmatprep.subr.mxu0 0.0
      %1247 = vmatpush1.msra.mxu0 0.0
      %1248 = vmatprep.subr.mxu0 0.0
      %1249 = vmatpush1.msra.mxu0 %v1223
      %1250 = vmatprep.subr.mxu0 0.0
      %1251 = vmatpush1.msra.mxu0 %v1222
      %1252 = vmatprep.subr.mxu0 0.0
      %1253 = vmatpush1.msra.mxu0 %v1221
      %1254 = vmatprep.subr.mxu0 0.0
      %1255 = vmatpush1.msra.mxu0 %v1220
      %1256 = vmatprep.subr.mxu0 0.0
      %1257 = vmatpush2.msra.mxu0 0.0
      %1258 = vmatprep.subr.mxu0 0.0
      %1259 = vmatpush2.msra.mxu0 0.0
      %1260 = vmatprep.subr.mxu0 0.0
      %1261 = vmatpush2.msra.mxu0 0.0
      %1262 = vmatprep.subr.mxu0 0.0
      %1263 = vmatpush2.msra.mxu0 0.0
      %1264 = vmatprep.subr.mxu0 0.0
      %1265 = vmatpush2.msra.mxu0 0.0
      %1266 = vmatprep.subr.mxu0 0.0
      %1267 = vmatpush2.msra.mxu0 0.0
      %1268 = vmatprep.subr.mxu0 0.0
      %1269 = vmatpush2.msra.mxu0 0.0
      %1270 = vmatprep.subr.mxu0 0.0
      %1271 = vmatpush2.msra.mxu0 0.0
      %1272 = vmatprep.subr.mxu0 0.0
      %1273 = vmatpush2.msra.mxu0 0.0
      %1274 = vmatprep.subr.mxu0 0.0
      %1275 = vmatpush2.msra.mxu0 0.0
      %1276 = vmatprep.subr.mxu0 0.0
      %1277 = vmatpush2.msra.mxu0 0.0
      %1278 = vmatprep.subr.mxu0 0.0
      %1279 = vmatpush2.msra.mxu0 0.0
      %1280 = vmatprep.subr.mxu0 0.0
      %1281 = vmatpush2.msra.mxu0 0.0
      %1282 = vmatprep.subr.mxu0 0.0
      %1283 = vmatpush2.msra.mxu0 0.0
      %1284 = vmatprep.subr.mxu0 0.0
      %1285 = vmatpush2.msra.mxu0 0.0
      %1286 = vmatprep.subr.mxu0 0.0
      %1287 = vmatpush2.msra.mxu0 0.0
      %1288 = vmatprep.mubr.f32.mxu0 0.0
      %1289 = vmatmul.mubr.f32.gmra.mxu0 %v761
      %v1290 = vpop.f32.mrf.mxu0
      %v1291 = vadd.f32 0.0, %v1290
      %v1292 = vpop.f32.mrf.mxu0
      %1293 = vmatprep.mubr.f32.mxu0 0.0
      %1294 = vmatmul.mubr.f32.gmra.mxu0 %v764
      %v1295 = vpop.f32.mrf.mxu0
      %v1296 = vadd.f32 0.0, %v1295
      %v1297 = vpop.f32.mrf.mxu0
      %1298 = vmatprep.mubr.f32.mxu0 0.0
      %1299 = vmatmul.mubr.f32.gmra.mxu0 %v767
      %v1300 = vpop.f32.mrf.mxu0
      %v1301 = vadd.f32 0.0, %v1300
      %v1302 = vpop.f32.mrf.mxu0
      %1303 = vmatprep.mubr.f32.mxu0 0.0
      %1304 = vmatmul.mubr.f32.gmra.mxu0 %v770
      %v1305 = vpop.f32.mrf.mxu0
      %v1306 = vadd.f32 0.0, %v1305
      %v1307 = vpop.f32.mrf.mxu0
      %1308 = vmatprep.mubr.f32.mxu0 0.0
      %1309 = vmatmul.mubr.f32.gmra.mxu0 %v773
      %v1310 = vpop.f32.mrf.mxu0
      %v1311 = vadd.f32 0.0, %v1310
      %v1312 = vpop.f32.mrf.mxu0
      %1313 = vmatprep.mubr.f32.mxu0 0.0
      %1314 = vmatmul.mubr.f32.gmra.mxu0 %v776
      %v1315 = vpop.f32.mrf.mxu0
      %v1316 = vadd.f32 0.0, %v1315
      %v1317 = vpop.f32.mrf.mxu0
      %1318 = vmatprep.mubr.f32.mxu0 0.0
      %1319 = vmatmul.mubr.f32.gmra.mxu0 %v779
      %v1320 = vpop.f32.mrf.mxu0
      %v1321 = vadd.f32 0.0, %v1320
      %v1322 = vpop.f32.mrf.mxu0
      %1323 = vmatprep.mubr.f32.mxu0 0.0
      %1324 = vmatmul.mubr.f32.gmra.mxu0 %v782
      %v1325 = vpop.f32.mrf.mxu0
      %v1326 = vadd.f32 0.0, %v1325
      %v1327 = vpop.f32.mrf.mxu0
      %1328 = vdwg.mxu0
      %v1329 = vadd.f32 %v1181, %v1291
      %v1330 = vadd.f32 %v1186, %v1296
      %v1331 = vadd.f32 %v1191, %v1301
      %v1332 = vadd.f32 %v1196, %v1306
      %v1333 = vadd.f32 %v1201, %v1311
      %v1334 = vadd.f32 %v1206, %v1316
      %v1335 = vadd.f32 %v1211, %v1321
      %v1336 = vadd.f32 %v1216, %v1326
      %v1337 = vld [vmem:[%s254 + $0x2] sm:$0xff]
      %v1338 = vld [vmem:[%s254 + $0x12] sm:$0xff]
      %v1339 = vld [vmem:[%s254 + $0x22] sm:$0xff]
      %v1340 = vld [vmem:[%s254 + $0x32] sm:$0xff]
      %v1341 = vld [vmem:[%s254 + $0x42] sm:$0xff]
      %v1342 = vld [vmem:[%s254 + $0x52] sm:$0xff]
      %v1343 = vld [vmem:[%s254 + $0x62] sm:$0xff]
      %v1344 = vld [vmem:[%s254 + $0x72] sm:$0xff]
      %s1345 = scalar_lea.vmem %s2, 224
      %v1346 = vld [vmem:[%s1345] sm:$0xff]
      %v1347 = vld [vmem:[%s1345 + $0x8] sm:$0xff]
      %v1348 = vld [vmem:[%s1345 + $0x10] sm:$0xff]
      %v1349 = vld [vmem:[%s1345 + $0x18] sm:$0xff]
      %v1351 = vsel %vm218, %v1337, 0
      %v1354 = vsel %vm218, %v1338, 0
      %v1357 = vsel %vm218, %v1339, 0
      %v1360 = vsel %vm218, %v1340, 0
      %v1363 = vsel %vm218, %v1341, 0
      %v1366 = vsel %vm218, %v1342, 0
      %v1369 = vsel %vm218, %v1343, 0
      %v1372 = vsel %vm218, %v1344, 0
      %1374 = vmatprep.subr.mxu0 0.0
      %1375 = vmatpush1.msra.mxu0 0.0
      %1376 = vmatprep.subr.mxu0 0.0
      %1377 = vmatpush1.msra.mxu0 0.0
      %1378 = vmatprep.subr.mxu0 0.0
      %1379 = vmatpush1.msra.mxu0 0.0
      %1380 = vmatprep.subr.mxu0 0.0
      %1381 = vmatpush1.msra.mxu0 0.0
      %1382 = vmatprep.subr.mxu0 0.0
      %1383 = vmatpush1.msra.mxu0 0.0
      %1384 = vmatprep.subr.mxu0 0.0
      %1385 = vmatpush1.msra.mxu0 0.0
      %1386 = vmatprep.subr.mxu0 0.0
      %1387 = vmatpush1.msra.mxu0 0.0
      %1388 = vmatprep.subr.mxu0 0.0
      %1389 = vmatpush1.msra.mxu0 0.0
      %1390 = vmatprep.subr.mxu0 0.0
      %1391 = vmatpush1.msra.mxu0 0.0
      %1392 = vmatprep.subr.mxu0 0.0
      %1393 = vmatpush1.msra.mxu0 0.0
      %1394 = vmatprep.subr.mxu0 0.0
      %1395 = vmatpush1.msra.mxu0 0.0
      %1396 = vmatprep.subr.mxu0 0.0
      %1397 = vmatpush1.msra.mxu0 0.0
      %1398 = vmatprep.subr.mxu0 0.0
      %1399 = vmatpush1.msra.mxu0 %v1349
      %1400 = vmatprep.subr.mxu0 0.0
      %1401 = vmatpush1.msra.mxu0 %v1348
      %1402 = vmatprep.subr.mxu0 0.0
      %1403 = vmatpush1.msra.mxu0 %v1347
      %1404 = vmatprep.subr.mxu0 0.0
      %1405 = vmatpush1.msra.mxu0 %v1346
      %1406 = vmatprep.subr.mxu0 0.0
      %1407 = vmatpush2.msra.mxu0 0.0
      %1408 = vmatprep.subr.mxu0 0.0
      %1409 = vmatpush2.msra.mxu0 0.0
      %1410 = vmatprep.subr.mxu0 0.0
      %1411 = vmatpush2.msra.mxu0 0.0
      %1412 = vmatprep.subr.mxu0 0.0
      %1413 = vmatpush2.msra.mxu0 0.0
      %1414 = vmatprep.subr.mxu0 0.0
      %1415 = vmatpush2.msra.mxu0 0.0
      %1416 = vmatprep.subr.mxu0 0.0
      %1417 = vmatpush2.msra.mxu0 0.0
      %1418 = vmatprep.subr.mxu0 0.0
      %1419 = vmatpush2.msra.mxu0 0.0
      %1420 = vmatprep.subr.mxu0 0.0
      %1421 = vmatpush2.msra.mxu0 0.0
      %1422 = vmatprep.subr.mxu0 0.0
      %1423 = vmatpush2.msra.mxu0 0.0
      %1424 = vmatprep.subr.mxu0 0.0
      %1425 = vmatpush2.msra.mxu0 0.0
      %1426 = vmatprep.subr.mxu0 0.0
      %1427 = vmatpush2.msra.mxu0 0.0
      %1428 = vmatprep.subr.mxu0 0.0
      %1429 = vmatpush2.msra.mxu0 0.0
      %1430 = vmatprep.subr.mxu0 0.0
      %1431 = vmatpush2.msra.mxu0 0.0
      %1432 = vmatprep.subr.mxu0 0.0
      %1433 = vmatpush2.msra.mxu0 0.0
      %1434 = vmatprep.subr.mxu0 0.0
      %1435 = vmatpush2.msra.mxu0 0.0
      %1436 = vmatprep.subr.mxu0 0.0
      %1437 = vmatpush2.msra.mxu0 0.0
      %1438 = vmatprep.mubr.f32.mxu0 0.0
      %1439 = vmatmul.mubr.f32.gmra.mxu0 %v1351
      %v1440 = vpop.f32.mrf.mxu0
      %v1441 = vadd.f32 0.0, %v1440
      %v1442 = vpop.f32.mrf.mxu0
      %1443 = vmatprep.mubr.f32.mxu0 0.0
      %1444 = vmatmul.mubr.f32.gmra.mxu0 %v1354
      %v1445 = vpop.f32.mrf.mxu0
      %v1446 = vadd.f32 0.0, %v1445
      %v1447 = vpop.f32.mrf.mxu0
      %1448 = vmatprep.mubr.f32.mxu0 0.0
      %1449 = vmatmul.mubr.f32.gmra.mxu0 %v1357
      %v1450 = vpop.f32.mrf.mxu0
      %v1451 = vadd.f32 0.0, %v1450
      %v1452 = vpop.f32.mrf.mxu0
      %1453 = vmatprep.mubr.f32.mxu0 0.0
      %1454 = vmatmul.mubr.f32.gmra.mxu0 %v1360
      %v1455 = vpop.f32.mrf.mxu0
      %v1456 = vadd.f32 0.0, %v1455
      %v1457 = vpop.f32.mrf.mxu0
      %1458 = vmatprep.mubr.f32.mxu0 0.0
      %1459 = vmatmul.mubr.f32.gmra.mxu0 %v1363
      %v1460 = vpop.f32.mrf.mxu0
      %v1461 = vadd.f32 0.0, %v1460
      %v1462 = vpop.f32.mrf.mxu0
      %1463 = vmatprep.mubr.f32.mxu0 0.0
      %1464 = vmatmul.mubr.f32.gmra.mxu0 %v1366
      %v1465 = vpop.f32.mrf.mxu0
      %v1466 = vadd.f32 0.0, %v1465
      %v1467 = vpop.f32.mrf.mxu0
      %1468 = vmatprep.mubr.f32.mxu0 0.0
      %1469 = vmatmul.mubr.f32.gmra.mxu0 %v1369
      %v1470 = vpop.f32.mrf.mxu0
      %v1471 = vadd.f32 0.0, %v1470
      %v1472 = vpop.f32.mrf.mxu0
      %1473 = vmatprep.mubr.f32.mxu0 0.0
      %1474 = vmatmul.mubr.f32.gmra.mxu0 %v1372
      %v1475 = vpop.f32.mrf.mxu0
      %v1476 = vadd.f32 0.0, %v1475
      %v1477 = vpop.f32.mrf.mxu0
      %1478 = vdwg.mxu0
      %v1479 = vadd.f32 %v1329, %v1441
      %v1480 = vadd.f32 %v1330, %v1446
      %v1481 = vadd.f32 %v1331, %v1451
      %v1482 = vadd.f32 %v1332, %v1456
      %v1483 = vadd.f32 %v1333, %v1461
      %v1484 = vadd.f32 %v1334, %v1466
      %v1485 = vadd.f32 %v1335, %v1471
      %v1486 = vadd.f32 %v1336, %v1476
      %v1487 = vadd.f32 %v1479, %v901
      %v1488 = vadd.f32 %v1480, %v901
      %v1489 = vadd.f32 %v1481, %v901
      %v1490 = vadd.f32 %v1482, %v901
      %v1491 = vadd.f32 %v1483, %v901
      %v1492 = vadd.f32 %v1484, %v901
      %v1493 = vadd.f32 %v1485, %v901
      %v1494 = vadd.f32 %v1486, %v901
      %v1495 = vmax.f32 %v1487, 0.0
      %v1496 = vmax.f32 %v1488, 0.0
      %v1497 = vmax.f32 %v1489, 0.0
      %v1498 = vmax.f32 %v1490, 0.0
      %v1499 = vmax.f32 %v1491, 0.0
      %v1500 = vmax.f32 %v1492, 0.0
      %v1501 = vmax.f32 %v1493, 0.0
      %v1502 = vmax.f32 %v1494, 0.0
      %v1503 = vxor.u32 %v1495, 2147483648
      %v1504 = vxor.u32 %v1496, 2147483648
      %v1505 = vxor.u32 %v1497, 2147483648
      %v1506 = vxor.u32 %v1498, 2147483648
      %v1507 = vxor.u32 %v1499, 2147483648
      %v1508 = vxor.u32 %v1500, 2147483648
      %v1509 = vxor.u32 %v1501, 2147483648
      %v1510 = vxor.u32 %v1502, 2147483648
      %v1511 = vmul.f32 %v1503, 1.442695
      %v1512 = vpow.pop %v1511
      %v1513 = vmul.f32 %v1504, 1.442695
      %v1514 = vpow.pop %v1513
      %v1515 = vmul.f32 %v1505, 1.442695
      %v1516 = vpow.pop %v1515
      %v1517 = vmul.f32 %v1506, 1.442695
      %v1518 = vpow.pop %v1517
      %v1519 = vmul.f32 %v1507, 1.442695
      %v1520 = vpow.pop %v1519
      %v1521 = vmul.f32 %v1508, 1.442695
      %v1522 = vpow.pop %v1521
      %v1523 = vmul.f32 %v1509, 1.442695
      %v1524 = vpow.pop %v1523
      %v1525 = vmul.f32 %v1510, 1.442695
      %v1526 = vpow.pop %v1525
      %v1527 = vadd.f32 %v1512, 1.0
      %v1528 = vadd.f32 %v1514, 1.0
      %v1529 = vadd.f32 %v1516, 1.0
      %v1530 = vadd.f32 %v1518, 1.0
      %v1531 = vadd.f32 %v1520, 1.0
      %v1532 = vadd.f32 %v1522, 1.0
      %v1533 = vadd.f32 %v1524, 1.0
      %v1534 = vadd.f32 %v1526, 1.0
      %v1535 = vrcp.pop %v1527
      %v1536 = vmul.f32 1.0, %v1535
      %v1537 = vrcp.pop %v1528
      %v1538 = vmul.f32 1.0, %v1537
      %v1539 = vrcp.pop %v1529
      %v1540 = vmul.f32 1.0, %v1539
      %v1541 = vrcp.pop %v1530
      %v1542 = vmul.f32 1.0, %v1541
      %v1543 = vrcp.pop %v1531
      %v1544 = vmul.f32 1.0, %v1543
      %v1545 = vrcp.pop %v1532
      %v1546 = vmul.f32 1.0, %v1545
      %v1547 = vrcp.pop %v1533
      %v1548 = vmul.f32 1.0, %v1547
      %v1549 = vrcp.pop %v1534
      %v1550 = vmul.f32 1.0, %v1549
      %s1551 = scalar_lea.vmem %s2, 256
      %v1552 = vld [vmem:[%s1551] sm:$0xff]
      %v1553 = vld [vmem:[%s1551 + $0x8] sm:$0xff]
      %v1554 = vld [vmem:[%s1551 + $0x10] sm:$0xff]
      %v1555 = vld [vmem:[%s1551 + $0x18] sm:$0xff]
      %s1556 = scalar_lea.vmem %s2, 288
      %v1557 = vld [vmem:[%s1556] sm:$0xff]
      %v1558 = vld [vmem:[%s1556 + $0x8] sm:$0xff]
      %v1559 = vld [vmem:[%s1556 + $0x10] sm:$0xff]
      %v1560 = vld [vmem:[%s1556 + $0x18] sm:$0xff]
      %1561 = vmatprep.subr.mxu0 0.0
      %1562 = vmatpush1.msra.mxu0 0.0
      %1563 = vmatprep.subr.mxu0 0.0
      %1564 = vmatpush1.msra.mxu0 0.0
      %1565 = vmatprep.subr.mxu0 0.0
      %1566 = vmatpush1.msra.mxu0 0.0
      %1567 = vmatprep.subr.mxu0 0.0
      %1568 = vmatpush1.msra.mxu0 0.0
      %1569 = vmatprep.subr.mxu0 0.0
      %1570 = vmatpush1.msra.mxu0 0.0
      %1571 = vmatprep.subr.mxu0 0.0
      %1572 = vmatpush1.msra.mxu0 0.0
      %1573 = vmatprep.subr.mxu0 0.0
      %1574 = vmatpush1.msra.mxu0 0.0
      %1575 = vmatprep.subr.mxu0 0.0
      %1576 = vmatpush1.msra.mxu0 0.0
      %1577 = vmatprep.subr.mxu0 0.0
      %1578 = vmatpush1.msra.mxu0 0.0
      %1579 = vmatprep.subr.mxu0 0.0
      %1580 = vmatpush1.msra.mxu0 0.0
      %1581 = vmatprep.subr.mxu0 0.0
      %1582 = vmatpush1.msra.mxu0 0.0
      %1583 = vmatprep.subr.mxu0 0.0
      %1584 = vmatpush1.msra.mxu0 0.0
      %1585 = vmatprep.subr.mxu0 0.0
      %1586 = vmatpush1.msra.mxu0 %v1560
      %1587 = vmatprep.subr.mxu0 0.0
      %1588 = vmatpush1.msra.mxu0 %v1559
      %1589 = vmatprep.subr.mxu0 0.0
      %1590 = vmatpush1.msra.mxu0 %v1558
      %1591 = vmatprep.subr.mxu0 0.0
      %1592 = vmatpush1.msra.mxu0 %v1557
      %1593 = vmatprep.subr.mxu0 0.0
      %1594 = vmatpush2.msra.mxu0 0.0
      %1595 = vmatprep.subr.mxu0 0.0
      %1596 = vmatpush2.msra.mxu0 0.0
      %1597 = vmatprep.subr.mxu0 0.0
      %1598 = vmatpush2.msra.mxu0 0.0
      %1599 = vmatprep.subr.mxu0 0.0
      %1600 = vmatpush2.msra.mxu0 0.0
      %1601 = vmatprep.subr.mxu0 0.0
      %1602 = vmatpush2.msra.mxu0 0.0
      %1603 = vmatprep.subr.mxu0 0.0
      %1604 = vmatpush2.msra.mxu0 0.0
      %1605 = vmatprep.subr.mxu0 0.0
      %1606 = vmatpush2.msra.mxu0 0.0
      %1607 = vmatprep.subr.mxu0 0.0
      %1608 = vmatpush2.msra.mxu0 0.0
      %1609 = vmatprep.subr.mxu0 0.0
      %1610 = vmatpush2.msra.mxu0 0.0
      %1611 = vmatprep.subr.mxu0 0.0
      %1612 = vmatpush2.msra.mxu0 0.0
      %1613 = vmatprep.subr.mxu0 0.0
      %1614 = vmatpush2.msra.mxu0 0.0
      %1615 = vmatprep.subr.mxu0 0.0
      %1616 = vmatpush2.msra.mxu0 0.0
      %1617 = vmatprep.subr.mxu0 0.0
      %1618 = vmatpush2.msra.mxu0 0.0
      %1619 = vmatprep.subr.mxu0 0.0
      %1620 = vmatpush2.msra.mxu0 0.0
      %1621 = vmatprep.subr.mxu0 0.0
      %1622 = vmatpush2.msra.mxu0 0.0
      %1623 = vmatprep.subr.mxu0 0.0
      %1624 = vmatpush2.msra.mxu0 0.0
      %1625 = vmatprep.mubr.f32.mxu0 0.0
      %1626 = vmatmul.mubr.f32.gmra.mxu0 %v761
      %v1627 = vpop.f32.mrf.mxu0
      %v1628 = vadd.f32 0.0, %v1627
      %v1629 = vpop.f32.mrf.mxu0
      %1630 = vmatprep.mubr.f32.mxu0 0.0
      %1631 = vmatmul.mubr.f32.gmra.mxu0 %v764
      %v1632 = vpop.f32.mrf.mxu0
      %v1633 = vadd.f32 0.0, %v1632
      %v1634 = vpop.f32.mrf.mxu0
      %1635 = vmatprep.mubr.f32.mxu0 0.0
      %1636 = vmatmul.mubr.f32.gmra.mxu0 %v767
      %v1637 = vpop.f32.mrf.mxu0
      %v1638 = vadd.f32 0.0, %v1637
      %v1639 = vpop.f32.mrf.mxu0
      %1640 = vmatprep.mubr.f32.mxu0 0.0
      %1641 = vmatmul.mubr.f32.gmra.mxu0 %v770
      %v1642 = vpop.f32.mrf.mxu0
      %v1643 = vadd.f32 0.0, %v1642
      %v1644 = vpop.f32.mrf.mxu0
      %1645 = vmatprep.mubr.f32.mxu0 0.0
      %1646 = vmatmul.mubr.f32.gmra.mxu0 %v773
      %v1647 = vpop.f32.mrf.mxu0
      %v1648 = vadd.f32 0.0, %v1647
      %v1649 = vpop.f32.mrf.mxu0
      %1650 = vmatprep.mubr.f32.mxu0 0.0
      %1651 = vmatmul.mubr.f32.gmra.mxu0 %v776
      %v1652 = vpop.f32.mrf.mxu0
      %v1653 = vadd.f32 0.0, %v1652
      %v1654 = vpop.f32.mrf.mxu0
      %1655 = vmatprep.mubr.f32.mxu0 0.0
      %1656 = vmatmul.mubr.f32.gmra.mxu0 %v779
      %v1657 = vpop.f32.mrf.mxu0
      %v1658 = vadd.f32 0.0, %v1657
      %v1659 = vpop.f32.mrf.mxu0
      %1660 = vmatprep.mubr.f32.mxu0 0.0
      %1661 = vmatmul.mubr.f32.gmra.mxu0 %v782
      %v1662 = vpop.f32.mrf.mxu0
      %v1663 = vadd.f32 0.0, %v1662
      %v1664 = vpop.f32.mrf.mxu0
      %1665 = vdwg.mxu0
      %1666 = vmatprep.subr.mxu0 0.0
      %1667 = vmatpush1.msra.mxu0 0.0
      %1668 = vmatprep.subr.mxu0 0.0
      %1669 = vmatpush1.msra.mxu0 0.0
      %1670 = vmatprep.subr.mxu0 0.0
      %1671 = vmatpush1.msra.mxu0 0.0
      %1672 = vmatprep.subr.mxu0 0.0
      %1673 = vmatpush1.msra.mxu0 0.0
      %1674 = vmatprep.subr.mxu0 0.0
      %1675 = vmatpush1.msra.mxu0 0.0
      %1676 = vmatprep.subr.mxu0 0.0
      %1677 = vmatpush1.msra.mxu0 0.0
      %1678 = vmatprep.subr.mxu0 0.0
      %1679 = vmatpush1.msra.mxu0 0.0
      %1680 = vmatprep.subr.mxu0 0.0
      %1681 = vmatpush1.msra.mxu0 0.0
      %1682 = vmatprep.subr.mxu0 0.0
      %1683 = vmatpush1.msra.mxu0 0.0
      %1684 = vmatprep.subr.mxu0 0.0
      %1685 = vmatpush1.msra.mxu0 0.0
      %1686 = vmatprep.subr.mxu0 0.0
      %1687 = vmatpush1.msra.mxu0 0.0
      %1688 = vmatprep.subr.mxu0 0.0
      %1689 = vmatpush1.msra.mxu0 0.0
      %1690 = vmatprep.subr.mxu0 0.0
      %1691 = vmatpush1.msra.mxu0 %v1555
      %1692 = vmatprep.subr.mxu0 0.0
      %1693 = vmatpush1.msra.mxu0 %v1554
      %1694 = vmatprep.subr.mxu0 0.0
      %1695 = vmatpush1.msra.mxu0 %v1553
      %1696 = vmatprep.subr.mxu0 0.0
      %1697 = vmatpush1.msra.mxu0 %v1552
      %1698 = vmatprep.subr.mxu0 0.0
      %1699 = vmatpush2.msra.mxu0 0.0
      %1700 = vmatprep.subr.mxu0 0.0
      %1701 = vmatpush2.msra.mxu0 0.0
      %1702 = vmatprep.subr.mxu0 0.0
      %1703 = vmatpush2.msra.mxu0 0.0
      %1704 = vmatprep.subr.mxu0 0.0
      %1705 = vmatpush2.msra.mxu0 0.0
      %1706 = vmatprep.subr.mxu0 0.0
      %1707 = vmatpush2.msra.mxu0 0.0
      %1708 = vmatprep.subr.mxu0 0.0
      %1709 = vmatpush2.msra.mxu0 0.0
      %1710 = vmatprep.subr.mxu0 0.0
      %1711 = vmatpush2.msra.mxu0 0.0
      %1712 = vmatprep.subr.mxu0 0.0
      %1713 = vmatpush2.msra.mxu0 0.0
      %1714 = vmatprep.subr.mxu0 0.0
      %1715 = vmatpush2.msra.mxu0 0.0
      %1716 = vmatprep.subr.mxu0 0.0
      %1717 = vmatpush2.msra.mxu0 0.0
      %1718 = vmatprep.subr.mxu0 0.0
      %1719 = vmatpush2.msra.mxu0 0.0
      %1720 = vmatprep.subr.mxu0 0.0
      %1721 = vmatpush2.msra.mxu0 0.0
      %1722 = vmatprep.subr.mxu0 0.0
      %1723 = vmatpush2.msra.mxu0 0.0
      %1724 = vmatprep.subr.mxu0 0.0
      %1725 = vmatpush2.msra.mxu0 0.0
      %1726 = vmatprep.subr.mxu0 0.0
      %1727 = vmatpush2.msra.mxu0 0.0
      %1728 = vmatprep.subr.mxu0 0.0
      %1729 = vmatpush2.msra.mxu0 0.0
      %1730 = vmatprep.mubr.f32.mxu0 0.0
      %1731 = vmatmul.mubr.f32.gmra.mxu0 %v611
      %v1732 = vpop.f32.mrf.mxu0
      %v1733 = vadd.f32 %v1628, %v1732
      %v1734 = vpop.f32.mrf.mxu0
      %1735 = vmatprep.mubr.f32.mxu0 0.0
      %1736 = vmatmul.mubr.f32.gmra.mxu0 %v614
      %v1737 = vpop.f32.mrf.mxu0
      %v1738 = vadd.f32 %v1633, %v1737
      %v1739 = vpop.f32.mrf.mxu0
      %1740 = vmatprep.mubr.f32.mxu0 0.0
      %1741 = vmatmul.mubr.f32.gmra.mxu0 %v617
      %v1742 = vpop.f32.mrf.mxu0
      %v1743 = vadd.f32 %v1638, %v1742
      %v1744 = vpop.f32.mrf.mxu0
      %1745 = vmatprep.mubr.f32.mxu0 0.0
      %1746 = vmatmul.mubr.f32.gmra.mxu0 %v620
      %v1747 = vpop.f32.mrf.mxu0
      %v1748 = vadd.f32 %v1643, %v1747
      %v1749 = vpop.f32.mrf.mxu0
      %1750 = vmatprep.mubr.f32.mxu0 0.0
      %1751 = vmatmul.mubr.f32.gmra.mxu0 %v623
      %v1752 = vpop.f32.mrf.mxu0
      %v1753 = vadd.f32 %v1648, %v1752
      %v1754 = vpop.f32.mrf.mxu0
      %1755 = vmatprep.mubr.f32.mxu0 0.0
      %1756 = vmatmul.mubr.f32.gmra.mxu0 %v626
      %v1757 = vpop.f32.mrf.mxu0
      %v1758 = vadd.f32 %v1653, %v1757
      %v1759 = vpop.f32.mrf.mxu0
      %1760 = vmatprep.mubr.f32.mxu0 0.0
      %1761 = vmatmul.mubr.f32.gmra.mxu0 %v629
      %v1762 = vpop.f32.mrf.mxu0
      %v1763 = vadd.f32 %v1658, %v1762
      %v1764 = vpop.f32.mrf.mxu0
      %1765 = vmatprep.mubr.f32.mxu0 0.0
      %1766 = vmatmul.mubr.f32.gmra.mxu0 %v632
      %v1767 = vpop.f32.mrf.mxu0
      %v1768 = vadd.f32 %v1663, %v1767
      %v1769 = vpop.f32.mrf.mxu0
      %1770 = vdwg.mxu0
      %s1771 = scalar_lea.vmem [#allocation2], 32
      %v1772 = vld [vmem:[%s1771] sm:$0xff]
      %v1773 = vld [vmem:[%s1771 + $0x10] sm:$0xff]
      %v1774 = vld [vmem:[%s1771 + $0x20] sm:$0xff]
      %v1775 = vld [vmem:[%s1771 + $0x30] sm:$0xff]
      %v1776 = vld [vmem:[%s1771 + $0x40] sm:$0xff]
      %v1777 = vld [vmem:[%s1771 + $0x50] sm:$0xff]
      %v1778 = vld [vmem:[%s1771 + $0x60] sm:$0xff]
      %v1779 = vld [vmem:[%s1771 + $0x70] sm:$0xff]
      %s1780 = scalar_lea.vmem %s2, 320
      %v1781 = vld [vmem:[%s1780] sm:$0xff]
      %v1782 = vld [vmem:[%s1780 + $0x8] sm:$0xff]
      %v1783 = vld [vmem:[%s1780 + $0x10] sm:$0xff]
      %v1784 = vld [vmem:[%s1780 + $0x18] sm:$0xff]
      %v1786 = vsel %vm218, %v1772, 0
      %v1789 = vsel %vm218, %v1773, 0
      %v1792 = vsel %vm218, %v1774, 0
      %v1795 = vsel %vm218, %v1775, 0
      %v1798 = vsel %vm218, %v1776, 0
      %v1801 = vsel %vm218, %v1777, 0
      %v1804 = vsel %vm218, %v1778, 0
      %v1807 = vsel %vm218, %v1779, 0
      %1809 = vmatprep.subr.mxu0 0.0
      %1810 = vmatpush1.msra.mxu0 0.0
      %1811 = vmatprep.subr.mxu0 0.0
      %1812 = vmatpush1.msra.mxu0 0.0
      %1813 = vmatprep.subr.mxu0 0.0
      %1814 = vmatpush1.msra.mxu0 0.0
      %1815 = vmatprep.subr.mxu0 0.0
      %1816 = vmatpush1.msra.mxu0 0.0
      %1817 = vmatprep.subr.mxu0 0.0
      %1818 = vmatpush1.msra.mxu0 0.0
      %1819 = vmatprep.subr.mxu0 0.0
      %1820 = vmatpush1.msra.mxu0 0.0
      %1821 = vmatprep.subr.mxu0 0.0
      %1822 = vmatpush1.msra.mxu0 0.0
      %1823 = vmatprep.subr.mxu0 0.0
      %1824 = vmatpush1.msra.mxu0 0.0
      %1825 = vmatprep.subr.mxu0 0.0
      %1826 = vmatpush1.msra.mxu0 0.0
      %1827 = vmatprep.subr.mxu0 0.0
      %1828 = vmatpush1.msra.mxu0 0.0
      %1829 = vmatprep.subr.mxu0 0.0
      %1830 = vmatpush1.msra.mxu0 0.0
      %1831 = vmatprep.subr.mxu0 0.0
      %1832 = vmatpush1.msra.mxu0 0.0
      %1833 = vmatprep.subr.mxu0 0.0
      %1834 = vmatpush1.msra.mxu0 %v1784
      %1835 = vmatprep.subr.mxu0 0.0
      %1836 = vmatpush1.msra.mxu0 %v1783
      %1837 = vmatprep.subr.mxu0 0.0
      %1838 = vmatpush1.msra.mxu0 %v1782
      %1839 = vmatprep.subr.mxu0 0.0
      %1840 = vmatpush1.msra.mxu0 %v1781
      %1841 = vmatprep.subr.mxu0 0.0
      %1842 = vmatpush2.msra.mxu0 0.0
      %1843 = vmatprep.subr.mxu0 0.0
      %1844 = vmatpush2.msra.mxu0 0.0
      %1845 = vmatprep.subr.mxu0 0.0
      %1846 = vmatpush2.msra.mxu0 0.0
      %1847 = vmatprep.subr.mxu0 0.0
      %1848 = vmatpush2.msra.mxu0 0.0
      %1849 = vmatprep.subr.mxu0 0.0
      %1850 = vmatpush2.msra.mxu0 0.0
      %1851 = vmatprep.subr.mxu0 0.0
      %1852 = vmatpush2.msra.mxu0 0.0
      %1853 = vmatprep.subr.mxu0 0.0
      %1854 = vmatpush2.msra.mxu0 0.0
      %1855 = vmatprep.subr.mxu0 0.0
      %1856 = vmatpush2.msra.mxu0 0.0
      %1857 = vmatprep.subr.mxu0 0.0
      %1858 = vmatpush2.msra.mxu0 0.0
      %1859 = vmatprep.subr.mxu0 0.0
      %1860 = vmatpush2.msra.mxu0 0.0
      %1861 = vmatprep.subr.mxu0 0.0
      %1862 = vmatpush2.msra.mxu0 0.0
      %1863 = vmatprep.subr.mxu0 0.0
      %1864 = vmatpush2.msra.mxu0 0.0
      %1865 = vmatprep.subr.mxu0 0.0
      %1866 = vmatpush2.msra.mxu0 0.0
      %1867 = vmatprep.subr.mxu0 0.0
      %1868 = vmatpush2.msra.mxu0 0.0
      %1869 = vmatprep.subr.mxu0 0.0
      %1870 = vmatpush2.msra.mxu0 0.0
      %1871 = vmatprep.subr.mxu0 0.0
      %1872 = vmatpush2.msra.mxu0 0.0
      %1873 = vmatprep.mubr.f32.mxu0 0.0
      %1874 = vmatmul.mubr.f32.gmra.mxu0 %v1786
      %v1875 = vpop.f32.mrf.mxu0
      %v1876 = vadd.f32 0.0, %v1875
      %v1877 = vpop.f32.mrf.mxu0
      %1878 = vmatprep.mubr.f32.mxu0 0.0
      %1879 = vmatmul.mubr.f32.gmra.mxu0 %v1789
      %v1880 = vpop.f32.mrf.mxu0
      %v1881 = vadd.f32 0.0, %v1880
      %v1882 = vpop.f32.mrf.mxu0
      %1883 = vmatprep.mubr.f32.mxu0 0.0
      %1884 = vmatmul.mubr.f32.gmra.mxu0 %v1792
      %v1885 = vpop.f32.mrf.mxu0
      %v1886 = vadd.f32 0.0, %v1885
      %v1887 = vpop.f32.mrf.mxu0
      %1888 = vmatprep.mubr.f32.mxu0 0.0
      %1889 = vmatmul.mubr.f32.gmra.mxu0 %v1795
      %v1890 = vpop.f32.mrf.mxu0
      %v1891 = vadd.f32 0.0, %v1890
      %v1892 = vpop.f32.mrf.mxu0
      %1893 = vmatprep.mubr.f32.mxu0 0.0
      %1894 = vmatmul.mubr.f32.gmra.mxu0 %v1798
      %v1895 = vpop.f32.mrf.mxu0
      %v1896 = vadd.f32 0.0, %v1895
      %v1897 = vpop.f32.mrf.mxu0
      %1898 = vmatprep.mubr.f32.mxu0 0.0
      %1899 = vmatmul.mubr.f32.gmra.mxu0 %v1801
      %v1900 = vpop.f32.mrf.mxu0
      %v1901 = vadd.f32 0.0, %v1900
      %v1902 = vpop.f32.mrf.mxu0
      %1903 = vmatprep.mubr.f32.mxu0 0.0
      %1904 = vmatmul.mubr.f32.gmra.mxu0 %v1804
      %v1905 = vpop.f32.mrf.mxu0
      %v1906 = vadd.f32 0.0, %v1905
      %v1907 = vpop.f32.mrf.mxu0
      %1908 = vmatprep.mubr.f32.mxu0 0.0
      %1909 = vmatmul.mubr.f32.gmra.mxu0 %v1807
      %v1910 = vpop.f32.mrf.mxu0
      %v1911 = vadd.f32 0.0, %v1910
      %v1912 = vpop.f32.mrf.mxu0
      %1913 = vdwg.mxu0
      %v1914 = vadd.f32 %v1733, %v1876
      %v1915 = vadd.f32 %v1738, %v1881
      %v1916 = vadd.f32 %v1743, %v1886
      %v1917 = vadd.f32 %v1748, %v1891
      %v1918 = vadd.f32 %v1753, %v1896
      %v1919 = vadd.f32 %v1758, %v1901
      %v1920 = vadd.f32 %v1763, %v1906
      %v1921 = vadd.f32 %v1768, %v1911
      %v1922 = vld [vmem:[%s1771 + $0x1] sm:$0xff]
      %v1923 = vld [vmem:[%s1771 + $0x11] sm:$0xff]
      %v1924 = vld [vmem:[%s1771 + $0x21] sm:$0xff]
      %v1925 = vld [vmem:[%s1771 + $0x31] sm:$0xff]
      %v1926 = vld [vmem:[%s1771 + $0x41] sm:$0xff]
      %v1927 = vld [vmem:[%s1771 + $0x51] sm:$0xff]
      %v1928 = vld [vmem:[%s1771 + $0x61] sm:$0xff]
      %v1929 = vld [vmem:[%s1771 + $0x71] sm:$0xff]
      %s1930 = scalar_lea.vmem %s2, 352
      %v1931 = vld [vmem:[%s1930] sm:$0xff]
      %v1932 = vld [vmem:[%s1930 + $0x8] sm:$0xff]
      %v1933 = vld [vmem:[%s1930 + $0x10] sm:$0xff]
      %v1934 = vld [vmem:[%s1930 + $0x18] sm:$0xff]
      %v1936 = vsel %vm218, %v1922, 0
      %v1939 = vsel %vm218, %v1923, 0
      %v1942 = vsel %vm218, %v1924, 0
      %v1945 = vsel %vm218, %v1925, 0
      %v1948 = vsel %vm218, %v1926, 0
      %v1951 = vsel %vm218, %v1927, 0
      %v1954 = vsel %vm218, %v1928, 0
      %v1957 = vsel %vm218, %v1929, 0
      %1959 = vmatprep.subr.mxu0 0.0
      %1960 = vmatpush1.msra.mxu0 0.0
      %1961 = vmatprep.subr.mxu0 0.0
      %1962 = vmatpush1.msra.mxu0 0.0
      %1963 = vmatprep.subr.mxu0 0.0
      %1964 = vmatpush1.msra.mxu0 0.0
      %1965 = vmatprep.subr.mxu0 0.0
      %1966 = vmatpush1.msra.mxu0 0.0
      %1967 = vmatprep.subr.mxu0 0.0
      %1968 = vmatpush1.msra.mxu0 0.0
      %1969 = vmatprep.subr.mxu0 0.0
      %1970 = vmatpush1.msra.mxu0 0.0
      %1971 = vmatprep.subr.mxu0 0.0
      %1972 = vmatpush1.msra.mxu0 0.0
      %1973 = vmatprep.subr.mxu0 0.0
      %1974 = vmatpush1.msra.mxu0 0.0
      %1975 = vmatprep.subr.mxu0 0.0
      %1976 = vmatpush1.msra.mxu0 0.0
      %1977 = vmatprep.subr.mxu0 0.0
      %1978 = vmatpush1.msra.mxu0 0.0
      %1979 = vmatprep.subr.mxu0 0.0
      %1980 = vmatpush1.msra.mxu0 0.0
      %1981 = vmatprep.subr.mxu0 0.0
      %1982 = vmatpush1.msra.mxu0 0.0
      %1983 = vmatprep.subr.mxu0 0.0
      %1984 = vmatpush1.msra.mxu0 %v1934
      %1985 = vmatprep.subr.mxu0 0.0
      %1986 = vmatpush1.msra.mxu0 %v1933
      %1987 = vmatprep.subr.mxu0 0.0
      %1988 = vmatpush1.msra.mxu0 %v1932
      %1989 = vmatprep.subr.mxu0 0.0
      %1990 = vmatpush1.msra.mxu0 %v1931
      %1991 = vmatprep.subr.mxu0 0.0
      %1992 = vmatpush2.msra.mxu0 0.0
      %1993 = vmatprep.subr.mxu0 0.0
      %1994 = vmatpush2.msra.mxu0 0.0
      %1995 = vmatprep.subr.mxu0 0.0
      %1996 = vmatpush2.msra.mxu0 0.0
      %1997 = vmatprep.subr.mxu0 0.0
      %1998 = vmatpush2.msra.mxu0 0.0
      %1999 = vmatprep.subr.mxu0 0.0
      %2000 = vmatpush2.msra.mxu0 0.0
      %2001 = vmatprep.subr.mxu0 0.0
      %2002 = vmatpush2.msra.mxu0 0.0
      %2003 = vmatprep.subr.mxu0 0.0
      %2004 = vmatpush2.msra.mxu0 0.0
      %2005 = vmatprep.subr.mxu0 0.0
      %2006 = vmatpush2.msra.mxu0 0.0
      %2007 = vmatprep.subr.mxu0 0.0
      %2008 = vmatpush2.msra.mxu0 0.0
      %2009 = vmatprep.subr.mxu0 0.0
      %2010 = vmatpush2.msra.mxu0 0.0
      %2011 = vmatprep.subr.mxu0 0.0
      %2012 = vmatpush2.msra.mxu0 0.0
      %2013 = vmatprep.subr.mxu0 0.0
      %2014 = vmatpush2.msra.mxu0 0.0
      %2015 = vmatprep.subr.mxu0 0.0
      %2016 = vmatpush2.msra.mxu0 0.0
      %2017 = vmatprep.subr.mxu0 0.0
      %2018 = vmatpush2.msra.mxu0 0.0
      %2019 = vmatprep.subr.mxu0 0.0
      %2020 = vmatpush2.msra.mxu0 0.0
      %2021 = vmatprep.subr.mxu0 0.0
      %2022 = vmatpush2.msra.mxu0 0.0
      %2023 = vmatprep.mubr.f32.mxu0 0.0
      %2024 = vmatmul.mubr.f32.gmra.mxu0 %v1936
      %v2025 = vpop.f32.mrf.mxu0
      %v2026 = vadd.f32 0.0, %v2025
      %v2027 = vpop.f32.mrf.mxu0
      %2028 = vmatprep.mubr.f32.mxu0 0.0
      %2029 = vmatmul.mubr.f32.gmra.mxu0 %v1939
      %v2030 = vpop.f32.mrf.mxu0
      %v2031 = vadd.f32 0.0, %v2030
      %v2032 = vpop.f32.mrf.mxu0
      %2033 = vmatprep.mubr.f32.mxu0 0.0
      %2034 = vmatmul.mubr.f32.gmra.mxu0 %v1942
      %v2035 = vpop.f32.mrf.mxu0
      %v2036 = vadd.f32 0.0, %v2035
      %v2037 = vpop.f32.mrf.mxu0
      %2038 = vmatprep.mubr.f32.mxu0 0.0
      %2039 = vmatmul.mubr.f32.gmra.mxu0 %v1945
      %v2040 = vpop.f32.mrf.mxu0
      %v2041 = vadd.f32 0.0, %v2040
      %v2042 = vpop.f32.mrf.mxu0
      %2043 = vmatprep.mubr.f32.mxu0 0.0
      %2044 = vmatmul.mubr.f32.gmra.mxu0 %v1948
      %v2045 = vpop.f32.mrf.mxu0
      %v2046 = vadd.f32 0.0, %v2045
      %v2047 = vpop.f32.mrf.mxu0
      %2048 = vmatprep.mubr.f32.mxu0 0.0
      %2049 = vmatmul.mubr.f32.gmra.mxu0 %v1951
      %v2050 = vpop.f32.mrf.mxu0
      %v2051 = vadd.f32 0.0, %v2050
      %v2052 = vpop.f32.mrf.mxu0
      %2053 = vmatprep.mubr.f32.mxu0 0.0
      %2054 = vmatmul.mubr.f32.gmra.mxu0 %v1954
      %v2055 = vpop.f32.mrf.mxu0
      %v2056 = vadd.f32 0.0, %v2055
      %v2057 = vpop.f32.mrf.mxu0
      %2058 = vmatprep.mubr.f32.mxu0 0.0
      %2059 = vmatmul.mubr.f32.gmra.mxu0 %v1957
      %v2060 = vpop.f32.mrf.mxu0
      %v2061 = vadd.f32 0.0, %v2060
      %v2062 = vpop.f32.mrf.mxu0
      %2063 = vdwg.mxu0
      %v2064 = vadd.f32 %v1914, %v2026
      %v2065 = vadd.f32 %v1915, %v2031
      %v2066 = vadd.f32 %v1916, %v2036
      %v2067 = vadd.f32 %v1917, %v2041
      %v2068 = vadd.f32 %v1918, %v2046
      %v2069 = vadd.f32 %v1919, %v2051
      %v2070 = vadd.f32 %v1920, %v2056
      %v2071 = vadd.f32 %v1921, %v2061
      %v2072 = vadd.f32 %v2064, %v901
      %v2073 = vadd.f32 %v2065, %v901
      %v2074 = vadd.f32 %v2066, %v901
      %v2075 = vadd.f32 %v2067, %v901
      %v2076 = vadd.f32 %v2068, %v901
      %v2077 = vadd.f32 %v2069, %v901
      %v2078 = vadd.f32 %v2070, %v901
      %v2079 = vadd.f32 %v2071, %v901
      %v2080 = vmax.f32 %v2072, 0.0
      %v2081 = vmax.f32 %v2073, 0.0
      %v2082 = vmax.f32 %v2074, 0.0
      %v2083 = vmax.f32 %v2075, 0.0
      %v2084 = vmax.f32 %v2076, 0.0
      %v2085 = vmax.f32 %v2077, 0.0
      %v2086 = vmax.f32 %v2078, 0.0
      %v2087 = vmax.f32 %v2079, 0.0
      %v2088 = vxor.u32 %v2080, 2147483648
      %v2089 = vxor.u32 %v2081, 2147483648
      %v2090 = vxor.u32 %v2082, 2147483648
      %v2091 = vxor.u32 %v2083, 2147483648
      %v2092 = vxor.u32 %v2084, 2147483648
      %v2093 = vxor.u32 %v2085, 2147483648
      %v2094 = vxor.u32 %v2086, 2147483648
      %v2095 = vxor.u32 %v2087, 2147483648
      %v2096 = vmul.f32 %v2088, 1.442695
      %v2097 = vpow.pop %v2096
      %v2098 = vmul.f32 %v2089, 1.442695
      %v2099 = vpow.pop %v2098
      %v2100 = vmul.f32 %v2090, 1.442695
      %v2101 = vpow.pop %v2100
      %v2102 = vmul.f32 %v2091, 1.442695
      %v2103 = vpow.pop %v2102
      %v2104 = vmul.f32 %v2092, 1.442695
      %v2105 = vpow.pop %v2104
      %v2106 = vmul.f32 %v2093, 1.442695
      %v2107 = vpow.pop %v2106
      %v2108 = vmul.f32 %v2094, 1.442695
      %v2109 = vpow.pop %v2108
      %v2110 = vmul.f32 %v2095, 1.442695
      %v2111 = vpow.pop %v2110
      %v2112 = vadd.f32 %v2097, 1.0
      %v2113 = vadd.f32 %v2099, 1.0
      %v2114 = vadd.f32 %v2101, 1.0
      %v2115 = vadd.f32 %v2103, 1.0
      %v2116 = vadd.f32 %v2105, 1.0
      %v2117 = vadd.f32 %v2107, 1.0
      %v2118 = vadd.f32 %v2109, 1.0
      %v2119 = vadd.f32 %v2111, 1.0
      %v2120 = vrcp.pop %v2112
      %v2121 = vmul.f32 1.0, %v2120
      %v2122 = vrcp.pop %v2113
      %v2123 = vmul.f32 1.0, %v2122
      %v2124 = vrcp.pop %v2114
      %v2125 = vmul.f32 1.0, %v2124
      %v2126 = vrcp.pop %v2115
      %v2127 = vmul.f32 1.0, %v2126
      %v2128 = vrcp.pop %v2116
      %v2129 = vmul.f32 1.0, %v2128
      %v2130 = vrcp.pop %v2117
      %v2131 = vmul.f32 1.0, %v2130
      %v2132 = vrcp.pop %v2118
      %v2133 = vmul.f32 1.0, %v2132
      %v2134 = vrcp.pop %v2119
      %v2135 = vmul.f32 1.0, %v2134
      %s2136 = scalar_lea.vmem %s2, 384
      %v2137 = vld [vmem:[%s2136] sm:$0xff]
      %v2138 = vld [vmem:[%s2136 + $0x8] sm:$0xff]
      %v2139 = vld [vmem:[%s2136 + $0x10] sm:$0xff]
      %v2140 = vld [vmem:[%s2136 + $0x18] sm:$0xff]
      %s2141 = scalar_lea.vmem %s2, 416
      %v2142 = vld [vmem:[%s2141] sm:$0xff]
      %v2143 = vld [vmem:[%s2141 + $0x8] sm:$0xff]
      %v2144 = vld [vmem:[%s2141 + $0x10] sm:$0xff]
      %v2145 = vld [vmem:[%s2141 + $0x18] sm:$0xff]
      %2146 = vmatprep.subr.mxu0 0.0
      %2147 = vmatpush1.msra.mxu0 0.0
      %2148 = vmatprep.subr.mxu0 0.0
      %2149 = vmatpush1.msra.mxu0 0.0
      %2150 = vmatprep.subr.mxu0 0.0
      %2151 = vmatpush1.msra.mxu0 0.0
      %2152 = vmatprep.subr.mxu0 0.0
      %2153 = vmatpush1.msra.mxu0 0.0
      %2154 = vmatprep.subr.mxu0 0.0
      %2155 = vmatpush1.msra.mxu0 0.0
      %2156 = vmatprep.subr.mxu0 0.0
      %2157 = vmatpush1.msra.mxu0 0.0
      %2158 = vmatprep.subr.mxu0 0.0
      %2159 = vmatpush1.msra.mxu0 0.0
      %2160 = vmatprep.subr.mxu0 0.0
      %2161 = vmatpush1.msra.mxu0 0.0
      %2162 = vmatprep.subr.mxu0 0.0
      %2163 = vmatpush1.msra.mxu0 0.0
      %2164 = vmatprep.subr.mxu0 0.0
      %2165 = vmatpush1.msra.mxu0 0.0
      %2166 = vmatprep.subr.mxu0 0.0
      %2167 = vmatpush1.msra.mxu0 0.0
      %2168 = vmatprep.subr.mxu0 0.0
      %2169 = vmatpush1.msra.mxu0 0.0
      %2170 = vmatprep.subr.mxu0 0.0
      %2171 = vmatpush1.msra.mxu0 %v2145
      %2172 = vmatprep.subr.mxu0 0.0
      %2173 = vmatpush1.msra.mxu0 %v2144
      %2174 = vmatprep.subr.mxu0 0.0
      %2175 = vmatpush1.msra.mxu0 %v2143
      %2176 = vmatprep.subr.mxu0 0.0
      %2177 = vmatpush1.msra.mxu0 %v2142
      %2178 = vmatprep.subr.mxu0 0.0
      %2179 = vmatpush2.msra.mxu0 0.0
      %2180 = vmatprep.subr.mxu0 0.0
      %2181 = vmatpush2.msra.mxu0 0.0
      %2182 = vmatprep.subr.mxu0 0.0
      %2183 = vmatpush2.msra.mxu0 0.0
      %2184 = vmatprep.subr.mxu0 0.0
      %2185 = vmatpush2.msra.mxu0 0.0
      %2186 = vmatprep.subr.mxu0 0.0
      %2187 = vmatpush2.msra.mxu0 0.0
      %2188 = vmatprep.subr.mxu0 0.0
      %2189 = vmatpush2.msra.mxu0 0.0
      %2190 = vmatprep.subr.mxu0 0.0
      %2191 = vmatpush2.msra.mxu0 0.0
      %2192 = vmatprep.subr.mxu0 0.0
      %2193 = vmatpush2.msra.mxu0 0.0
      %2194 = vmatprep.subr.mxu0 0.0
      %2195 = vmatpush2.msra.mxu0 0.0
      %2196 = vmatprep.subr.mxu0 0.0
      %2197 = vmatpush2.msra.mxu0 0.0
      %2198 = vmatprep.subr.mxu0 0.0
      %2199 = vmatpush2.msra.mxu0 0.0
      %2200 = vmatprep.subr.mxu0 0.0
      %2201 = vmatpush2.msra.mxu0 0.0
      %2202 = vmatprep.subr.mxu0 0.0
      %2203 = vmatpush2.msra.mxu0 0.0
      %2204 = vmatprep.subr.mxu0 0.0
      %2205 = vmatpush2.msra.mxu0 0.0
      %2206 = vmatprep.subr.mxu0 0.0
      %2207 = vmatpush2.msra.mxu0 0.0
      %2208 = vmatprep.subr.mxu0 0.0
      %2209 = vmatpush2.msra.mxu0 0.0
      %2210 = vmatprep.mubr.f32.mxu0 0.0
      %2211 = vmatmul.mubr.f32.gmra.mxu0 %v1351
      %v2212 = vpop.f32.mrf.mxu0
      %v2213 = vadd.f32 0.0, %v2212
      %v2214 = vpop.f32.mrf.mxu0
      %2215 = vmatprep.mubr.f32.mxu0 0.0
      %2216 = vmatmul.mubr.f32.gmra.mxu0 %v1354
      %v2217 = vpop.f32.mrf.mxu0
      %v2218 = vadd.f32 0.0, %v2217
      %v2219 = vpop.f32.mrf.mxu0
      %2220 = vmatprep.mubr.f32.mxu0 0.0
      %2221 = vmatmul.mubr.f32.gmra.mxu0 %v1357
      %v2222 = vpop.f32.mrf.mxu0
      %v2223 = vadd.f32 0.0, %v2222
      %v2224 = vpop.f32.mrf.mxu0
      %2225 = vmatprep.mubr.f32.mxu0 0.0
      %2226 = vmatmul.mubr.f32.gmra.mxu0 %v1360
      %v2227 = vpop.f32.mrf.mxu0
      %v2228 = vadd.f32 0.0, %v2227
      %v2229 = vpop.f32.mrf.mxu0
      %2230 = vmatprep.mubr.f32.mxu0 0.0
      %2231 = vmatmul.mubr.f32.gmra.mxu0 %v1363
      %v2232 = vpop.f32.mrf.mxu0
      %v2233 = vadd.f32 0.0, %v2232
      %v2234 = vpop.f32.mrf.mxu0
      %2235 = vmatprep.mubr.f32.mxu0 0.0
      %2236 = vmatmul.mubr.f32.gmra.mxu0 %v1366
      %v2237 = vpop.f32.mrf.mxu0
      %v2238 = vadd.f32 0.0, %v2237
      %v2239 = vpop.f32.mrf.mxu0
      %2240 = vmatprep.mubr.f32.mxu0 0.0
      %2241 = vmatmul.mubr.f32.gmra.mxu0 %v1369
      %v2242 = vpop.f32.mrf.mxu0
      %v2243 = vadd.f32 0.0, %v2242
      %v2244 = vpop.f32.mrf.mxu0
      %2245 = vmatprep.mubr.f32.mxu0 0.0
      %2246 = vmatmul.mubr.f32.gmra.mxu0 %v1372
      %v2247 = vpop.f32.mrf.mxu0
      %v2248 = vadd.f32 0.0, %v2247
      %v2249 = vpop.f32.mrf.mxu0
      %2250 = vdwg.mxu0
      %2251 = vmatprep.subr.mxu0 0.0
      %2252 = vmatpush1.msra.mxu0 0.0
      %2253 = vmatprep.subr.mxu0 0.0
      %2254 = vmatpush1.msra.mxu0 0.0
      %2255 = vmatprep.subr.mxu0 0.0
      %2256 = vmatpush1.msra.mxu0 0.0
      %2257 = vmatprep.subr.mxu0 0.0
      %2258 = vmatpush1.msra.mxu0 0.0
      %2259 = vmatprep.subr.mxu0 0.0
      %2260 = vmatpush1.msra.mxu0 0.0
      %2261 = vmatprep.subr.mxu0 0.0
      %2262 = vmatpush1.msra.mxu0 0.0
      %2263 = vmatprep.subr.mxu0 0.0
      %2264 = vmatpush1.msra.mxu0 0.0
      %2265 = vmatprep.subr.mxu0 0.0
      %2266 = vmatpush1.msra.mxu0 0.0
      %2267 = vmatprep.subr.mxu0 0.0
      %2268 = vmatpush1.msra.mxu0 0.0
      %2269 = vmatprep.subr.mxu0 0.0
      %2270 = vmatpush1.msra.mxu0 0.0
      %2271 = vmatprep.subr.mxu0 0.0
      %2272 = vmatpush1.msra.mxu0 0.0
      %2273 = vmatprep.subr.mxu0 0.0
      %2274 = vmatpush1.msra.mxu0 0.0
      %2275 = vmatprep.subr.mxu0 0.0
      %2276 = vmatpush1.msra.mxu0 %v2140
      %2277 = vmatprep.subr.mxu0 0.0
      %2278 = vmatpush1.msra.mxu0 %v2139
      %2279 = vmatprep.subr.mxu0 0.0
      %2280 = vmatpush1.msra.mxu0 %v2138
      %2281 = vmatprep.subr.mxu0 0.0
      %2282 = vmatpush1.msra.mxu0 %v2137
      %2283 = vmatprep.subr.mxu0 0.0
      %2284 = vmatpush2.msra.mxu0 0.0
      %2285 = vmatprep.subr.mxu0 0.0
      %2286 = vmatpush2.msra.mxu0 0.0
      %2287 = vmatprep.subr.mxu0 0.0
      %2288 = vmatpush2.msra.mxu0 0.0
      %2289 = vmatprep.subr.mxu0 0.0
      %2290 = vmatpush2.msra.mxu0 0.0
      %2291 = vmatprep.subr.mxu0 0.0
      %2292 = vmatpush2.msra.mxu0 0.0
      %2293 = vmatprep.subr.mxu0 0.0
      %2294 = vmatpush2.msra.mxu0 0.0
      %2295 = vmatprep.subr.mxu0 0.0
      %2296 = vmatpush2.msra.mxu0 0.0
      %2297 = vmatprep.subr.mxu0 0.0
      %2298 = vmatpush2.msra.mxu0 0.0
      %2299 = vmatprep.subr.mxu0 0.0
      %2300 = vmatpush2.msra.mxu0 0.0
      %2301 = vmatprep.subr.mxu0 0.0
      %2302 = vmatpush2.msra.mxu0 0.0
      %2303 = vmatprep.subr.mxu0 0.0
      %2304 = vmatpush2.msra.mxu0 0.0
      %2305 = vmatprep.subr.mxu0 0.0
      %2306 = vmatpush2.msra.mxu0 0.0
      %2307 = vmatprep.subr.mxu0 0.0
      %2308 = vmatpush2.msra.mxu0 0.0
      %2309 = vmatprep.subr.mxu0 0.0
      %2310 = vmatpush2.msra.mxu0 0.0
      %2311 = vmatprep.subr.mxu0 0.0
      %2312 = vmatpush2.msra.mxu0 0.0
      %2313 = vmatprep.subr.mxu0 0.0
      %2314 = vmatpush2.msra.mxu0 0.0
      %2315 = vmatprep.mubr.f32.mxu0 0.0
      %2316 = vmatmul.mubr.f32.gmra.mxu0 %v761
      %v2317 = vpop.f32.mrf.mxu0
      %v2318 = vadd.f32 %v2213, %v2317
      %v2319 = vpop.f32.mrf.mxu0
      %2320 = vmatprep.mubr.f32.mxu0 0.0
      %2321 = vmatmul.mubr.f32.gmra.mxu0 %v764
      %v2322 = vpop.f32.mrf.mxu0
      %v2323 = vadd.f32 %v2218, %v2322
      %v2324 = vpop.f32.mrf.mxu0
      %2325 = vmatprep.mubr.f32.mxu0 0.0
      %2326 = vmatmul.mubr.f32.gmra.mxu0 %v767
      %v2327 = vpop.f32.mrf.mxu0
      %v2328 = vadd.f32 %v2223, %v2327
      %v2329 = vpop.f32.mrf.mxu0
      %2330 = vmatprep.mubr.f32.mxu0 0.0
      %2331 = vmatmul.mubr.f32.gmra.mxu0 %v770
      %v2332 = vpop.f32.mrf.mxu0
      %v2333 = vadd.f32 %v2228, %v2332
      %v2334 = vpop.f32.mrf.mxu0
      %2335 = vmatprep.mubr.f32.mxu0 0.0
      %2336 = vmatmul.mubr.f32.gmra.mxu0 %v773
      %v2337 = vpop.f32.mrf.mxu0
      %v2338 = vadd.f32 %v2233, %v2337
      %v2339 = vpop.f32.mrf.mxu0
      %2340 = vmatprep.mubr.f32.mxu0 0.0
      %2341 = vmatmul.mubr.f32.gmra.mxu0 %v776
      %v2342 = vpop.f32.mrf.mxu0
      %v2343 = vadd.f32 %v2238, %v2342
      %v2344 = vpop.f32.mrf.mxu0
      %2345 = vmatprep.mubr.f32.mxu0 0.0
      %2346 = vmatmul.mubr.f32.gmra.mxu0 %v779
      %v2347 = vpop.f32.mrf.mxu0
      %v2348 = vadd.f32 %v2243, %v2347
      %v2349 = vpop.f32.mrf.mxu0
      %2350 = vmatprep.mubr.f32.mxu0 0.0
      %2351 = vmatmul.mubr.f32.gmra.mxu0 %v782
      %v2352 = vpop.f32.mrf.mxu0
      %v2353 = vadd.f32 %v2248, %v2352
      %v2354 = vpop.f32.mrf.mxu0
      %2355 = vdwg.mxu0
      %s2356 = scalar_lea.vmem %s2, 448
      %v2357 = vld [vmem:[%s2356] sm:$0xff]
      %v2358 = vld [vmem:[%s2356 + $0x8] sm:$0xff]
      %v2359 = vld [vmem:[%s2356 + $0x10] sm:$0xff]
      %v2360 = vld [vmem:[%s2356 + $0x18] sm:$0xff]
      %2361 = vmatprep.subr.mxu0 0.0
      %2362 = vmatpush1.msra.mxu0 0.0
      %2363 = vmatprep.subr.mxu0 0.0
      %2364 = vmatpush1.msra.mxu0 0.0
      %2365 = vmatprep.subr.mxu0 0.0
      %2366 = vmatpush1.msra.mxu0 0.0
      %2367 = vmatprep.subr.mxu0 0.0
      %2368 = vmatpush1.msra.mxu0 0.0
      %2369 = vmatprep.subr.mxu0 0.0
      %2370 = vmatpush1.msra.mxu0 0.0
      %2371 = vmatprep.subr.mxu0 0.0
      %2372 = vmatpush1.msra.mxu0 0.0
      %2373 = vmatprep.subr.mxu0 0.0
      %2374 = vmatpush1.msra.mxu0 0.0
      %2375 = vmatprep.subr.mxu0 0.0
      %2376 = vmatpush1.msra.mxu0 0.0
      %2377 = vmatprep.subr.mxu0 0.0
      %2378 = vmatpush1.msra.mxu0 0.0
      %2379 = vmatprep.subr.mxu0 0.0
      %2380 = vmatpush1.msra.mxu0 0.0
      %2381 = vmatprep.subr.mxu0 0.0
      %2382 = vmatpush1.msra.mxu0 0.0
      %2383 = vmatprep.subr.mxu0 0.0
      %2384 = vmatpush1.msra.mxu0 0.0
      %2385 = vmatprep.subr.mxu0 0.0
      %2386 = vmatpush1.msra.mxu0 %v2360
      %2387 = vmatprep.subr.mxu0 0.0
      %2388 = vmatpush1.msra.mxu0 %v2359
      %2389 = vmatprep.subr.mxu0 0.0
      %2390 = vmatpush1.msra.mxu0 %v2358
      %2391 = vmatprep.subr.mxu0 0.0
      %2392 = vmatpush1.msra.mxu0 %v2357
      %2393 = vmatprep.subr.mxu0 0.0
      %2394 = vmatpush2.msra.mxu0 0.0
      %2395 = vmatprep.subr.mxu0 0.0
      %2396 = vmatpush2.msra.mxu0 0.0
      %2397 = vmatprep.subr.mxu0 0.0
      %2398 = vmatpush2.msra.mxu0 0.0
      %2399 = vmatprep.subr.mxu0 0.0
      %2400 = vmatpush2.msra.mxu0 0.0
      %2401 = vmatprep.subr.mxu0 0.0
      %2402 = vmatpush2.msra.mxu0 0.0
      %2403 = vmatprep.subr.mxu0 0.0
      %2404 = vmatpush2.msra.mxu0 0.0
      %2405 = vmatprep.subr.mxu0 0.0
      %2406 = vmatpush2.msra.mxu0 0.0
      %2407 = vmatprep.subr.mxu0 0.0
      %2408 = vmatpush2.msra.mxu0 0.0
      %2409 = vmatprep.subr.mxu0 0.0
      %2410 = vmatpush2.msra.mxu0 0.0
      %2411 = vmatprep.subr.mxu0 0.0
      %2412 = vmatpush2.msra.mxu0 0.0
      %2413 = vmatprep.subr.mxu0 0.0
      %2414 = vmatpush2.msra.mxu0 0.0
      %2415 = vmatprep.subr.mxu0 0.0
      %2416 = vmatpush2.msra.mxu0 0.0
      %2417 = vmatprep.subr.mxu0 0.0
      %2418 = vmatpush2.msra.mxu0 0.0
      %2419 = vmatprep.subr.mxu0 0.0
      %2420 = vmatpush2.msra.mxu0 0.0
      %2421 = vmatprep.subr.mxu0 0.0
      %2422 = vmatpush2.msra.mxu0 0.0
      %2423 = vmatprep.subr.mxu0 0.0
      %2424 = vmatpush2.msra.mxu0 0.0
      %2425 = vmatprep.mubr.f32.mxu0 0.0
      %2426 = vmatmul.mubr.f32.gmra.mxu0 %v1936
      %v2427 = vpop.f32.mrf.mxu0
      %v2428 = vadd.f32 0.0, %v2427
      %v2429 = vpop.f32.mrf.mxu0
      %2430 = vmatprep.mubr.f32.mxu0 0.0
      %2431 = vmatmul.mubr.f32.gmra.mxu0 %v1939
      %v2432 = vpop.f32.mrf.mxu0
      %v2433 = vadd.f32 0.0, %v2432
      %v2434 = vpop.f32.mrf.mxu0
      %2435 = vmatprep.mubr.f32.mxu0 0.0
      %2436 = vmatmul.mubr.f32.gmra.mxu0 %v1942
      %v2437 = vpop.f32.mrf.mxu0
      %v2438 = vadd.f32 0.0, %v2437
      %v2439 = vpop.f32.mrf.mxu0
      %2440 = vmatprep.mubr.f32.mxu0 0.0
      %2441 = vmatmul.mubr.f32.gmra.mxu0 %v1945
      %v2442 = vpop.f32.mrf.mxu0
      %v2443 = vadd.f32 0.0, %v2442
      %v2444 = vpop.f32.mrf.mxu0
      %2445 = vmatprep.mubr.f32.mxu0 0.0
      %2446 = vmatmul.mubr.f32.gmra.mxu0 %v1948
      %v2447 = vpop.f32.mrf.mxu0
      %v2448 = vadd.f32 0.0, %v2447
      %v2449 = vpop.f32.mrf.mxu0
      %2450 = vmatprep.mubr.f32.mxu0 0.0
      %2451 = vmatmul.mubr.f32.gmra.mxu0 %v1951
      %v2452 = vpop.f32.mrf.mxu0
      %v2453 = vadd.f32 0.0, %v2452
      %v2454 = vpop.f32.mrf.mxu0
      %2455 = vmatprep.mubr.f32.mxu0 0.0
      %2456 = vmatmul.mubr.f32.gmra.mxu0 %v1954
      %v2457 = vpop.f32.mrf.mxu0
      %v2458 = vadd.f32 0.0, %v2457
      %v2459 = vpop.f32.mrf.mxu0
      %2460 = vmatprep.mubr.f32.mxu0 0.0
      %2461 = vmatmul.mubr.f32.gmra.mxu0 %v1957
      %v2462 = vpop.f32.mrf.mxu0
      %v2463 = vadd.f32 0.0, %v2462
      %v2464 = vpop.f32.mrf.mxu0
      %2465 = vdwg.mxu0
      %v2466 = vadd.f32 %v2318, %v2428
      %v2467 = vadd.f32 %v2323, %v2433
      %v2468 = vadd.f32 %v2328, %v2438
      %v2469 = vadd.f32 %v2333, %v2443
      %v2470 = vadd.f32 %v2338, %v2448
      %v2471 = vadd.f32 %v2343, %v2453
      %v2472 = vadd.f32 %v2348, %v2458
      %v2473 = vadd.f32 %v2353, %v2463
      %v2474 = vld [vmem:[%s1771 + $0x2] sm:$0xff]
      %v2475 = vld [vmem:[%s1771 + $0x12] sm:$0xff]
      %v2476 = vld [vmem:[%s1771 + $0x22] sm:$0xff]
      %v2477 = vld [vmem:[%s1771 + $0x32] sm:$0xff]
      %v2478 = vld [vmem:[%s1771 + $0x42] sm:$0xff]
      %v2479 = vld [vmem:[%s1771 + $0x52] sm:$0xff]
      %v2480 = vld [vmem:[%s1771 + $0x62] sm:$0xff]
      %v2481 = vld [vmem:[%s1771 + $0x72] sm:$0xff]
      %s2482 = scalar_lea.vmem %s2, 480
      %v2483 = vld [vmem:[%s2482] sm:$0xff]
      %v2484 = vld [vmem:[%s2482 + $0x8] sm:$0xff]
      %v2485 = vld [vmem:[%s2482 + $0x10] sm:$0xff]
      %v2486 = vld [vmem:[%s2482 + $0x18] sm:$0xff]
      %v2488 = vsel %vm218, %v2474, 0
      %v2491 = vsel %vm218, %v2475, 0
      %v2494 = vsel %vm218, %v2476, 0
      %v2497 = vsel %vm218, %v2477, 0
      %v2500 = vsel %vm218, %v2478, 0
      %v2503 = vsel %vm218, %v2479, 0
      %v2506 = vsel %vm218, %v2480, 0
      %v2509 = vsel %vm218, %v2481, 0
      %2511 = vmatprep.subr.mxu0 0.0
      %2512 = vmatpush1.msra.mxu0 0.0
      %2513 = vmatprep.subr.mxu0 0.0
      %2514 = vmatpush1.msra.mxu0 0.0
      %2515 = vmatprep.subr.mxu0 0.0
      %2516 = vmatpush1.msra.mxu0 0.0
      %2517 = vmatprep.subr.mxu0 0.0
      %2518 = vmatpush1.msra.mxu0 0.0
      %2519 = vmatprep.subr.mxu0 0.0
      %2520 = vmatpush1.msra.mxu0 0.0
      %2521 = vmatprep.subr.mxu0 0.0
      %2522 = vmatpush1.msra.mxu0 0.0
      %2523 = vmatprep.subr.mxu0 0.0
      %2524 = vmatpush1.msra.mxu0 0.0
      %2525 = vmatprep.subr.mxu0 0.0
      %2526 = vmatpush1.msra.mxu0 0.0
      %2527 = vmatprep.subr.mxu0 0.0
      %2528 = vmatpush1.msra.mxu0 0.0
      %2529 = vmatprep.subr.mxu0 0.0
      %2530 = vmatpush1.msra.mxu0 0.0
      %2531 = vmatprep.subr.mxu0 0.0
      %2532 = vmatpush1.msra.mxu0 0.0
      %2533 = vmatprep.subr.mxu0 0.0
      %2534 = vmatpush1.msra.mxu0 0.0
      %2535 = vmatprep.subr.mxu0 0.0
      %2536 = vmatpush1.msra.mxu0 %v2486
      %2537 = vmatprep.subr.mxu0 0.0
      %2538 = vmatpush1.msra.mxu0 %v2485
      %2539 = vmatprep.subr.mxu0 0.0
      %2540 = vmatpush1.msra.mxu0 %v2484
      %2541 = vmatprep.subr.mxu0 0.0
      %2542 = vmatpush1.msra.mxu0 %v2483
      %2543 = vmatprep.subr.mxu0 0.0
      %2544 = vmatpush2.msra.mxu0 0.0
      %2545 = vmatprep.subr.mxu0 0.0
      %2546 = vmatpush2.msra.mxu0 0.0
      %2547 = vmatprep.subr.mxu0 0.0
      %2548 = vmatpush2.msra.mxu0 0.0
      %2549 = vmatprep.subr.mxu0 0.0
      %2550 = vmatpush2.msra.mxu0 0.0
      %2551 = vmatprep.subr.mxu0 0.0
      %2552 = vmatpush2.msra.mxu0 0.0
      %2553 = vmatprep.subr.mxu0 0.0
      %2554 = vmatpush2.msra.mxu0 0.0
      %2555 = vmatprep.subr.mxu0 0.0
      %2556 = vmatpush2.msra.mxu0 0.0
      %2557 = vmatprep.subr.mxu0 0.0
      %2558 = vmatpush2.msra.mxu0 0.0
      %2559 = vmatprep.subr.mxu0 0.0
      %2560 = vmatpush2.msra.mxu0 0.0
      %2561 = vmatprep.subr.mxu0 0.0
      %2562 = vmatpush2.msra.mxu0 0.0
      %2563 = vmatprep.subr.mxu0 0.0
      %2564 = vmatpush2.msra.mxu0 0.0
      %2565 = vmatprep.subr.mxu0 0.0
      %2566 = vmatpush2.msra.mxu0 0.0
      %2567 = vmatprep.subr.mxu0 0.0
      %2568 = vmatpush2.msra.mxu0 0.0
      %2569 = vmatprep.subr.mxu0 0.0
      %2570 = vmatpush2.msra.mxu0 0.0
      %2571 = vmatprep.subr.mxu0 0.0
      %2572 = vmatpush2.msra.mxu0 0.0
      %2573 = vmatprep.subr.mxu0 0.0
      %2574 = vmatpush2.msra.mxu0 0.0
      %2575 = vmatprep.mubr.f32.mxu0 0.0
      %2576 = vmatmul.mubr.f32.gmra.mxu0 %v2488
      %v2577 = vpop.f32.mrf.mxu0
      %v2578 = vadd.f32 0.0, %v2577
      %v2579 = vpop.f32.mrf.mxu0
      %2580 = vmatprep.mubr.f32.mxu0 0.0
      %2581 = vmatmul.mubr.f32.gmra.mxu0 %v2491
      %v2582 = vpop.f32.mrf.mxu0
      %v2583 = vadd.f32 0.0, %v2582
      %v2584 = vpop.f32.mrf.mxu0
      %2585 = vmatprep.mubr.f32.mxu0 0.0
      %2586 = vmatmul.mubr.f32.gmra.mxu0 %v2494
      %v2587 = vpop.f32.mrf.mxu0
      %v2588 = vadd.f32 0.0, %v2587
      %v2589 = vpop.f32.mrf.mxu0
      %2590 = vmatprep.mubr.f32.mxu0 0.0
      %2591 = vmatmul.mubr.f32.gmra.mxu0 %v2497
      %v2592 = vpop.f32.mrf.mxu0
      %v2593 = vadd.f32 0.0, %v2592
      %v2594 = vpop.f32.mrf.mxu0
      %2595 = vmatprep.mubr.f32.mxu0 0.0
      %2596 = vmatmul.mubr.f32.gmra.mxu0 %v2500
      %v2597 = vpop.f32.mrf.mxu0
      %v2598 = vadd.f32 0.0, %v2597
      %v2599 = vpop.f32.mrf.mxu0
      %2600 = vmatprep.mubr.f32.mxu0 0.0
      %2601 = vmatmul.mubr.f32.gmra.mxu0 %v2503
      %v2602 = vpop.f32.mrf.mxu0
      %v2603 = vadd.f32 0.0, %v2602
      %v2604 = vpop.f32.mrf.mxu0
      %2605 = vmatprep.mubr.f32.mxu0 0.0
      %2606 = vmatmul.mubr.f32.gmra.mxu0 %v2506
      %v2607 = vpop.f32.mrf.mxu0
      %v2608 = vadd.f32 0.0, %v2607
      %v2609 = vpop.f32.mrf.mxu0
      %2610 = vmatprep.mubr.f32.mxu0 0.0
      %2611 = vmatmul.mubr.f32.gmra.mxu0 %v2509
      %v2612 = vpop.f32.mrf.mxu0
      %v2613 = vadd.f32 0.0, %v2612
      %v2614 = vpop.f32.mrf.mxu0
      %2615 = vdwg.mxu0
      %v2616 = vadd.f32 %v2466, %v2578
      %v2617 = vadd.f32 %v2467, %v2583
      %v2618 = vadd.f32 %v2468, %v2588
      %v2619 = vadd.f32 %v2469, %v2593
      %v2620 = vadd.f32 %v2470, %v2598
      %v2621 = vadd.f32 %v2471, %v2603
      %v2622 = vadd.f32 %v2472, %v2608
      %v2623 = vadd.f32 %v2473, %v2613
      %v2624 = vadd.f32 %v2616, %v901
      %v2625 = vadd.f32 %v2617, %v901
      %v2626 = vadd.f32 %v2618, %v901
      %v2627 = vadd.f32 %v2619, %v901
      %v2628 = vadd.f32 %v2620, %v901
      %v2629 = vadd.f32 %v2621, %v901
      %v2630 = vadd.f32 %v2622, %v901
      %v2631 = vadd.f32 %v2623, %v901
      %v2632 = vmax.f32 %v2624, 0.0
      %v2633 = vmax.f32 %v2625, 0.0
      %v2634 = vmax.f32 %v2626, 0.0
      %v2635 = vmax.f32 %v2627, 0.0
      %v2636 = vmax.f32 %v2628, 0.0
      %v2637 = vmax.f32 %v2629, 0.0
      %v2638 = vmax.f32 %v2630, 0.0
      %v2639 = vmax.f32 %v2631, 0.0
      %v2640 = vxor.u32 %v2632, 2147483648
      %v2641 = vxor.u32 %v2633, 2147483648
      %v2642 = vxor.u32 %v2634, 2147483648
      %v2643 = vxor.u32 %v2635, 2147483648
      %v2644 = vxor.u32 %v2636, 2147483648
      %v2645 = vxor.u32 %v2637, 2147483648
      %v2646 = vxor.u32 %v2638, 2147483648
      %v2647 = vxor.u32 %v2639, 2147483648
      %v2648 = vmul.f32 %v2640, 1.442695
      %v2649 = vpow.pop %v2648
      %v2650 = vmul.f32 %v2641, 1.442695
      %v2651 = vpow.pop %v2650
      %v2652 = vmul.f32 %v2642, 1.442695
      %v2653 = vpow.pop %v2652
      %v2654 = vmul.f32 %v2643, 1.442695
      %v2655 = vpow.pop %v2654
      %v2656 = vmul.f32 %v2644, 1.442695
      %v2657 = vpow.pop %v2656
      %v2658 = vmul.f32 %v2645, 1.442695
      %v2659 = vpow.pop %v2658
      %v2660 = vmul.f32 %v2646, 1.442695
      %v2661 = vpow.pop %v2660
      %v2662 = vmul.f32 %v2647, 1.442695
      %v2663 = vpow.pop %v2662
      %v2664 = vadd.f32 %v2649, 1.0
      %v2665 = vadd.f32 %v2651, 1.0
      %v2666 = vadd.f32 %v2653, 1.0
      %v2667 = vadd.f32 %v2655, 1.0
      %v2668 = vadd.f32 %v2657, 1.0
      %v2669 = vadd.f32 %v2659, 1.0
      %v2670 = vadd.f32 %v2661, 1.0
      %v2671 = vadd.f32 %v2663, 1.0
      %v2672 = vrcp.pop %v2664
      %v2673 = vmul.f32 1.0, %v2672
      %v2674 = vrcp.pop %v2665
      %v2675 = vmul.f32 1.0, %v2674
      %v2676 = vrcp.pop %v2666
      %v2677 = vmul.f32 1.0, %v2676
      %v2678 = vrcp.pop %v2667
      %v2679 = vmul.f32 1.0, %v2678
      %v2680 = vrcp.pop %v2668
      %v2681 = vmul.f32 1.0, %v2680
      %v2682 = vrcp.pop %v2669
      %v2683 = vmul.f32 1.0, %v2682
      %v2684 = vrcp.pop %v2670
      %v2685 = vmul.f32 1.0, %v2684
      %v2686 = vrcp.pop %v2671
      %v2687 = vmul.f32 1.0, %v2686
      %2696 = vrot.lane.b32.xlu0 %v1536, 4
      %v2697 = vpop.permute.xlu0 %2696
      %2698 = vrot.lane.b32.xlu0 %v1538, 4
      %v2699 = vpop.permute.xlu0 %2698
      %2700 = vrot.lane.b32.xlu0 %v1540, 4
      %v2701 = vpop.permute.xlu0 %2700
      %2702 = vrot.lane.b32.xlu0 %v1542, 4
      %v2703 = vpop.permute.xlu0 %2702
      %2704 = vrot.lane.b32.xlu0 %v1544, 4
      %v2705 = vpop.permute.xlu0 %2704
      %2706 = vrot.lane.b32.xlu0 %v1546, 4
      %v2707 = vpop.permute.xlu0 %2706
      %2708 = vrot.lane.b32.xlu0 %v1548, 4
      %v2709 = vpop.permute.xlu0 %2708
      %2710 = vrot.lane.b32.xlu0 %v1550, 4
      %v2711 = vpop.permute.xlu0 %2710
      %2728 = vrot.lane.b32.xlu0 %v2121, 8
      %v2729 = vpop.permute.xlu0 %2728
      %2730 = vrot.lane.b32.xlu0 %v2123, 8
      %v2731 = vpop.permute.xlu0 %2730
      %2732 = vrot.lane.b32.xlu0 %v2125, 8
      %v2733 = vpop.permute.xlu0 %2732
      %2734 = vrot.lane.b32.xlu0 %v2127, 8
      %v2735 = vpop.permute.xlu0 %2734
      %2736 = vrot.lane.b32.xlu0 %v2129, 8
      %v2737 = vpop.permute.xlu0 %2736
      %2738 = vrot.lane.b32.xlu0 %v2131, 8
      %v2739 = vpop.permute.xlu0 %2738
      %2740 = vrot.lane.b32.xlu0 %v2133, 8
      %v2741 = vpop.permute.xlu0 %2740
      %2742 = vrot.lane.b32.xlu0 %v2135, 8
      %v2743 = vpop.permute.xlu0 %2742
      %2760 = vrot.lane.b32.xlu0 %v2673, 12
      %v2761 = vpop.permute.xlu0 %2760
      %2762 = vrot.lane.b32.xlu0 %v2675, 12
      %v2763 = vpop.permute.xlu0 %2762
      %2764 = vrot.lane.b32.xlu0 %v2677, 12
      %v2765 = vpop.permute.xlu0 %2764
      %2766 = vrot.lane.b32.xlu0 %v2679, 12
      %v2767 = vpop.permute.xlu0 %2766
      %2768 = vrot.lane.b32.xlu0 %v2681, 12
      %v2769 = vpop.permute.xlu0 %2768
      %2770 = vrot.lane.b32.xlu0 %v2683, 12
      %v2771 = vpop.permute.xlu0 %2770
      %2772 = vrot.lane.b32.xlu0 %v2685, 12
      %v2773 = vpop.permute.xlu0 %2772
      %2774 = vrot.lane.b32.xlu0 %v2687, 12
      %v2775 = vpop.permute.xlu0 %2774
      %vm2784 = vcmask 31744
      %v2785 = vsel %vm2784, %v952, %v2697
      %v2786 = vsel %vm2784, %v954, %v2699
      %v2787 = vsel %vm2784, %v956, %v2701
      %v2788 = vsel %vm2784, %v958, %v2703
      %v2789 = vsel %vm2784, %v960, %v2705
      %v2790 = vsel %vm2784, %v962, %v2707
      %v2791 = vsel %vm2784, %v964, %v2709
      %v2792 = vsel %vm2784, %v966, %v2711
      %vm2793 = vcmask 64512
      %v2794 = vsel %vm2793, %v2785, %v2729
      %v2795 = vsel %vm2793, %v2786, %v2731
      %v2796 = vsel %vm2793, %v2787, %v2733
      %v2797 = vsel %vm2793, %v2788, %v2735
      %v2798 = vsel %vm2793, %v2789, %v2737
      %v2799 = vsel %vm2793, %v2790, %v2739
      %v2800 = vsel %vm2793, %v2791, %v2741
      %v2801 = vsel %vm2793, %v2792, %v2743
      %vm2802 = vcmask 97280
      %v2803 = vsel %vm2802, %v2794, %v2761
      %v2804 = vsel %vm2802, %v2795, %v2763
      %v2805 = vsel %vm2802, %v2796, %v2765
      %v2806 = vsel %vm2802, %v2797, %v2767
      %v2807 = vsel %vm2802, %v2798, %v2769
      %v2808 = vsel %vm2802, %v2799, %v2771
      %v2809 = vsel %vm2802, %v2800, %v2773
      %v2810 = vsel %vm2802, %v2801, %v2775
      %2811 = vst.msk [vmem:[%s217] sm:$0xff] %vm255, %v2803
      %2812 = vst.msk [vmem:[%s217 + $0x8] sm:$0xff] %vm255, %v2804
      %2813 = vst.msk [vmem:[%s217 + $0x10] sm:$0xff] %vm255, %v2805
      %2814 = vst.msk [vmem:[%s217 + $0x18] sm:$0xff] %vm255, %v2806
      %2815 = vst.msk [vmem:[%s217 + $0x20] sm:$0xff] %vm255, %v2807
      %2816 = vst.msk [vmem:[%s217 + $0x28] sm:$0xff] %vm255, %v2808
      %2817 = vst.msk [vmem:[%s217 + $0x30] sm:$0xff] %vm255, %v2809
      %2818 = vst.msk [vmem:[%s217 + $0x38] sm:$0xff] %vm255, %v2810
      %p2819 = scmp.lt.s32.totalorder %s15, 1
      %s2820 = scalar_select %p2819, %s15, 1
      %s2821 = smul.addr %s2820, 8
      %s2822 = smul.addr %s2821, 8
      %s2823 = scalar_lea.vmem %s4, %s2822
      // Predicated region
      $region37: #{dec_attention3_forward.3} parent=35 // pred_check
        %p2824 = pneg %p127
      $region38: #{dec_attention3_forward.3} parent=35 // pred_check_branch
        %2826 = sbr.rel (%p2824) target = $region40
      $region39: #{dec_attention3_forward.3} parent=35 // pred_region
        _
      $region40: #{dec_attention3_forward.3} parent=35 // pred_fallthru
        _
    $region36: #{dec_attention3_forward.3} parent=5 // pred_fallthru
      _
    %p2827 = scmp.le.s32.totalorder 2, %s10
    // Predicated region
    $region41: #{dec_attention3_forward.3} parent=5 // pred_check
      %p2828 = pneg %p2827
    $region42: #{dec_attention3_forward.3} parent=5 // pred_check_branch
      %2830 = sbr.rel (%p2828) target = $region44
    $region43: #{dec_attention3_forward.3} parent=5 // pred_region
      %s2831 = ssub.s32 %s10, 2
      // Predicated region
      $region45: #{dec_attention3_forward.3} parent=43 // pred_check
        %p2832 = pneg %p133
      $region46: #{dec_attention3_forward.3} parent=43 // pred_check_branch
        %2834 = sbr.rel (%p2832) target = $region48
      $region47: #{dec_attention3_forward.3} parent=43 // pred_region
        %p2835 = scmp.lt.s32.totalorder %s16, 1
        %s2836 = scalar_select %p2835, %s16, 1
        %s2837 = smul.addr %s2836, 8
        %s2838 = smul.addr %s2837, 8
        %s2839 = scalar_lea.vmem %s4, %s2838
      $region48: #{dec_attention3_forward.3} parent=43 // pred_fallthru
        _
    $region44: #{dec_attention3_forward.3} parent=5 // pred_fallthru
      _
  $region6: #{dec_attention3_forward.3} parent=0 // loop_footer
    %s14 = sadd.s32 1, %s10
  $region7: #{dec_attention3_forward.3} parent=0 // loop_footer_branch
    %9 = sbr.rel target = $region3
  $region8: #{dec_attention3_forward.3} parent=0 // loop_exit
    _

</llo_original>
